<compile_context>
chip_gen: v7x
topology: tpu7x:2x2x1
jax: 0.10.0
libtpu: 0.0.40
codegen_flags: <defaults>
</compile_context>

<pallas_src>
from functools import partial

import jax
import jax.numpy as jnp
from jax import lax
from jax.experimental import pallas as pl
from jax.experimental.pallas import tpu as pltpu

GROUP = 51  # hard-coded group size from the module (`ranker_logits.size(0) // 51`)


# ----------------------------------------------------------------------------
# Kernel: synthetic causal-LM "encode" -> last-position 'Yes' logit per row.
# One grid step handles a (TB, S, H) activation tile; weights stay resident.
# ----------------------------------------------------------------------------
def encode_kernel(x_ref, mask_ref, wq_ref, wk_ref, wv_ref, wo_ref,
                  w1_ref, w2_ref, wln_ref, wyes_ref, out_ref):
    x = x_ref[...].astype(jnp.float32)          # (TB, S, H) residual stream in f32
    m = mask_ref[...]                           # (TB, S)    f32 attention mask (1/0)
    TB, S, H = x.shape

    # --- QKV projections: flatten batch*seq into the M dim (MXU-shaped) ---
    x2 = x.reshape(TB * S, H)                   # (M, H) f32
    xb = x2.astype(jnp.bfloat16)
    q = jnp.dot(xb, wq_ref[...], preferred_element_type=jnp.float32).reshape(TB, S, H)
    k = jnp.dot(xb, wk_ref[...], preferred_element_type=jnp.float32).reshape(TB, S, H)
    v = jnp.dot(xb, wv_ref[...], preferred_element_type=jnp.float32).reshape(TB, S, H)

    # --- attention scores with additive causal + left-padding bias ---
    scale = 1.0 / jnp.sqrt(jnp.float32(H))
    scores = jnp.einsum('bqd,bkd->bqk',
                        q.astype(jnp.bfloat16), k.astype(jnp.bfloat16),
                        preferred_element_type=jnp.float32) * scale
    qi = lax.broadcasted_iota(jnp.int32, (S, S), 0)
    ki = lax.broadcasted_iota(jnp.int32, (S, S), 1)
    causal_bias = jnp.where(ki <= qi, 0.0, -1e9).astype(jnp.float32)    # (S, S)
    key_bias = (1.0 - m) * jnp.float32(-1e9)                            # (TB, S)
    scores = scores + causal_bias[None, :, :] + key_bias[:, None, :]

    # --- softmax in f32 (EUP reciprocal for the denominator) ---
    smax = jnp.max(scores, axis=-1, keepdims=True)
    e = jnp.exp(scores - smax)
    denom = jnp.sum(e, axis=-1, keepdims=True)
    p = e * pl.reciprocal(denom, approx=True)

    attn = jnp.einsum('bqk,bkd->bqd',
                      p.astype(jnp.bfloat16), v.astype(jnp.bfloat16),
                      preferred_element_type=jnp.float32)
    attn2 = attn.reshape(TB * S, H).astype(jnp.bfloat16)
    attn_out = jnp.dot(attn2, wo_ref[...], preferred_element_type=jnp.float32)
    x2 = x2 + attn_out                                                   # residual

    # --- MLP (2-D matmuls, bf16 in / f32 acc) ---
    h = jnp.dot(x2.astype(jnp.bfloat16), w1_ref[...],
                preferred_element_type=jnp.float32)
    h = jnp.maximum(h, 0.0)
    h2 = jnp.dot(h.astype(jnp.bfloat16), w2_ref[...],
                 preferred_element_type=jnp.float32)
    x2 = x2 + h2

    # --- last position (tokenizer uses padding_side='left', so pos -1 is real) ---
    x_last = x2.reshape(TB, S, H)[:, S - 1, :]                           # (TB, H)
    var = jnp.mean(x_last * x_last, axis=-1, keepdims=True)
    x_last = x_last * lax.rsqrt(var + 1e-6) * wln_ref[...]               # RMSNorm

    # --- LM head restricted to the 'Yes' column (padded to 128 lanes) ---
    out_ref[...] = jnp.dot(x_last.astype(jnp.bfloat16), wyes_ref[...],
                           preferred_element_type=jnp.float32)           # (TB, 128)


# ----------------------------------------------------------------------------
# Wrapper: RerankerModel.forward (loss only; no torch.distributed / file I/O)
# ----------------------------------------------------------------------------
@partial(jax.jit, static_argnames=('yes_loc',))
def reranker_forward(params, input_ids, attention_mask, yes_loc):
    B, S = input_ids.shape
    H = params['tok_emb'].shape[1]
    F = params['w1'].shape[1]

    TB = 16                                   # batch tile (TB*S = 128 MXU rows)
    B_pad = pl.cdiv(B, TB) * TB
    pad = B_pad - B

    # glue: embedding lookup + learned positions (gather stays in plain JAX)
    x = params['tok_emb'][input_ids] + params['pos_emb'][None, :S, :]
    x = jnp.pad(x, ((0, pad), (0, 0), (0, 0))).astype(jnp.bfloat16)
    mask = jnp.pad(attention_mask.astype(jnp.float32), ((0, pad), (0, 0)),
                   constant_values=1.0)

    # only the 'Yes' column of the LM head, zero-padded to 128 lanes
    w_yes = params['w_lm'][:, yes_loc:yes_loc + 1]                       # (H, 1)
    w_yes = jnp.pad(w_yes, ((0, 0), (0, 127))).astype(jnp.bfloat16)      # (H, 128)

    wq = params['wq'].astype(jnp.bfloat16)
    wk = params['wk'].astype(jnp.bfloat16)
    wv = params['wv'].astype(jnp.bfloat16)
    wo = params['wo'].astype(jnp.bfloat16)
    w1 = params['w1'].astype(jnp.bfloat16)
    w2 = params['w2'].astype(jnp.bfloat16)
    wln = params['wln']                                                  # f32

    const = lambda *_: (0, 0)
    out = pl.pallas_call(
        encode_kernel,
        out_shape=jax.ShapeDtypeStruct((B_pad, 128), jnp.float32),
        grid=(B_pad // TB,),
        in_specs=[
            pl.BlockSpec((TB, S, H), lambda b: (b, 0, 0)),   # x tile
            pl.BlockSpec((TB, S), lambda b: (b, 0)),         # mask tile
            pl.BlockSpec((H, H), const),                     # wq (resident)
            pl.BlockSpec((H, H), const),                     # wk
            pl.BlockSpec((H, H), const),                     # wv
            pl.BlockSpec((H, H), const),                     # wo
            pl.BlockSpec((H, F), const),                     # w1
            pl.BlockSpec((F, H), const),                     # w2
            pl.BlockSpec((1, H), const),                     # wln
            pl.BlockSpec((H, 128), const),                   # w_yes (padded)
        ],
        out_specs=pl.BlockSpec((TB, 128), lambda b: (b, 0)),
        compiler_params=pltpu.CompilerParams(
            dimension_semantics=("parallel",),
            vmem_limit_bytes=32 * 1024 * 1024),
    )(x, mask, wq, wk, wv, wo, w1, w2, wln, w_yes)

    # scores = logits[:, -1, yes_loc]; drop padded rows, lane 0 holds the logit
    scores = out[:B, 0]                                      # (B,)
    grouped = scores.reshape(B // GROUP, GROUP)              # (G, 51)

    # CrossEntropyLoss(mean) with target index 0 for every group (tiny; plain JAX)
    gmax = jnp.max(grouped, axis=-1, keepdims=True)
    lse = gmax[:, 0] + jnp.log(jnp.sum(jnp.exp(grouped - gmax), axis=-1))
    loss = jnp.mean(lse - grouped[:, 0])
    return loss


# ----------------------------------------------------------------------------
# Deterministic parameter init + example inputs
# ----------------------------------------------------------------------------
def init_params(key, vocab, seq, hidden, ffn):
    ks = jax.random.split(key, 10)
    s = 0.05
    return {
        'tok_emb': jax.random.normal(ks[0], (vocab, hidden), jnp.float32) * s,
        'pos_emb': jax.random.normal(ks[1], (seq, hidden), jnp.float32) * s,
        'wq': jax.random.normal(ks[2], (hidden, hidden), jnp.float32) * s,
        'wk': jax.random.normal(ks[3], (hidden, hidden), jnp.float32) * s,
        'wv': jax.random.normal(ks[4], (hidden, hidden), jnp.float32) * s,
        'wo': jax.random.normal(ks[5], (hidden, hidden), jnp.float32) * s,
        'w1': jax.random.normal(ks[6], (hidden, ffn), jnp.float32) * s,
        'w2': jax.random.normal(ks[7], (ffn, hidden), jnp.float32) * s,
        'wln': jnp.ones((1, hidden), jnp.float32),
        'w_lm': jax.random.normal(ks[8], (hidden, vocab), jnp.float32) * s,
    }


if __name__ == "__main__":
    key = jax.random.PRNGKey(0)
    G = 2                      # number of (query, 51 candidates) groups
    B = G * GROUP              # 102 sequences, as implied by `.view(B // 51, -1)`
    S = 8                      # sequence length
    H = 128                    # hidden size (lane-aligned)
    F = 256                    # MLP width   (lane-aligned)
    V = 512                    # vocab size
    YES_LOC = 7                # synthetic token id for 'Yes'

    kp, ki, km = jax.random.split(key, 3)
    params = init_params(kp, V, S, H, F)

    input_ids = jax.random.randint(ki, (B, S), 0, V, dtype=jnp.int32)

    # left padding: first `pad_len` positions of each sequence are padding
    pad_len = jax.random.randint(km, (B, 1), 0, 3, dtype=jnp.int32)
    pos = jnp.arange(S, dtype=jnp.int32)[None, :]
    attention_mask = (pos >= pad_len).astype(jnp.int32)      # (B, S), 0 = pad (left)

    # TODO(synk): torch.distributed rank check and loss.jsonl file writing are
    # host-side side effects with no Pallas equivalent; omitted.
    loss = reranker_forward(params, input_ids, attention_mask, YES_LOC)
    jax.block_until_ready(loss)

    assert loss.shape == () and jnp.isfinite(loss)
    print("KERNEL_OK")
</pallas_src>

<mosaic_0001>
module attributes {stable_mosaic.version = 11 : i64} {
  func.func @encode_kernel(%arg0: i32, %arg1: memref<16x8x128xbf16, #tpu.memory_space<vmem>>, %arg2: memref<16x8xf32, #tpu.memory_space<vmem>>, %arg3: memref<128x128xbf16, #tpu.memory_space<vmem>>, %arg4: memref<128x128xbf16, #tpu.memory_space<vmem>>, %arg5: memref<128x128xbf16, #tpu.memory_space<vmem>>, %arg6: memref<128x128xbf16, #tpu.memory_space<vmem>>, %arg7: memref<128x256xbf16, #tpu.memory_space<vmem>>, %arg8: memref<256x128xbf16, #tpu.memory_space<vmem>>, %arg9: memref<1x128xf32, #tpu.memory_space<vmem>>, %arg10: memref<128x128xbf16, #tpu.memory_space<vmem>>, %arg11: memref<16x128xf32, #tpu.memory_space<vmem>>) attributes {dimension_semantics = [#tpu.dimension_semantics<parallel>], iteration_bounds = array<i64: 7>, scalar_prefetch = 0 : i64, scratch_operands = 0 : i64, tpu.core_type = #tpu.core_type<tc>, window_params = [{transform_indices = @transform_0, window_bounds = array<i64: 16, 8, 128>}, {transform_indices = @transform_1, window_bounds = array<i64: 16, 8>}, {pipeline_mode = #tpu.pipeline_mode<synchronous>, transform_indices = @transform_2, window_bounds = array<i64: 128, 128>}, {pipeline_mode = #tpu.pipeline_mode<synchronous>, transform_indices = @transform_3, window_bounds = array<i64: 128, 128>}, {pipeline_mode = #tpu.pipeline_mode<synchronous>, transform_indices = @transform_4, window_bounds = array<i64: 128, 128>}, {pipeline_mode = #tpu.pipeline_mode<synchronous>, transform_indices = @transform_5, window_bounds = array<i64: 128, 128>}, {pipeline_mode = #tpu.pipeline_mode<synchronous>, transform_indices = @transform_6, window_bounds = array<i64: 128, 256>}, {pipeline_mode = #tpu.pipeline_mode<synchronous>, transform_indices = @transform_7, window_bounds = array<i64: 256, 128>}, {pipeline_mode = #tpu.pipeline_mode<synchronous>, transform_indices = @transform_8, window_bounds = array<i64: 1, 128>}, {pipeline_mode = #tpu.pipeline_mode<synchronous>, transform_indices = @transform_9, window_bounds = array<i64: 128, 128>}, {transform_indices = @transform_10, window_bounds = array<i64: 16, 128>}]} {
    %c0 = arith.constant 0 : index
    %c0_0 = arith.constant 0 : index
    %c0_1 = arith.constant 0 : index
    %0 = vector.load %arg1[%c0, %c0_0, %c0_1] : memref<16x8x128xbf16, #tpu.memory_space<vmem>>, vector<16x8x128xbf16>
    %1 = arith.extf %0 : vector<16x8x128xbf16> to vector<16x8x128xf32>
    %c0_2 = arith.constant 0 : index
    %c0_3 = arith.constant 0 : index
    %2 = vector.load %arg2[%c0_2, %c0_3] : memref<16x8xf32, #tpu.memory_space<vmem>>, vector<16x8xf32>
    %3 = vector.shape_cast %1 : vector<16x8x128xf32> to vector<128x128xf32>
    %4 = arith.truncf %3 : vector<128x128xf32> to vector<128x128xbf16>
    %c0_4 = arith.constant 0 : index
    %c0_5 = arith.constant 0 : index
    %5 = vector.load %arg3[%c0_4, %c0_5] : memref<128x128xbf16, #tpu.memory_space<vmem>>, vector<128x128xbf16>
    %cst = arith.constant dense<0.000000e+00> : vector<128x128xf32>
    %6 = tpu.matmul %4, %5, %cst {dimension_numbers = #tpu.dot_dimension_numbers<[1], [0], [0], [1], [0, 0, 1, 1], [], []>} : vector<128x128xbf16>, vector<128x128xbf16>, vector<128x128xf32> -> vector<128x128xf32>
    %7 = vector.shape_cast %6 : vector<128x128xf32> to vector<16x8x128xf32>
    %c0_6 = arith.constant 0 : index
    %c0_7 = arith.constant 0 : index
    %8 = vector.load %arg4[%c0_6, %c0_7] : memref<128x128xbf16, #tpu.memory_space<vmem>>, vector<128x128xbf16>
    %cst_8 = arith.constant dense<0.000000e+00> : vector<128x128xf32>
    %9 = tpu.matmul %4, %8, %cst_8 {dimension_numbers = #tpu.dot_dimension_numbers<[1], [0], [0], [1], [0, 0, 1, 1], [], []>} : vector<128x128xbf16>, vector<128x128xbf16>, vector<128x128xf32> -> vector<128x128xf32>
    %10 = vector.shape_cast %9 : vector<128x128xf32> to vector<16x8x128xf32>
    %c0_9 = arith.constant 0 : index
    %c0_10 = arith.constant 0 : index
    %11 = vector.load %arg5[%c0_9, %c0_10] : memref<128x128xbf16, #tpu.memory_space<vmem>>, vector<128x128xbf16>
    %cst_11 = arith.constant dense<0.000000e+00> : vector<128x128xf32>
    %12 = tpu.matmul %4, %11, %cst_11 {dimension_numbers = #tpu.dot_dimension_numbers<[1], [0], [0], [1], [0, 0, 1, 1], [], []>} : vector<128x128xbf16>, vector<128x128xbf16>, vector<128x128xf32> -> vector<128x128xf32>
    %13 = vector.shape_cast %12 : vector<128x128xf32> to vector<16x8x128xf32>
    %cst_12 = arith.constant 1.280000e+02 : f32
    %14 = math.sqrt %cst_12 : f32
    %cst_13 = arith.constant 1.000000e+00 : f32
    %15 = arith.divf %cst_13, %14 : f32
    %16 = arith.truncf %7 : vector<16x8x128xf32> to vector<16x8x128xbf16>
    %17 = arith.truncf %10 : vector<16x8x128xf32> to vector<16x8x128xbf16>
    "tpu.trace_start"() <{level = 10 : i32, message = "bqd,bkd->bqk"}> : () -> ()
    %cst_14 = arith.constant dense<0.000000e+00> : vector<16x8x8xf32>
    %18 = tpu.matmul %16, %17, %cst_14 {dimension_numbers = #tpu.dot_dimension_numbers<[2], [2], [1], [1], [0, 0, 0, 1, 1, 1], [0], [0]>} : vector<16x8x128xbf16>, vector<16x8x128xbf16>, vector<16x8x8xf32> -> vector<16x8x8xf32>
    "tpu.trace_stop"() : () -> ()
    %19 = vector.broadcast %15 : f32 to vector<16x8x8xf32>
    %20 = arith.mulf %18, %19 : vector<16x8x8xf32>
    %21 = tpu.iota {dimensions = array<i32: 0>} : vector<8x8xi32>
    %22 = tpu.iota {dimensions = array<i32: 1>} : vector<8x8xi32>
    %23 = arith.cmpi sle, %22, %21 : vector<8x8xi32>
    %cst_15 = arith.constant 0.000000e+00 : f32
    %cst_16 = arith.constant -1.000000e+09 : f32
    %24 = vector.broadcast %cst_15 : f32 to vector<8x8xf32>
    %25 = vector.broadcast %cst_16 : f32 to vector<8x8xf32>
    %26 = arith.select %23, %24, %25 : vector<8x8xi1>, vector<8x8xf32>
    %cst_17 = arith.constant 1.000000e+00 : f32
    %27 = vector.broadcast %cst_17 : f32 to vector<16x8xf32>
    %28 = arith.subf %27, %2 : vector<16x8xf32>
    %cst_18 = arith.constant -1.000000e+09 : f32
    %29 = vector.broadcast %cst_18 : f32 to vector<16x8xf32>
    %30 = arith.mulf %28, %29 : vector<16x8xf32>
    %31 = vector.shape_cast %26 : vector<8x8xf32> to vector<1x8x8xf32>
    %32 = vector.broadcast %31 : vector<1x8x8xf32> to vector<16x8x8xf32>
    %33 = arith.addf %20, %32 : vector<16x8x8xf32>
    %34 = vector.shape_cast %30 : vector<16x8xf32> to vector<16x1x8xf32>
    %35 = vector.broadcast %34 : vector<16x1x8xf32> to vector<16x8x8xf32>
    %36 = arith.addf %33, %35 : vector<16x8x8xf32>
    %cst_19 = arith.constant dense<0xFF800000> : vector<16x8xf32>
    %37 = vector.multi_reduction <maximumf>, %36, %cst_19 [2] : vector<16x8x8xf32> to vector<16x8xf32>
    %38 = vector.shape_cast %37 : vector<16x8xf32> to vector<16x8x1xf32>
    %39 = vector.broadcast %38 : vector<16x8x1xf32> to vector<16x8x8xf32>
    %40 = arith.subf %36, %39 : vector<16x8x8xf32>
    %41 = math.exp %40 : vector<16x8x8xf32>
    %cst_20 = arith.constant dense<0.000000e+00> : vector<16x8xf32>
    %42 = vector.multi_reduction <add>, %41, %cst_20 [2] : vector<16x8x8xf32> to vector<16x8xf32>
    %43 = vector.shape_cast %42 : vector<16x8xf32> to vector<16x8x1xf32>
    %44 = tpu.reciprocal %43 {approx = true} : vector<16x8x1xf32> -> vector<16x8x1xf32>
    %45 = vector.broadcast %44 : vector<16x8x1xf32> to vector<16x8x8xf32>
    %46 = arith.mulf %41, %45 : vector<16x8x8xf32>
    %47 = arith.truncf %46 : vector<16x8x8xf32> to vector<16x8x8xbf16>
    %48 = arith.truncf %13 : vector<16x8x128xf32> to vector<16x8x128xbf16>
    "tpu.trace_start"() <{level = 10 : i32, message = "bqk,bkd->bqd"}> : () -> ()
    %cst_21 = arith.constant dense<0.000000e+00> : vector<16x8x128xf32>
    %49 = tpu.matmul %47, %48, %cst_21 {dimension_numbers = #tpu.dot_dimension_numbers<[2], [1], [1], [2], [0, 0, 0, 1, 1, 2], [0], [0]>} : vector<16x8x8xbf16>, vector<16x8x128xbf16>, vector<16x8x128xf32> -> vector<16x8x128xf32>
    "tpu.trace_stop"() : () -> ()
    %50 = vector.shape_cast %49 : vector<16x8x128xf32> to vector<128x128xf32>
    %51 = arith.truncf %50 : vector<128x128xf32> to vector<128x128xbf16>
    %c0_22 = arith.constant 0 : index
    %c0_23 = arith.constant 0 : index
    %52 = vector.load %arg6[%c0_22, %c0_23] : memref<128x128xbf16, #tpu.memory_space<vmem>>, vector<128x128xbf16>
    %cst_24 = arith.constant dense<0.000000e+00> : vector<128x128xf32>
    %53 = tpu.matmul %51, %52, %cst_24 {dimension_numbers = #tpu.dot_dimension_numbers<[1], [0], [0], [1], [0, 0, 1, 1], [], []>} : vector<128x128xbf16>, vector<128x128xbf16>, vector<128x128xf32> -> vector<128x128xf32>
    %54 = arith.addf %3, %53 : vector<128x128xf32>
    %55 = arith.truncf %54 : vector<128x128xf32> to vector<128x128xbf16>
    %c0_25 = arith.constant 0 : index
    %c0_26 = arith.constant 0 : index
    %56 = vector.load %arg7[%c0_25, %c0_26] : memref<128x256xbf16, #tpu.memory_space<vmem>>, vector<128x256xbf16>
    %cst_27 = arith.constant dense<0.000000e+00> : vector<128x256xf32>
    %57 = tpu.matmul %55, %56, %cst_27 {dimension_numbers = #tpu.dot_dimension_numbers<[1], [0], [0], [1], [0, 0, 1, 1], [], []>} : vector<128x128xbf16>, vector<128x256xbf16>, vector<128x256xf32> -> vector<128x256xf32>
    %cst_28 = arith.constant 0.000000e+00 : f32
    %58 = vector.broadcast %cst_28 : f32 to vector<128x256xf32>
    %59 = arith.maximumf %57, %58 : vector<128x256xf32>
    %60 = arith.truncf %59 : vector<128x256xf32> to vector<128x256xbf16>
    %c0_29 = arith.constant 0 : index
    %c0_30 = arith.constant 0 : index
    %61 = vector.load %arg8[%c0_29, %c0_30] : memref<256x128xbf16, #tpu.memory_space<vmem>>, vector<256x128xbf16>
    %cst_31 = arith.constant dense<0.000000e+00> : vector<128x128xf32>
    %62 = tpu.matmul %60, %61, %cst_31 {dimension_numbers = #tpu.dot_dimension_numbers<[1], [0], [0], [1], [0, 0, 1, 1], [], []>} : vector<128x256xbf16>, vector<256x128xbf16>, vector<128x128xf32> -> vector<128x128xf32>
    %63 = arith.addf %54, %62 : vector<128x128xf32>
    %64 = vector.shape_cast %63 : vector<128x128xf32> to vector<16x8x128xf32>
    %65 = vector.extract_strided_slice %64 {offsets = [0, 7, 0], sizes = [16, 1, 128], strides = [1, 1, 1]} : vector<16x8x128xf32> to vector<16x1x128xf32>
    %66 = vector.shape_cast %65 : vector<16x1x128xf32> to vector<16x128xf32>
    %67 = arith.mulf %66, %66 : vector<16x128xf32>
    %cst_32 = arith.constant dense<0.000000e+00> : vector<16xf32>
    %68 = vector.multi_reduction <add>, %67, %cst_32 [1] : vector<16x128xf32> to vector<16xf32>
    %69 = vector.shape_cast %68 : vector<16xf32> to vector<16x1xf32>
    %cst_33 = arith.constant 1.280000e+02 : f32
    %70 = vector.broadcast %cst_33 : f32 to vector<16x1xf32>
    %71 = arith.divf %69, %70 : vector<16x1xf32>
    %cst_34 = arith.constant 9.99999997E-7 : f32
    %72 = vector.broadcast %cst_34 : f32 to vector<16x1xf32>
    %73 = arith.addf %71, %72 : vector<16x1xf32>
    %74 = math.rsqrt %73 : vector<16x1xf32>
    %75 = vector.broadcast %74 : vector<16x1xf32> to vector<16x128xf32>
    %76 = arith.mulf %66, %75 : vector<16x128xf32>
    %c0_35 = arith.constant 0 : index
    %c0_36 = arith.constant 0 : index
    %77 = vector.load %arg9[%c0_35, %c0_36] : memref<1x128xf32, #tpu.memory_space<vmem>>, vector<1x128xf32>
    %78 = vector.broadcast %77 : vector<1x128xf32> to vector<16x128xf32>
    %79 = arith.mulf %76, %78 : vector<16x128xf32>
    %80 = arith.truncf %79 : vector<16x128xf32> to vector<16x128xbf16>
    %c0_37 = arith.constant 0 : index
    %c0_38 = arith.constant 0 : index
    %81 = vector.load %arg10[%c0_37, %c0_38] : memref<128x128xbf16, #tpu.memory_space<vmem>>, vector<128x128xbf16>
    %cst_39 = arith.constant dense<0.000000e+00> : vector<16x128xf32>
    %82 = tpu.matmul %80, %81, %cst_39 {dimension_numbers = #tpu.dot_dimension_numbers<[1], [0], [0], [1], [0, 0, 1, 1], [], []>} : vector<16x128xbf16>, vector<128x128xbf16>, vector<16x128xf32> -> vector<16x128xf32>
    %c0_40 = arith.constant 0 : index
    %c0_41 = arith.constant 0 : index
    %83 = vector.load %arg11[%c0_40, %c0_41] : memref<16x128xf32, #tpu.memory_space<vmem>>, vector<16x128xf32>
    tpu.vector_store %arg11[%c0_40, %c0_41], %82 {strides = array<i32>} : memref<16x128xf32, #tpu.memory_space<vmem>>, vector<16x128xf32>,
    return
  }
  func.func @transform_0(%arg0: i32) -> (i32, i32, i32) {
    %c0_i32 = arith.constant 0 : i32
    %c0_i32_0 = arith.constant 0 : i32
    %c0_i32_1 = arith.constant 0 : i32
    return %arg0, %c0_i32, %c0_i32_0 : i32, i32, i32
  }
  func.func @transform_1(%arg0: i32) -> (i32, i32) {
    %c0_i32 = arith.constant 0 : i32
    %c0_i32_0 = arith.constant 0 : i32
    return %arg0, %c0_i32 : i32, i32
  }
  func.func @transform_2(%arg0: i32) -> (i32, i32) {
    %c0_i32 = arith.constant 0 : i32
    %c0_i32_0 = arith.constant 0 : i32
    %c0_i32_1 = arith.constant 0 : i32
    return %c0_i32, %c0_i32_0 : i32, i32
  }
  func.func @transform_3(%arg0: i32) -> (i32, i32) {
    %c0_i32 = arith.constant 0 : i32
    %c0_i32_0 = arith.constant 0 : i32
    %c0_i32_1 = arith.constant 0 : i32
    return %c0_i32, %c0_i32_0 : i32, i32
  }
  func.func @transform_4(%arg0: i32) -> (i32, i32) {
    %c0_i32 = arith.constant 0 : i32
    %c0_i32_0 = arith.constant 0 : i32
    %c0_i32_1 = arith.constant 0 : i32
    return %c0_i32, %c0_i32_0 : i32, i32
  }
  func.func @transform_5(%arg0: i32) -> (i32, i32) {
    %c0_i32 = arith.constant 0 : i32
    %c0_i32_0 = arith.constant 0 : i32
    %c0_i32_1 = arith.constant 0 : i32
    return %c0_i32, %c0_i32_0 : i32, i32
  }
  func.func @transform_6(%arg0: i32) -> (i32, i32) {
    %c0_i32 = arith.constant 0 : i32
    %c0_i32_0 = arith.constant 0 : i32
    %c0_i32_1 = arith.constant 0 : i32
    return %c0_i32, %c0_i32_0 : i32, i32
  }
  func.func @transform_7(%arg0: i32) -> (i32, i32) {
    %c0_i32 = arith.constant 0 : i32
    %c0_i32_0 = arith.constant 0 : i32
    %c0_i32_1 = arith.constant 0 : i32
    return %c0_i32, %c0_i32_0 : i32, i32
  }
  func.func @transform_8(%arg0: i32) -> (i32, i32) {
    %c0_i32 = arith.constant 0 : i32
    %c0_i32_0 = arith.constant 0 : i32
    %c0_i32_1 = arith.constant 0 : i32
    return %c0_i32, %c0_i32_0 : i32, i32
  }
  func.func @transform_9(%arg0: i32) -> (i32, i32) {
    %c0_i32 = arith.constant 0 : i32
    %c0_i32_0 = arith.constant 0 : i32
    %c0_i32_1 = arith.constant 0 : i32
    return %c0_i32, %c0_i32_0 : i32, i32
  }
  func.func @transform_10(%arg0: i32) -> (i32, i32) {
    %c0_i32 = arith.constant 0 : i32
    %c0_i32_0 = arith.constant 0 : i32
    return %arg0, %c0_i32 : i32, i32
  }
}

</mosaic_0001>

<llo_original>
// kernel: squeeze.2
$region0: #{squeeze.2}
  %s0 = inlined_call_operand.vmem [shape: f32[102], index: 0, kind: input, shape index: {}]
  %s1 = inlined_call_operand.vmem [shape: f32[2,51], index: 1, kind: output, shape index: {}]
  $region1: #{squeeze.2} parent=0
    #allocation0 [shape = 'u8[4096]{0}', space=vmem, size = 0x1000, scoped, tag = 'scoped mem for output reshape']
    #allocation1 [shape = 'u8[4096]{0}', space=vmem, size = 0x1000, scoped, tag = 'scoped mem for input reshape']
    %s3 = sshllo.u32 0, 1
    %v4 = vld [vmem:[%s0] sm:%s3]
    %5 = vst [vmem:[#allocation1] sm:%s3] %v4
    %v6 = vld [vmem:[#allocation1] sm:$0x1]
    %vm7 = vcmask 416768
    %8 = vst.msk [vmem:[#allocation0] sm:$0x1] %vm7, %v6
    %v9 = vld [vmem:[#allocation1] sm:$0x1]
    %10 = vrot.lane.b32.xlu0 %v9, 77
    %v11 = vpop.permute.xlu0 %10
    %vm12 = vcmask 416768
    %s13 = scalar_lea.vmem [#allocation0], 1
    %14 = vst.msk [vmem:[%s13] sm:$0x1] %vm12, %v11
    %s16 = sshllo.u32 0, 2
    %v18 = vld [vmem:[#allocation0] sm:%s16]
    %s19 = sshllo.u32 0, 2
    %20 = vst [vmem:[%s1] sm:%s19] %v18

// kernel: reranker_forward.1
$region0: #{reranker_forward.1}
  #allocation0 [shape = 'u32[]', space=smem, size = 0x4, offset = 0x4, fixed_abs, tag = 'smem constant byte address 0x4 - core index']
  #allocation1 [shape = 'u32[144,128]{1,0:T(1,128)}', space=vmem, size = 0x12000, scoped, tag = 'internal scratch']
  %s0 = inlined_call_operand.vmem [shape: bf16[112,8,128], index: 0, kind: input, shape index: {}]
  %s1 = inlined_call_operand.vmem [shape: f32[112,8], index: 1, kind: input, shape index: {}]
  %s2 = inlined_call_operand.vmem [shape: bf16[128,128], index: 2, kind: input, shape index: {}]
  %s3 = inlined_call_operand.vmem [shape: bf16[128,128], index: 3, kind: input, shape index: {}]
  %s4 = inlined_call_operand.vmem [shape: bf16[128,128], index: 4, kind: input, shape index: {}]
  %s5 = inlined_call_operand.vmem [shape: bf16[128,128], index: 5, kind: input, shape index: {}]
  %s6 = inlined_call_operand.vmem [shape: bf16[128,256], index: 6, kind: input, shape index: {}]
  %s7 = inlined_call_operand.vmem [shape: bf16[256,128], index: 7, kind: input, shape index: {}]
  %s8 = inlined_call_operand.vmem [shape: f32[1,128], index: 8, kind: input, shape index: {}]
  %s9 = inlined_call_operand.vmem [shape: bf16[128,128], index: 9, kind: input, shape index: {}]
  %s10 = inlined_call_operand.vmem [shape: f32[112,128], index: 10, kind: output, shape index: {}]
  %s11 = sld [smem:[#allocation0]]
  $region73: #{reranker_forward.1} parent=0
    _
  %s13 = ssub.s32 1, %s11
  %s14 = scalar_select 0, %s13, %s11
  loop: start=0, step=1, limit=9
  $region2: #{reranker_forward.1} parent=0 // loop_pre_header
    _
  $region3: #{reranker_forward.1} parent=0 // loop_header
    %s16 = sphi 0, %s20
    %p17 = scmp.ge.s32.totalorder %s16, 9
    %s26 = sphi 0, %s28
    %s29 = sphi 0, %s26
    %s30 = sphi 0, %s29
    %s46 = sphi 0, %s30
    %s52 = sphi 0, %s54
    %s55 = sphi 0, %s52
    %s56 = sphi 0, %s55
    %s72 = sphi 0, %s56
    %s76 = sphi 0, %s76
    %s78 = sphi 0, %s76
    %s79 = sphi 0, %s78
    %s93 = sphi 0, %s79
    %s97 = sphi 0, %s97
    %s99 = sphi 0, %s97
    %s100 = sphi 0, %s99
    %s114 = sphi 0, %s100
    %s118 = sphi 0, %s118
    %s120 = sphi 0, %s118
    %s121 = sphi 0, %s120
    %s135 = sphi 0, %s121
    %s139 = sphi 0, %s139
    %s141 = sphi 0, %s139
    %s142 = sphi 0, %s141
    %s156 = sphi 0, %s142
    %s160 = sphi 0, %s160
    %s162 = sphi 0, %s160
    %s163 = sphi 0, %s162
    %s177 = sphi 0, %s163
    %s181 = sphi 0, %s181
    %s183 = sphi 0, %s181
    %s184 = sphi 0, %s183
    %s198 = sphi 0, %s184
    %s202 = sphi 0, %s202
    %s204 = sphi 0, %s202
    %s205 = sphi 0, %s204
    %s219 = sphi 0, %s205
    %s223 = sphi 0, %s223
    %s225 = sphi 0, %s223
    %s226 = sphi 0, %s225
    %s240 = sphi 0, %s226
    %s246 = sphi 0, %s248
    %s249 = sphi 0, %s246
    %s250 = sphi 0, %s249
    %s266 = sphi 0, %s250
  $region4: #{reranker_forward.1} parent=0 // loop_header_branch
    %19 = sbr.rel (%p17) target = $region8
  $region5: #{reranker_forward.1} parent=0 // loop_body
    %s21 = ssub.s32 %s16, 1
    %s22 = ssub.s32 %s16, 2
    %s23 = sadd.s32 %s16, 1
    %s24 = ssub.s32 %s16, %s23
    %p25 = scmp.eq.s32.totalorder %s24, 0
    %s27 = sadd.s32 %s26, 1
    %s28 = scalar_select %p25, %s26, %s27
    %p31 = pneg %p25
    %p32 = scmp.eq.s32.totalorder %s16, 6
    %p33 = por %p31, %p32
    %p34 = scmp.ne.s32.totalorder %s26, %s29
    %p35 = scmp.eq.s32.totalorder %s16, 0
    %p36 = por %p34, %p35
    %p37 = scmp.ne.s32.totalorder %s26, %s29
    %p38 = scmp.eq.s32.totalorder %s21, 6
    %p39 = por %p37, %p38
    %p40 = scmp.ne.s32.totalorder %s29, %s30
    %p41 = scmp.eq.s32.totalorder %s21, 0
    %p42 = por %p40, %p41
    %p43 = scmp.ne.s32.totalorder %s29, %s30
    %p44 = scmp.eq.s32.totalorder %s22, 6
    %p45 = por %p43, %p44
    %p47 = scmp.ne.s32.totalorder %s30, %s46
    %p48 = scmp.eq.s32.totalorder %s22, 0
    %p49 = por %p47, %p48
    %s50 = ssub.s32 %s16, %s23
    %p51 = scmp.eq.s32.totalorder %s50, 0
    %s53 = sadd.s32 %s52, 1
    %s54 = scalar_select %p51, %s52, %s53
    %p57 = pneg %p51
    %p58 = scmp.eq.s32.totalorder %s16, 6
    %p59 = por %p57, %p58
    %p60 = scmp.ne.s32.totalorder %s52, %s55
    %p61 = scmp.eq.s32.totalorder %s16, 0
    %p62 = por %p60, %p61
    %p63 = scmp.ne.s32.totalorder %s52, %s55
    %p64 = scmp.eq.s32.totalorder %s21, 6
    %p65 = por %p63, %p64
    %p66 = scmp.ne.s32.totalorder %s55, %s56
    %p67 = scmp.eq.s32.totalorder %s21, 0
    %p68 = por %p66, %p67
    %p69 = scmp.ne.s32.totalorder %s55, %s56
    %p70 = scmp.eq.s32.totalorder %s22, 6
    %p71 = por %p69, %p70
    %p73 = scmp.ne.s32.totalorder %s56, %s72
    %p74 = scmp.eq.s32.totalorder %s22, 0
    %p75 = por %p73, %p74
    %s77 = sadd.s32 %s76, 1
    %p80 = scmp.eq.s32.totalorder %s16, 6
    %p81 = scmp.ne.s32.totalorder %s76, %s78
    %p82 = scmp.eq.s32.totalorder %s16, 0
    %p83 = por %p81, %p82
    %p84 = scmp.ne.s32.totalorder %s76, %s78
    %p85 = scmp.eq.s32.totalorder %s21, 6
    %p86 = por %p84, %p85
    %p87 = scmp.ne.s32.totalorder %s78, %s79
    %p88 = scmp.eq.s32.totalorder %s21, 0
    %p89 = por %p87, %p88
    %p90 = scmp.ne.s32.totalorder %s78, %s79
    %p91 = scmp.eq.s32.totalorder %s22, 6
    %p92 = por %p90, %p91
    %p94 = scmp.ne.s32.totalorder %s79, %s93
    %p95 = scmp.eq.s32.totalorder %s22, 0
    %p96 = por %p94, %p95
    %s98 = sadd.s32 %s97, 1
    %p101 = scmp.eq.s32.totalorder %s16, 6
    %p102 = scmp.ne.s32.totalorder %s97, %s99
    %p103 = scmp.eq.s32.totalorder %s16, 0
    %p104 = por %p102, %p103
    %p105 = scmp.ne.s32.totalorder %s97, %s99
    %p106 = scmp.eq.s32.totalorder %s21, 6
    %p107 = por %p105, %p106
    %p108 = scmp.ne.s32.totalorder %s99, %s100
    %p109 = scmp.eq.s32.totalorder %s21, 0
    %p110 = por %p108, %p109
    %p111 = scmp.ne.s32.totalorder %s99, %s100
    %p112 = scmp.eq.s32.totalorder %s22, 6
    %p113 = por %p111, %p112
    %p115 = scmp.ne.s32.totalorder %s100, %s114
    %p116 = scmp.eq.s32.totalorder %s22, 0
    %p117 = por %p115, %p116
    %s119 = sadd.s32 %s118, 1
    %p122 = scmp.eq.s32.totalorder %s16, 6
    %p123 = scmp.ne.s32.totalorder %s118, %s120
    %p124 = scmp.eq.s32.totalorder %s16, 0
    %p125 = por %p123, %p124
    %p126 = scmp.ne.s32.totalorder %s118, %s120
    %p127 = scmp.eq.s32.totalorder %s21, 6
    %p128 = por %p126, %p127
    %p129 = scmp.ne.s32.totalorder %s120, %s121
    %p130 = scmp.eq.s32.totalorder %s21, 0
    %p131 = por %p129, %p130
    %p132 = scmp.ne.s32.totalorder %s120, %s121
    %p133 = scmp.eq.s32.totalorder %s22, 6
    %p134 = por %p132, %p133
    %p136 = scmp.ne.s32.totalorder %s121, %s135
    %p137 = scmp.eq.s32.totalorder %s22, 0
    %p138 = por %p136, %p137
    %s140 = sadd.s32 %s139, 1
    %p143 = scmp.eq.s32.totalorder %s16, 6
    %p144 = scmp.ne.s32.totalorder %s139, %s141
    %p145 = scmp.eq.s32.totalorder %s16, 0
    %p146 = por %p144, %p145
    %p147 = scmp.ne.s32.totalorder %s139, %s141
    %p148 = scmp.eq.s32.totalorder %s21, 6
    %p149 = por %p147, %p148
    %p150 = scmp.ne.s32.totalorder %s141, %s142
    %p151 = scmp.eq.s32.totalorder %s21, 0
    %p152 = por %p150, %p151
    %p153 = scmp.ne.s32.totalorder %s141, %s142
    %p154 = scmp.eq.s32.totalorder %s22, 6
    %p155 = por %p153, %p154
    %p157 = scmp.ne.s32.totalorder %s142, %s156
    %p158 = scmp.eq.s32.totalorder %s22, 0
    %p159 = por %p157, %p158
    %s161 = sadd.s32 %s160, 1
    %p164 = scmp.eq.s32.totalorder %s16, 6
    %p165 = scmp.ne.s32.totalorder %s160, %s162
    %p166 = scmp.eq.s32.totalorder %s16, 0
    %p167 = por %p165, %p166
    %p168 = scmp.ne.s32.totalorder %s160, %s162
    %p169 = scmp.eq.s32.totalorder %s21, 6
    %p170 = por %p168, %p169
    %p171 = scmp.ne.s32.totalorder %s162, %s163
    %p172 = scmp.eq.s32.totalorder %s21, 0
    %p173 = por %p171, %p172
    %p174 = scmp.ne.s32.totalorder %s162, %s163
    %p175 = scmp.eq.s32.totalorder %s22, 6
    %p176 = por %p174, %p175
    %p178 = scmp.ne.s32.totalorder %s163, %s177
    %p179 = scmp.eq.s32.totalorder %s22, 0
    %p180 = por %p178, %p179
    %s182 = sadd.s32 %s181, 1
    %p185 = scmp.eq.s32.totalorder %s16, 6
    %p186 = scmp.ne.s32.totalorder %s181, %s183
    %p187 = scmp.eq.s32.totalorder %s16, 0
    %p188 = por %p186, %p187
    %p189 = scmp.ne.s32.totalorder %s181, %s183
    %p190 = scmp.eq.s32.totalorder %s21, 6
    %p191 = por %p189, %p190
    %p192 = scmp.ne.s32.totalorder %s183, %s184
    %p193 = scmp.eq.s32.totalorder %s21, 0
    %p194 = por %p192, %p193
    %p195 = scmp.ne.s32.totalorder %s183, %s184
    %p196 = scmp.eq.s32.totalorder %s22, 6
    %p197 = por %p195, %p196
    %p199 = scmp.ne.s32.totalorder %s184, %s198
    %p200 = scmp.eq.s32.totalorder %s22, 0
    %p201 = por %p199, %p200
    %s203 = sadd.s32 %s202, 1
    %p206 = scmp.eq.s32.totalorder %s16, 6
    %p207 = scmp.ne.s32.totalorder %s202, %s204
    %p208 = scmp.eq.s32.totalorder %s16, 0
    %p209 = por %p207, %p208
    %p210 = scmp.ne.s32.totalorder %s202, %s204
    %p211 = scmp.eq.s32.totalorder %s21, 6
    %p212 = por %p210, %p211
    %p213 = scmp.ne.s32.totalorder %s204, %s205
    %p214 = scmp.eq.s32.totalorder %s21, 0
    %p215 = por %p213, %p214
    %p216 = scmp.ne.s32.totalorder %s204, %s205
    %p217 = scmp.eq.s32.totalorder %s22, 6
    %p218 = por %p216, %p217
    %p220 = scmp.ne.s32.totalorder %s205, %s219
    %p221 = scmp.eq.s32.totalorder %s22, 0
    %p222 = por %p220, %p221
    %s224 = sadd.s32 %s223, 1
    %p227 = scmp.eq.s32.totalorder %s16, 6
    %p228 = scmp.ne.s32.totalorder %s223, %s225
    %p229 = scmp.eq.s32.totalorder %s16, 0
    %p230 = por %p228, %p229
    %p231 = scmp.ne.s32.totalorder %s223, %s225
    %p232 = scmp.eq.s32.totalorder %s21, 6
    %p233 = por %p231, %p232
    %p234 = scmp.ne.s32.totalorder %s225, %s226
    %p235 = scmp.eq.s32.totalorder %s21, 0
    %p236 = por %p234, %p235
    %p237 = scmp.ne.s32.totalorder %s225, %s226
    %p238 = scmp.eq.s32.totalorder %s22, 6
    %p239 = por %p237, %p238
    %p241 = scmp.ne.s32.totalorder %s226, %s240
    %p242 = scmp.eq.s32.totalorder %s22, 0
    %p243 = por %p241, %p242
    %s244 = ssub.s32 %s16, %s23
    %p245 = scmp.eq.s32.totalorder %s244, 0
    %s247 = sadd.s32 %s246, 1
    %s248 = scalar_select %p245, %s246, %s247
    %p251 = pneg %p245
    %p252 = scmp.eq.s32.totalorder %s16, 6
    %p253 = por %p251, %p252
    %p254 = scmp.ne.s32.totalorder %s246, %s249
    %p255 = scmp.eq.s32.totalorder %s16, 0
    %p256 = por %p254, %p255
    %p257 = scmp.ne.s32.totalorder %s246, %s249
    %p258 = scmp.eq.s32.totalorder %s21, 6
    %p259 = por %p257, %p258
    %p260 = scmp.ne.s32.totalorder %s249, %s250
    %p261 = scmp.eq.s32.totalorder %s21, 0
    %p262 = por %p260, %p261
    %p263 = scmp.ne.s32.totalorder %s249, %s250
    %p264 = scmp.eq.s32.totalorder %s22, 6
    %p265 = por %p263, %p264
    %p267 = scmp.ne.s32.totalorder %s250, %s266
    %p268 = scmp.eq.s32.totalorder %s22, 0
    %p269 = por %p267, %p268
    %p270 = scmp.le.s32.totalorder 1, %s16
    %p271 = scmp.lt.s32.totalorder %s16, 8
    %p272 = pnand %p270, %p271
    %p273 = pneg %p272
    // Predicated region
    $region9: #{reranker_forward.1} parent=5 // pred_check
      _
    $region10: #{reranker_forward.1} parent=5 // pred_check_branch
      %275 = sbr.rel (%p272) target = $region12
    $region11: #{reranker_forward.1} parent=5 // pred_region
      %s276 = ssub.s32 %s16, 1
      // Predicated region
      $region13: #{reranker_forward.1} parent=11 // pred_check
        %p277 = pneg %p89
      $region14: #{reranker_forward.1} parent=11 // pred_check_branch
        %279 = sbr.rel (%p277) target = $region16
      $region15: #{reranker_forward.1} parent=11 // pred_region
        _
      $region16: #{reranker_forward.1} parent=11 // pred_fallthru
        _
      // Predicated region
      $region17: #{reranker_forward.1} parent=11 // pred_check
        %p280 = pneg %p110
      $region18: #{reranker_forward.1} parent=11 // pred_check_branch
        %282 = sbr.rel (%p280) target = $region20
      $region19: #{reranker_forward.1} parent=11 // pred_region
        _
      $region20: #{reranker_forward.1} parent=11 // pred_fallthru
        _
      // Predicated region
      $region21: #{reranker_forward.1} parent=11 // pred_check
        %p283 = pneg %p131
      $region22: #{reranker_forward.1} parent=11 // pred_check_branch
        %285 = sbr.rel (%p283) target = $region24
      $region23: #{reranker_forward.1} parent=11 // pred_region
        _
      $region24: #{reranker_forward.1} parent=11 // pred_fallthru
        _
      // Predicated region
      $region25: #{reranker_forward.1} parent=11 // pred_check
        %p286 = pneg %p152
      $region26: #{reranker_forward.1} parent=11 // pred_check_branch
        %288 = sbr.rel (%p286) target = $region28
      $region27: #{reranker_forward.1} parent=11 // pred_region
        _
      $region28: #{reranker_forward.1} parent=11 // pred_fallthru
        _
      // Predicated region
      $region29: #{reranker_forward.1} parent=11 // pred_check
        %p289 = pneg %p173
      $region30: #{reranker_forward.1} parent=11 // pred_check_branch
        %291 = sbr.rel (%p289) target = $region32
      $region31: #{reranker_forward.1} parent=11 // pred_region
        _
      $region32: #{reranker_forward.1} parent=11 // pred_fallthru
        _
      // Predicated region
      $region33: #{reranker_forward.1} parent=11 // pred_check
        %p292 = pneg %p194
      $region34: #{reranker_forward.1} parent=11 // pred_check_branch
        %294 = sbr.rel (%p292) target = $region36
      $region35: #{reranker_forward.1} parent=11 // pred_region
        _
      $region36: #{reranker_forward.1} parent=11 // pred_fallthru
        _
      // Predicated region
      $region37: #{reranker_forward.1} parent=11 // pred_check
        %p295 = pneg %p215
      $region38: #{reranker_forward.1} parent=11 // pred_check_branch
        %297 = sbr.rel (%p295) target = $region40
      $region39: #{reranker_forward.1} parent=11 // pred_region
        _
      $region40: #{reranker_forward.1} parent=11 // pred_fallthru
        _
      // Predicated region
      $region41: #{reranker_forward.1} parent=11 // pred_check
        %p298 = pneg %p236
      $region42: #{reranker_forward.1} parent=11 // pred_check_branch
        %300 = sbr.rel (%p298) target = $region44
      $region43: #{reranker_forward.1} parent=11 // pred_region
        _
      $region44: #{reranker_forward.1} parent=11 // pred_fallthru
        _
    $region12: #{reranker_forward.1} parent=5 // pred_fallthru
      _
    %p301 = scmp.lt.s32.totalorder %s16, 7
    // Predicated region
    $region45: #{reranker_forward.1} parent=5 // pred_check
      %p302 = pneg %p301
    $region46: #{reranker_forward.1} parent=5 // pred_check_branch
      %304 = sbr.rel (%p302) target = $region48
    $region47: #{reranker_forward.1} parent=5 // pred_region
      // Predicated region
      $region49: #{reranker_forward.1} parent=47 // pred_check
        %p305 = pneg %p36
      $region50: #{reranker_forward.1} parent=47 // pred_check_branch
        %307 = sbr.rel (%p305) target = $region52
      $region51: #{reranker_forward.1} parent=47 // pred_region
        %s308 = smul.u32 16, %s16
        %p309 = scmp.lt.s32.totalorder %s308, 111
        %s310 = scalar_select %p309, %s308, 111
        %s311 = smul.addr %s310, 4
        %s312 = scalar_lea.vmem %s0, %s311
        %s313 = smul.u32 16, %s16
      $region52: #{reranker_forward.1} parent=47 // pred_fallthru
        _
      // Predicated region
      $region53: #{reranker_forward.1} parent=47 // pred_check
        %p314 = pneg %p62
      $region54: #{reranker_forward.1} parent=47 // pred_check_branch
        %316 = sbr.rel (%p314) target = $region56
      $region55: #{reranker_forward.1} parent=47 // pred_region
        %s317 = smul.u32 2, %s16
        %p318 = scmp.lt.s32.totalorder %s317, 13
        %s319 = scalar_select %p318, %s317, 13
        %s320 = smul.addr %s319, 8
        %s321 = scalar_lea.vmem %s1, %s320
        %s322 = smul.u32 2, %s16
      $region56: #{reranker_forward.1} parent=47 // pred_fallthru
        _
    $region48: #{reranker_forward.1} parent=5 // pred_fallthru
      _
    %p323 = scmp.le.s32.totalorder 1, %s16
    %p324 = scmp.lt.s32.totalorder %s16, 8
    %p325 = pnand %p323, %p324
    %p326 = pneg %p325
    // Predicated region
    $region57: #{reranker_forward.1} parent=5 // pred_check
      _
    $region58: #{reranker_forward.1} parent=5 // pred_check_branch
      %328 = sbr.rel (%p325) target = $region60
    $region59: #{reranker_forward.1} parent=5 // pred_region
      %s329 = ssub.s32 %s16, 1
      %s330 = smul.u32 16, %s21
      %p331 = scmp.lt.s32.totalorder %s330, 111
      %s332 = scalar_select %p331, %s330, 111
      %s333 = smul.addr %s332, 4
      %s334 = scalar_lea.vmem %s0, %s333
      %p335 = pneg %p42
      %p336 = pneg %p39
      %s337 = smul.u32 2, %s21
      %p338 = scmp.lt.s32.totalorder %s337, 13
      %s339 = scalar_select %p338, %s337, 13
      %s340 = smul.addr %s339, 8
      %s341 = scalar_lea.vmem %s1, %s340
      %p342 = pneg %p68
      %p343 = pneg %p65
      %p344 = pneg %p89
      %p345 = pneg %p86
      %p346 = pneg %p110
      %p347 = pneg %p107
      %p348 = pneg %p131
      %p349 = pneg %p128
      %p350 = pneg %p152
      %p351 = pneg %p149
      %p352 = pneg %p173
      %p353 = pneg %p170
      %p354 = pneg %p194
      %p355 = pneg %p191
      %p356 = pneg %p215
      %p357 = pneg %p212
      %p358 = pneg %p236
      %p359 = pneg %p233
      %p360 = pneg %p262
      %p361 = pneg %p259
      %s362 = smul.u32 2, %s21
      %p363 = scmp.lt.s32.totalorder %s362, 13
      %s364 = scalar_select %p363, %s362, 13
      %s365 = smul.addr %s364, 8
      %s366 = scalar_lea.vmem %s10, %s365
      %s367 = smul.u32 16, %s21
      %p368 = scmp.lt.s32.totalorder %s367, 111
      %s369 = scalar_select %p368, %s367, 111
      %s370 = smul.addr %s369, 4
      %s371 = scalar_lea.vmem %s0, %s370
      %s372 = smul.u32 16, %s21
      %s373 = smul.u32 2, %s21
      %p374 = scmp.lt.s32.totalorder %s373, 13
      %s375 = scalar_select %p374, %s373, 13
      %s376 = smul.addr %s375, 8
      %s377 = scalar_lea.vmem %s1, %s376
      %s378 = smul.u32 2, %s21
      %s379 = smul.u32 2, %s21
      %p380 = scmp.lt.s32.totalorder %s379, 13
      %s381 = scalar_select %p380, %s379, 13
      %s382 = smul.addr %s381, 8
      %s383 = scalar_lea.vmem %s10, %s382
      %s384 = smul.u32 2, %s21
      %v386 = vld [vmem:[%s371] sm:$0xf]
      %v387 = vld [vmem:[%s371 + $0x4] sm:$0xf]
      %v388 = vld [vmem:[%s371 + $0x8] sm:$0xf]
      %v389 = vld [vmem:[%s371 + $0xc] sm:$0xf]
      %v390 = vld [vmem:[%s371 + $0x10] sm:$0xf]
      %v391 = vld [vmem:[%s371 + $0x14] sm:$0xf]
      %v392 = vld [vmem:[%s371 + $0x18] sm:$0xf]
      %v393 = vld [vmem:[%s371 + $0x1c] sm:$0xf]
      %v394 = vld [vmem:[%s371 + $0x20] sm:$0xf]
      %v395 = vld [vmem:[%s371 + $0x24] sm:$0xf]
      %v396 = vld [vmem:[%s371 + $0x28] sm:$0xf]
      %v397 = vld [vmem:[%s371 + $0x2c] sm:$0xf]
      %v398 = vld [vmem:[%s371 + $0x30] sm:$0xf]
      %v399 = vld [vmem:[%s371 + $0x34] sm:$0xf]
      %v400 = vld [vmem:[%s371 + $0x38] sm:$0xf]
      %v401 = vld [vmem:[%s371 + $0x3c] sm:$0xf]
      %v402 = vunpack.c.l.bf16 %v386
      %v403 = vunpack.c.l.bf16 %v387
      %v404 = vunpack.c.l.bf16 %v388
      %v405 = vunpack.c.l.bf16 %v389
      %v406 = vunpack.c.l.bf16 %v390
      %v407 = vunpack.c.l.bf16 %v391
      %v408 = vunpack.c.l.bf16 %v392
      %v409 = vunpack.c.l.bf16 %v393
      %v410 = vunpack.c.l.bf16 %v394
      %v411 = vunpack.c.l.bf16 %v395
      %v412 = vunpack.c.l.bf16 %v396
      %v413 = vunpack.c.l.bf16 %v397
      %v414 = vunpack.c.l.bf16 %v398
      %v415 = vunpack.c.l.bf16 %v399
      %v416 = vunpack.c.l.bf16 %v400
      %v417 = vunpack.c.l.bf16 %v401
      %v418 = vld [vmem:[%s377] sm:$0xff]
      %v419 = vld [vmem:[%s377 + $0x8] sm:$0xff]
      %v420 = vpack.c.bf16 %v403, %v402
      %v421 = vpack.c.bf16 %v405, %v404
      %v422 = vpack.c.bf16 %v407, %v406
      %v423 = vpack.c.bf16 %v409, %v408
      %v424 = vpack.c.bf16 %v411, %v410
      %v425 = vpack.c.bf16 %v413, %v412
      %v426 = vpack.c.bf16 %v415, %v414
      %v427 = vpack.c.bf16 %v417, %v416
      %v428 = vld [vmem:[%s2] sm:$0xf]
      %v429 = vld [vmem:[%s2 + $0x4] sm:$0xf]
      %v430 = vld [vmem:[%s2 + $0x8] sm:$0xf]
      %v431 = vld [vmem:[%s2 + $0xc] sm:$0xf]
      %v432 = vld [vmem:[%s2 + $0x10] sm:$0xf]
      %v433 = vld [vmem:[%s2 + $0x14] sm:$0xf]
      %v434 = vld [vmem:[%s2 + $0x18] sm:$0xf]
      %v435 = vld [vmem:[%s2 + $0x1c] sm:$0xf]
      %v436 = vld [vmem:[%s2 + $0x20] sm:$0xf]
      %v437 = vld [vmem:[%s2 + $0x24] sm:$0xf]
      %v438 = vld [vmem:[%s2 + $0x28] sm:$0xf]
      %v439 = vld [vmem:[%s2 + $0x2c] sm:$0xf]
      %v440 = vld [vmem:[%s2 + $0x30] sm:$0xf]
      %v441 = vld [vmem:[%s2 + $0x34] sm:$0xf]
      %v442 = vld [vmem:[%s2 + $0x38] sm:$0xf]
      %v443 = vld [vmem:[%s2 + $0x3c] sm:$0xf]
      %v460 = vunpack.c.l.b16 %v428
      %v461 = vunpack.c.l.b16 %v429
      %v462 = vunpack.c.l.b16 %v430
      %v463 = vunpack.c.l.b16 %v431
      %v464 = vunpack.c.l.b16 %v432
      %v465 = vunpack.c.l.b16 %v433
      %v466 = vunpack.c.l.b16 %v434
      %v467 = vunpack.c.l.b16 %v435
      %v468 = vunpack.c.l.b16 %v436
      %v469 = vunpack.c.l.b16 %v437
      %v470 = vunpack.c.l.b16 %v438
      %v471 = vunpack.c.l.b16 %v439
      %v472 = vunpack.c.l.b16 %v440
      %v473 = vunpack.c.l.b16 %v441
      %v474 = vunpack.c.l.b16 %v442
      %v475 = vunpack.c.l.b16 %v443
      %v476 = vpack.c.b16 %v461, %v460
      %v477 = vpack.c.b16 %v463, %v462
      %v478 = vpack.c.b16 %v465, %v464
      %v479 = vpack.c.b16 %v467, %v466
      %v480 = vpack.c.b16 %v469, %v468
      %v481 = vpack.c.b16 %v471, %v470
      %v482 = vpack.c.b16 %v473, %v472
      %v483 = vpack.c.b16 %v475, %v474
      %492 = vmatprep.subr.bf16.mxu0 0
      %493 = vmatpush1.bf16.msra.mxu0 %v476
      %494 = vmatprep.subr.bf16.mxu0 0
      %495 = vmatpush1.bf16.msra.mxu0 %v477
      %496 = vmatprep.subr.bf16.mxu0 0
      %497 = vmatpush1.bf16.msra.mxu0 %v478
      %498 = vmatprep.subr.bf16.mxu0 0
      %499 = vmatpush1.bf16.msra.mxu0 %v479
      %500 = vmatprep.subr.bf16.mxu0 0
      %501 = vmatpush1.bf16.msra.mxu0 %v480
      %502 = vmatprep.subr.bf16.mxu0 0
      %503 = vmatpush1.bf16.msra.mxu0 %v481
      %504 = vmatprep.subr.bf16.mxu0 0
      %505 = vmatpush1.bf16.msra.mxu0 %v482
      %506 = vmatprep.subr.bf16.mxu0 0
      %507 = vmatpush1.bf16.msra.mxu0 %v483
      %508 = vmatprep.subr.bf16.mxu0 0
      %509 = vmatpush1.bf16.msra.mxu0 0
      %510 = vmatprep.subr.bf16.mxu0 0
      %511 = vmatpush1.bf16.msra.mxu0 0
      %512 = vmatprep.subr.bf16.mxu0 0
      %513 = vmatpush1.bf16.msra.mxu0 0
      %514 = vmatprep.subr.bf16.mxu0 0
      %515 = vmatpush1.bf16.msra.mxu0 0
      %516 = vmatprep.subr.bf16.mxu0 0
      %517 = vmatpush1.bf16.msra.mxu0 0
      %518 = vmatprep.subr.bf16.mxu0 0
      %519 = vmatpush1.bf16.msra.mxu0 0
      %520 = vmatprep.subr.bf16.mxu0 0
      %521 = vmatpush1.bf16.msra.mxu0 0
      %522 = vmatprep.subr.bf16.mxu0 0
      %523 = vmatpush1.bf16.msra.mxu0 0
      %524 = vmatprep.mubr.bf16.mxu0 0
      %525 = vmatmul.mubr.bf16.gmra.mrb[0].mxu0 %v420
      %v526 = vpop.f32.mrb[0].mxu0
      %v527 = vadd.f32 0.0, %v526
      %v528 = vpop.f32.mrb[0].mxu0
      %v529 = vpop.f32.mrb[0].mxu0
      %v530 = vadd.f32 0.0, %v529
      %v531 = vpop.f32.mrb[0].mxu0
      %532 = vmatprep.mubr.bf16.mxu0 0
      %533 = vmatmul.mubr.bf16.gmra.mrb[0].mxu0 %v421
      %v534 = vpop.f32.mrb[0].mxu0
      %v535 = vadd.f32 0.0, %v534
      %v536 = vpop.f32.mrb[0].mxu0
      %v537 = vpop.f32.mrb[0].mxu0
      %v538 = vadd.f32 0.0, %v537
      %v539 = vpop.f32.mrb[0].mxu0
      %540 = vmatprep.mubr.bf16.mxu0 0
      %541 = vmatmul.mubr.bf16.gmra.mrb[0].mxu0 %v422
      %v542 = vpop.f32.mrb[0].mxu0
      %v543 = vadd.f32 0.0, %v542
      %v544 = vpop.f32.mrb[0].mxu0
      %v545 = vpop.f32.mrb[0].mxu0
      %v546 = vadd.f32 0.0, %v545
      %v547 = vpop.f32.mrb[0].mxu0
      %548 = vmatprep.mubr.bf16.mxu0 0
      %549 = vmatmul.mubr.bf16.gmra.mrb[0].mxu0 %v423
      %v550 = vpop.f32.mrb[0].mxu0
      %v551 = vadd.f32 0.0, %v550
      %v552 = vpop.f32.mrb[0].mxu0
      %v553 = vpop.f32.mrb[0].mxu0
      %v554 = vadd.f32 0.0, %v553
      %v555 = vpop.f32.mrb[0].mxu0
      %556 = vmatprep.mubr.bf16.mxu0 0
      %557 = vmatmul.mubr.bf16.gmra.mrb[0].mxu0 %v424
      %v558 = vpop.f32.mrb[0].mxu0
      %v559 = vadd.f32 0.0, %v558
      %v560 = vpop.f32.mrb[0].mxu0
      %v561 = vpop.f32.mrb[0].mxu0
      %v562 = vadd.f32 0.0, %v561
      %v563 = vpop.f32.mrb[0].mxu0
      %564 = vmatprep.mubr.bf16.mxu0 0
      %565 = vmatmul.mubr.bf16.gmra.mrb[0].mxu0 %v425
      %v566 = vpop.f32.mrb[0].mxu0
      %v567 = vadd.f32 0.0, %v566
      %v568 = vpop.f32.mrb[0].mxu0
      %v569 = vpop.f32.mrb[0].mxu0
      %v570 = vadd.f32 0.0, %v569
      %v571 = vpop.f32.mrb[0].mxu0
      %572 = vmatprep.mubr.bf16.mxu0 0
      %573 = vmatmul.mubr.bf16.gmra.mrb[0].mxu0 %v426
      %v574 = vpop.f32.mrb[0].mxu0
      %v575 = vadd.f32 0.0, %v574
      %v576 = vpop.f32.mrb[0].mxu0
      %v577 = vpop.f32.mrb[0].mxu0
      %v578 = vadd.f32 0.0, %v577
      %v579 = vpop.f32.mrb[0].mxu0
      %580 = vmatprep.mubr.bf16.mxu0 0
      %581 = vmatmul.mubr.bf16.gmra.mrb[0].mxu0 %v427
      %v582 = vpop.f32.mrb[0].mxu0
      %v583 = vadd.f32 0.0, %v582
      %v584 = vpop.f32.mrb[0].mxu0
      %v585 = vpop.f32.mrb[0].mxu0
      %v586 = vadd.f32 0.0, %v585
      %v587 = vpop.f32.mrb[0].mxu0
      %588 = vdwg.mxu0
      %v589 = vld [vmem:[%s3] sm:$0xf]
      %v590 = vld [vmem:[%s3 + $0x4] sm:$0xf]
      %v591 = vld [vmem:[%s3 + $0x8] sm:$0xf]
      %v592 = vld [vmem:[%s3 + $0xc] sm:$0xf]
      %v593 = vld [vmem:[%s3 + $0x10] sm:$0xf]
      %v594 = vld [vmem:[%s3 + $0x14] sm:$0xf]
      %v595 = vld [vmem:[%s3 + $0x18] sm:$0xf]
      %v596 = vld [vmem:[%s3 + $0x1c] sm:$0xf]
      %v597 = vld [vmem:[%s3 + $0x20] sm:$0xf]
      %v598 = vld [vmem:[%s3 + $0x24] sm:$0xf]
      %v599 = vld [vmem:[%s3 + $0x28] sm:$0xf]
      %v600 = vld [vmem:[%s3 + $0x2c] sm:$0xf]
      %v601 = vld [vmem:[%s3 + $0x30] sm:$0xf]
      %v602 = vld [vmem:[%s3 + $0x34] sm:$0xf]
      %v603 = vld [vmem:[%s3 + $0x38] sm:$0xf]
      %v604 = vld [vmem:[%s3 + $0x3c] sm:$0xf]
      %v621 = vunpack.c.l.b16 %v589
      %v622 = vunpack.c.l.b16 %v590
      %v623 = vunpack.c.l.b16 %v591
      %v624 = vunpack.c.l.b16 %v592
      %v625 = vunpack.c.l.b16 %v593
      %v626 = vunpack.c.l.b16 %v594
      %v627 = vunpack.c.l.b16 %v595
      %v628 = vunpack.c.l.b16 %v596
      %v629 = vunpack.c.l.b16 %v597
      %v630 = vunpack.c.l.b16 %v598
      %v631 = vunpack.c.l.b16 %v599
      %v632 = vunpack.c.l.b16 %v600
      %v633 = vunpack.c.l.b16 %v601
      %v634 = vunpack.c.l.b16 %v602
      %v635 = vunpack.c.l.b16 %v603
      %v636 = vunpack.c.l.b16 %v604
      %v637 = vpack.c.b16 %v622, %v621
      %v638 = vpack.c.b16 %v624, %v623
      %v639 = vpack.c.b16 %v626, %v625
      %v640 = vpack.c.b16 %v628, %v627
      %v641 = vpack.c.b16 %v630, %v629
      %v642 = vpack.c.b16 %v632, %v631
      %v643 = vpack.c.b16 %v634, %v633
      %v644 = vpack.c.b16 %v636, %v635
      %653 = vmatprep.subr.bf16.mxu0 0
      %654 = vmatpush1.bf16.msra.mxu0 %v637
      %655 = vmatprep.subr.bf16.mxu0 0
      %656 = vmatpush1.bf16.msra.mxu0 %v638
      %657 = vmatprep.subr.bf16.mxu0 0
      %658 = vmatpush1.bf16.msra.mxu0 %v639
      %659 = vmatprep.subr.bf16.mxu0 0
      %660 = vmatpush1.bf16.msra.mxu0 %v640
      %661 = vmatprep.subr.bf16.mxu0 0
      %662 = vmatpush1.bf16.msra.mxu0 %v641
      %663 = vmatprep.subr.bf16.mxu0 0
      %664 = vmatpush1.bf16.msra.mxu0 %v642
      %665 = vmatprep.subr.bf16.mxu0 0
      %666 = vmatpush1.bf16.msra.mxu0 %v643
      %667 = vmatprep.subr.bf16.mxu0 0
      %668 = vmatpush1.bf16.msra.mxu0 %v644
      %669 = vmatprep.subr.bf16.mxu0 0
      %670 = vmatpush1.bf16.msra.mxu0 0
      %671 = vmatprep.subr.bf16.mxu0 0
      %672 = vmatpush1.bf16.msra.mxu0 0
      %673 = vmatprep.subr.bf16.mxu0 0
      %674 = vmatpush1.bf16.msra.mxu0 0
      %675 = vmatprep.subr.bf16.mxu0 0
      %676 = vmatpush1.bf16.msra.mxu0 0
      %677 = vmatprep.subr.bf16.mxu0 0
      %678 = vmatpush1.bf16.msra.mxu0 0
      %679 = vmatprep.subr.bf16.mxu0 0
      %680 = vmatpush1.bf16.msra.mxu0 0
      %681 = vmatprep.subr.bf16.mxu0 0
      %682 = vmatpush1.bf16.msra.mxu0 0
      %683 = vmatprep.subr.bf16.mxu0 0
      %684 = vmatpush1.bf16.msra.mxu0 0
      %685 = vmatprep.mubr.bf16.mxu0 0
      %686 = vmatmul.mubr.bf16.gmra.mrb[0].mxu0 %v420
      %v687 = vpop.f32.mrb[0].mxu0
      %v688 = vadd.f32 0.0, %v687
      %v689 = vpop.f32.mrb[0].mxu0
      %v690 = vpop.f32.mrb[0].mxu0
      %v691 = vadd.f32 0.0, %v690
      %v692 = vpop.f32.mrb[0].mxu0
      %693 = vmatprep.mubr.bf16.mxu0 0
      %694 = vmatmul.mubr.bf16.gmra.mrb[0].mxu0 %v421
      %v695 = vpop.f32.mrb[0].mxu0
      %v696 = vadd.f32 0.0, %v695
      %v697 = vpop.f32.mrb[0].mxu0
      %v698 = vpop.f32.mrb[0].mxu0
      %v699 = vadd.f32 0.0, %v698
      %v700 = vpop.f32.mrb[0].mxu0
      %701 = vmatprep.mubr.bf16.mxu0 0
      %702 = vmatmul.mubr.bf16.gmra.mrb[0].mxu0 %v422
      %v703 = vpop.f32.mrb[0].mxu0
      %v704 = vadd.f32 0.0, %v703
      %v705 = vpop.f32.mrb[0].mxu0
      %v706 = vpop.f32.mrb[0].mxu0
      %v707 = vadd.f32 0.0, %v706
      %v708 = vpop.f32.mrb[0].mxu0
      %709 = vmatprep.mubr.bf16.mxu0 0
      %710 = vmatmul.mubr.bf16.gmra.mrb[0].mxu0 %v423
      %v711 = vpop.f32.mrb[0].mxu0
      %v712 = vadd.f32 0.0, %v711
      %v713 = vpop.f32.mrb[0].mxu0
      %v714 = vpop.f32.mrb[0].mxu0
      %v715 = vadd.f32 0.0, %v714
      %v716 = vpop.f32.mrb[0].mxu0
      %717 = vmatprep.mubr.bf16.mxu0 0
      %718 = vmatmul.mubr.bf16.gmra.mrb[0].mxu0 %v424
      %v719 = vpop.f32.mrb[0].mxu0
      %v720 = vadd.f32 0.0, %v719
      %v721 = vpop.f32.mrb[0].mxu0
      %v722 = vpop.f32.mrb[0].mxu0
      %v723 = vadd.f32 0.0, %v722
      %v724 = vpop.f32.mrb[0].mxu0
      %725 = vmatprep.mubr.bf16.mxu0 0
      %726 = vmatmul.mubr.bf16.gmra.mrb[0].mxu0 %v425
      %v727 = vpop.f32.mrb[0].mxu0
      %v728 = vadd.f32 0.0, %v727
      %v729 = vpop.f32.mrb[0].mxu0
      %v730 = vpop.f32.mrb[0].mxu0
      %v731 = vadd.f32 0.0, %v730
      %v732 = vpop.f32.mrb[0].mxu0
      %733 = vmatprep.mubr.bf16.mxu0 0
      %734 = vmatmul.mubr.bf16.gmra.mrb[0].mxu0 %v426
      %v735 = vpop.f32.mrb[0].mxu0
      %v736 = vadd.f32 0.0, %v735
      %v737 = vpop.f32.mrb[0].mxu0
      %v738 = vpop.f32.mrb[0].mxu0
      %v739 = vadd.f32 0.0, %v738
      %v740 = vpop.f32.mrb[0].mxu0
      %741 = vmatprep.mubr.bf16.mxu0 0
      %742 = vmatmul.mubr.bf16.gmra.mrb[0].mxu0 %v427
      %v743 = vpop.f32.mrb[0].mxu0
      %v744 = vadd.f32 0.0, %v743
      %v745 = vpop.f32.mrb[0].mxu0
      %v746 = vpop.f32.mrb[0].mxu0
      %v747 = vadd.f32 0.0, %v746
      %v748 = vpop.f32.mrb[0].mxu0
      %749 = vdwg.mxu0
      %v750 = vld [vmem:[%s4] sm:$0xf]
      %v751 = vld [vmem:[%s4 + $0x4] sm:$0xf]
      %v752 = vld [vmem:[%s4 + $0x8] sm:$0xf]
      %v753 = vld [vmem:[%s4 + $0xc] sm:$0xf]
      %v754 = vld [vmem:[%s4 + $0x10] sm:$0xf]
      %v755 = vld [vmem:[%s4 + $0x14] sm:$0xf]
      %v756 = vld [vmem:[%s4 + $0x18] sm:$0xf]
      %v757 = vld [vmem:[%s4 + $0x1c] sm:$0xf]
      %v758 = vld [vmem:[%s4 + $0x20] sm:$0xf]
      %v759 = vld [vmem:[%s4 + $0x24] sm:$0xf]
      %v760 = vld [vmem:[%s4 + $0x28] sm:$0xf]
      %v761 = vld [vmem:[%s4 + $0x2c] sm:$0xf]
      %v762 = vld [vmem:[%s4 + $0x30] sm:$0xf]
      %v763 = vld [vmem:[%s4 + $0x34] sm:$0xf]
      %v764 = vld [vmem:[%s4 + $0x38] sm:$0xf]
      %v765 = vld [vmem:[%s4 + $0x3c] sm:$0xf]
      %v782 = vunpack.c.l.b16 %v750
      %v783 = vunpack.c.l.b16 %v751
      %v784 = vunpack.c.l.b16 %v752
      %v785 = vunpack.c.l.b16 %v753
      %v786 = vunpack.c.l.b16 %v754
      %v787 = vunpack.c.l.b16 %v755
      %v788 = vunpack.c.l.b16 %v756
      %v789 = vunpack.c.l.b16 %v757
      %v790 = vunpack.c.l.b16 %v758
      %v791 = vunpack.c.l.b16 %v759
      %v792 = vunpack.c.l.b16 %v760
      %v793 = vunpack.c.l.b16 %v761
      %v794 = vunpack.c.l.b16 %v762
      %v795 = vunpack.c.l.b16 %v763
      %v796 = vunpack.c.l.b16 %v764
      %v797 = vunpack.c.l.b16 %v765
      %v798 = vpack.c.b16 %v783, %v782
      %v799 = vpack.c.b16 %v785, %v784
      %v800 = vpack.c.b16 %v787, %v786
      %v801 = vpack.c.b16 %v789, %v788
      %v802 = vpack.c.b16 %v791, %v790
      %v803 = vpack.c.b16 %v793, %v792
      %v804 = vpack.c.b16 %v795, %v794
      %v805 = vpack.c.b16 %v797, %v796
      %814 = vmatprep.subr.bf16.mxu0 0
      %815 = vmatpush1.bf16.msra.mxu0 %v798
      %816 = vmatprep.subr.bf16.mxu0 0
      %817 = vmatpush1.bf16.msra.mxu0 %v799
      %818 = vmatprep.subr.bf16.mxu0 0
      %819 = vmatpush1.bf16.msra.mxu0 %v800
      %820 = vmatprep.subr.bf16.mxu0 0
      %821 = vmatpush1.bf16.msra.mxu0 %v801
      %822 = vmatprep.subr.bf16.mxu0 0
      %823 = vmatpush1.bf16.msra.mxu0 %v802
      %824 = vmatprep.subr.bf16.mxu0 0
      %825 = vmatpush1.bf16.msra.mxu0 %v803
      %826 = vmatprep.subr.bf16.mxu0 0
      %827 = vmatpush1.bf16.msra.mxu0 %v804
      %828 = vmatprep.subr.bf16.mxu0 0
      %829 = vmatpush1.bf16.msra.mxu0 %v805
      %830 = vmatprep.subr.bf16.mxu0 0
      %831 = vmatpush1.bf16.msra.mxu0 0
      %832 = vmatprep.subr.bf16.mxu0 0
      %833 = vmatpush1.bf16.msra.mxu0 0
      %834 = vmatprep.subr.bf16.mxu0 0
      %835 = vmatpush1.bf16.msra.mxu0 0
      %836 = vmatprep.subr.bf16.mxu0 0
      %837 = vmatpush1.bf16.msra.mxu0 0
      %838 = vmatprep.subr.bf16.mxu0 0
      %839 = vmatpush1.bf16.msra.mxu0 0
      %840 = vmatprep.subr.bf16.mxu0 0
      %841 = vmatpush1.bf16.msra.mxu0 0
      %842 = vmatprep.subr.bf16.mxu0 0
      %843 = vmatpush1.bf16.msra.mxu0 0
      %844 = vmatprep.subr.bf16.mxu0 0
      %845 = vmatpush1.bf16.msra.mxu0 0
      %846 = vmatprep.mubr.bf16.mxu0 0
      %847 = vmatmul.mubr.bf16.gmra.mrb[0].mxu0 %v420
      %v848 = vpop.f32.mrb[0].mxu0
      %v849 = vadd.f32 0.0, %v848
      %v850 = vpop.f32.mrb[0].mxu0
      %v851 = vpop.f32.mrb[0].mxu0
      %v852 = vadd.f32 0.0, %v851
      %v853 = vpop.f32.mrb[0].mxu0
      %854 = vmatprep.mubr.bf16.mxu0 0
      %855 = vmatmul.mubr.bf16.gmra.mrb[0].mxu0 %v421
      %v856 = vpop.f32.mrb[0].mxu0
      %v857 = vadd.f32 0.0, %v856
      %v858 = vpop.f32.mrb[0].mxu0
      %v859 = vpop.f32.mrb[0].mxu0
      %v860 = vadd.f32 0.0, %v859
      %v861 = vpop.f32.mrb[0].mxu0
      %862 = vmatprep.mubr.bf16.mxu0 0
      %863 = vmatmul.mubr.bf16.gmra.mrb[0].mxu0 %v422
      %v864 = vpop.f32.mrb[0].mxu0
      %v865 = vadd.f32 0.0, %v864
      %v866 = vpop.f32.mrb[0].mxu0
      %v867 = vpop.f32.mrb[0].mxu0
      %v868 = vadd.f32 0.0, %v867
      %v869 = vpop.f32.mrb[0].mxu0
      %870 = vmatprep.mubr.bf16.mxu0 0
      %871 = vmatmul.mubr.bf16.gmra.mrb[0].mxu0 %v423
      %v872 = vpop.f32.mrb[0].mxu0
      %v873 = vadd.f32 0.0, %v872
      %v874 = vpop.f32.mrb[0].mxu0
      %v875 = vpop.f32.mrb[0].mxu0
      %v876 = vadd.f32 0.0, %v875
      %v877 = vpop.f32.mrb[0].mxu0
      %878 = vmatprep.mubr.bf16.mxu0 0
      %879 = vmatmul.mubr.bf16.gmra.mrb[0].mxu0 %v424
      %v880 = vpop.f32.mrb[0].mxu0
      %v881 = vadd.f32 0.0, %v880
      %v882 = vpop.f32.mrb[0].mxu0
      %v883 = vpop.f32.mrb[0].mxu0
      %v884 = vadd.f32 0.0, %v883
      %v885 = vpop.f32.mrb[0].mxu0
      %886 = vmatprep.mubr.bf16.mxu0 0
      %887 = vmatmul.mubr.bf16.gmra.mrb[0].mxu0 %v425
      %v888 = vpop.f32.mrb[0].mxu0
      %v889 = vadd.f32 0.0, %v888
      %v890 = vpop.f32.mrb[0].mxu0
      %v891 = vpop.f32.mrb[0].mxu0
      %v892 = vadd.f32 0.0, %v891
      %v893 = vpop.f32.mrb[0].mxu0
      %894 = vmatprep.mubr.bf16.mxu0 0
      %895 = vmatmul.mubr.bf16.gmra.mrb[0].mxu0 %v426
      %v896 = vpop.f32.mrb[0].mxu0
      %v897 = vadd.f32 0.0, %v896
      %v898 = vpop.f32.mrb[0].mxu0
      %v899 = vpop.f32.mrb[0].mxu0
      %v900 = vadd.f32 0.0, %v899
      %v901 = vpop.f32.mrb[0].mxu0
      %902 = vmatprep.mubr.bf16.mxu0 0
      %903 = vmatmul.mubr.bf16.gmra.mrb[0].mxu0 %v427
      %v904 = vpop.f32.mrb[0].mxu0
      %v905 = vadd.f32 0.0, %v904
      %v906 = vpop.f32.mrb[0].mxu0
      %v907 = vpop.f32.mrb[0].mxu0
      %v908 = vadd.f32 0.0, %v907
      %v909 = vpop.f32.mrb[0].mxu0
      %910 = vdwg.mxu0
      %v911 = vpack.c.bf16 %v527, %v527
      %v912 = vpack.c.bf16 %v530, %v530
      %v913 = vpack.c.bf16 %v535, %v535
      %v914 = vpack.c.bf16 %v538, %v538
      %v915 = vpack.c.bf16 %v543, %v543
      %v916 = vpack.c.bf16 %v546, %v546
      %v917 = vpack.c.bf16 %v551, %v551
      %v918 = vpack.c.bf16 %v554, %v554
      %v919 = vpack.c.bf16 %v559, %v559
      %v920 = vpack.c.bf16 %v562, %v562
      %v921 = vpack.c.bf16 %v567, %v567
      %v922 = vpack.c.bf16 %v570, %v570
      %v923 = vpack.c.bf16 %v575, %v575
      %v924 = vpack.c.bf16 %v578, %v578
      %v925 = vpack.c.bf16 %v583, %v583
      %v926 = vpack.c.bf16 %v586, %v586
      %v927 = vpack.c.bf16 %v688, %v688
      %v928 = vpack.c.bf16 %v691, %v691
      %v929 = vpack.c.bf16 %v696, %v696
      %v930 = vpack.c.bf16 %v699, %v699
      %v931 = vpack.c.bf16 %v704, %v704
      %v932 = vpack.c.bf16 %v707, %v707
      %v933 = vpack.c.bf16 %v712, %v712
      %v934 = vpack.c.bf16 %v715, %v715
      %v935 = vpack.c.bf16 %v720, %v720
      %v936 = vpack.c.bf16 %v723, %v723
      %v937 = vpack.c.bf16 %v728, %v728
      %v938 = vpack.c.bf16 %v731, %v731
      %v939 = vpack.c.bf16 %v736, %v736
      %v940 = vpack.c.bf16 %v739, %v739
      %v941 = vpack.c.bf16 %v744, %v744
      %v942 = vpack.c.bf16 %v747, %v747
      %943 = vmatprep.subr.bf16.mxu0 0
      %944 = vmatpush1.bf16.xpose.msra.mxu0 %v927
      %945 = vmatprep.subr.bf16.mxu0 0
      %946 = vmatpush1.bf16.xpose.msra.mxu0 0
      %947 = vmatprep.subr.bf16.mxu0 0
      %948 = vmatpush1.bf16.xpose.msra.mxu0 0
      %949 = vmatprep.subr.bf16.mxu0 0
      %950 = vmatpush1.bf16.xpose.msra.mxu0 0
      %951 = vmatprep.subr.bf16.mxu0 0
      %952 = vmatpush1.bf16.xpose.msra.mxu0 0
      %953 = vmatprep.subr.bf16.mxu0 0
      %954 = vmatpush1.bf16.xpose.msra.mxu0 0
      %955 = vmatprep.subr.bf16.mxu0 0
      %956 = vmatpush1.bf16.xpose.msra.mxu0 0
      %957 = vmatprep.subr.bf16.mxu0 0
      %958 = vmatpush1.bf16.xpose.msra.mxu0 0
      %959 = vmatprep.subr.bf16.mxu0 0
      %960 = vmatpush1.bf16.xpose.msra.mxu0 0
      %961 = vmatprep.subr.bf16.mxu0 0
      %962 = vmatpush1.bf16.xpose.msra.mxu0 0
      %963 = vmatprep.subr.bf16.mxu0 0
      %964 = vmatpush1.bf16.xpose.msra.mxu0 0
      %965 = vmatprep.subr.bf16.mxu0 0
      %966 = vmatpush1.bf16.xpose.msra.mxu0 0
      %967 = vmatprep.subr.bf16.mxu0 0
      %968 = vmatpush1.bf16.xpose.msra.mxu0 0
      %969 = vmatprep.subr.bf16.mxu0 0
      %970 = vmatpush1.bf16.xpose.msra.mxu0 0
      %971 = vmatprep.subr.bf16.mxu0 0
      %972 = vmatpush1.bf16.xpose.msra.mxu0 0
      %973 = vmatprep.subr.bf16.mxu0 0
      %974 = vmatpush1.bf16.xpose.msra.mxu0 0
      %975 = vmatprep.mubr.bf16.mxu0 0
      %976 = vmatmul.mubr.bf16.gmra.mrb[0].mxu0 %v911
      %v977 = vpop.f32.mrb[0].mxu0
      %v978 = vadd.f32 0.0, %v977
      %v979 = vpop.f32.mrb[0].mxu0
      %v980 = vpop.f32.mrb[0].mxu0
      %v981 = vpop.f32.mrb[0].mxu0
      %982 = vdwg.mxu0
      %983 = vmatprep.subr.bf16.mxu0 0
      %984 = vmatpush1.bf16.xpose.msra.mxu0 %v928
      %985 = vmatprep.subr.bf16.mxu0 0
      %986 = vmatpush1.bf16.xpose.msra.mxu0 0
      %987 = vmatprep.subr.bf16.mxu0 0
      %988 = vmatpush1.bf16.xpose.msra.mxu0 0
      %989 = vmatprep.subr.bf16.mxu0 0
      %990 = vmatpush1.bf16.xpose.msra.mxu0 0
      %991 = vmatprep.subr.bf16.mxu0 0
      %992 = vmatpush1.bf16.xpose.msra.mxu0 0
      %993 = vmatprep.subr.bf16.mxu0 0
      %994 = vmatpush1.bf16.xpose.msra.mxu0 0
      %995 = vmatprep.subr.bf16.mxu0 0
      %996 = vmatpush1.bf16.xpose.msra.mxu0 0
      %997 = vmatprep.subr.bf16.mxu0 0
      %998 = vmatpush1.bf16.xpose.msra.mxu0 0
      %999 = vmatprep.subr.bf16.mxu0 0
      %1000 = vmatpush1.bf16.xpose.msra.mxu0 0
      %1001 = vmatprep.subr.bf16.mxu0 0
      %1002 = vmatpush1.bf16.xpose.msra.mxu0 0
      %1003 = vmatprep.subr.bf16.mxu0 0
      %1004 = vmatpush1.bf16.xpose.msra.mxu0 0
      %1005 = vmatprep.subr.bf16.mxu0 0
      %1006 = vmatpush1.bf16.xpose.msra.mxu0 0
      %1007 = vmatprep.subr.bf16.mxu0 0
      %1008 = vmatpush1.bf16.xpose.msra.mxu0 0
      %1009 = vmatprep.subr.bf16.mxu0 0
      %1010 = vmatpush1.bf16.xpose.msra.mxu0 0
      %1011 = vmatprep.subr.bf16.mxu0 0
      %1012 = vmatpush1.bf16.xpose.msra.mxu0 0
      %1013 = vmatprep.subr.bf16.mxu0 0
      %1014 = vmatpush1.bf16.xpose.msra.mxu0 0
      %1015 = vmatprep.mubr.bf16.mxu0 0
      %1016 = vmatmul.mubr.bf16.gmra.mrb[0].mxu0 %v912
      %v1017 = vpop.f32.mrb[0].mxu0
      %v1018 = vadd.f32 0.0, %v1017
      %v1019 = vpop.f32.mrb[0].mxu0
      %v1020 = vpop.f32.mrb[0].mxu0
      %v1021 = vpop.f32.mrb[0].mxu0
      %1022 = vdwg.mxu0
      %1023 = vmatprep.subr.bf16.mxu0 0
      %1024 = vmatpush1.bf16.xpose.msra.mxu0 %v929
      %1025 = vmatprep.subr.bf16.mxu0 0
      %1026 = vmatpush1.bf16.xpose.msra.mxu0 0
      %1027 = vmatprep.subr.bf16.mxu0 0
      %1028 = vmatpush1.bf16.xpose.msra.mxu0 0
      %1029 = vmatprep.subr.bf16.mxu0 0
      %1030 = vmatpush1.bf16.xpose.msra.mxu0 0
      %1031 = vmatprep.subr.bf16.mxu0 0
      %1032 = vmatpush1.bf16.xpose.msra.mxu0 0
      %1033 = vmatprep.subr.bf16.mxu0 0
      %1034 = vmatpush1.bf16.xpose.msra.mxu0 0
      %1035 = vmatprep.subr.bf16.mxu0 0
      %1036 = vmatpush1.bf16.xpose.msra.mxu0 0
      %1037 = vmatprep.subr.bf16.mxu0 0
      %1038 = vmatpush1.bf16.xpose.msra.mxu0 0
      %1039 = vmatprep.subr.bf16.mxu0 0
      %1040 = vmatpush1.bf16.xpose.msra.mxu0 0
      %1041 = vmatprep.subr.bf16.mxu0 0
      %1042 = vmatpush1.bf16.xpose.msra.mxu0 0
      %1043 = vmatprep.subr.bf16.mxu0 0
      %1044 = vmatpush1.bf16.xpose.msra.mxu0 0
      %1045 = vmatprep.subr.bf16.mxu0 0
      %1046 = vmatpush1.bf16.xpose.msra.mxu0 0
      %1047 = vmatprep.subr.bf16.mxu0 0
      %1048 = vmatpush1.bf16.xpose.msra.mxu0 0
      %1049 = vmatprep.subr.bf16.mxu0 0
      %1050 = vmatpush1.bf16.xpose.msra.mxu0 0
      %1051 = vmatprep.subr.bf16.mxu0 0
      %1052 = vmatpush1.bf16.xpose.msra.mxu0 0
      %1053 = vmatprep.subr.bf16.mxu0 0
      %1054 = vmatpush1.bf16.xpose.msra.mxu0 0
      %1055 = vmatprep.mubr.bf16.mxu0 0
      %1056 = vmatmul.mubr.bf16.gmra.mrb[0].mxu0 %v913
      %v1057 = vpop.f32.mrb[0].mxu0
      %v1058 = vadd.f32 0.0, %v1057
      %v1059 = vpop.f32.mrb[0].mxu0
      %v1060 = vpop.f32.mrb[0].mxu0
      %v1061 = vpop.f32.mrb[0].mxu0
      %1062 = vdwg.mxu0
      %1063 = vmatprep.subr.bf16.mxu0 0
      %1064 = vmatpush1.bf16.xpose.msra.mxu0 %v930
      %1065 = vmatprep.subr.bf16.mxu0 0
      %1066 = vmatpush1.bf16.xpose.msra.mxu0 0
      %1067 = vmatprep.subr.bf16.mxu0 0
      %1068 = vmatpush1.bf16.xpose.msra.mxu0 0
      %1069 = vmatprep.subr.bf16.mxu0 0
      %1070 = vmatpush1.bf16.xpose.msra.mxu0 0
      %1071 = vmatprep.subr.bf16.mxu0 0
      %1072 = vmatpush1.bf16.xpose.msra.mxu0 0
      %1073 = vmatprep.subr.bf16.mxu0 0
      %1074 = vmatpush1.bf16.xpose.msra.mxu0 0
      %1075 = vmatprep.subr.bf16.mxu0 0
      %1076 = vmatpush1.bf16.xpose.msra.mxu0 0
      %1077 = vmatprep.subr.bf16.mxu0 0
      %1078 = vmatpush1.bf16.xpose.msra.mxu0 0
      %1079 = vmatprep.subr.bf16.mxu0 0
      %1080 = vmatpush1.bf16.xpose.msra.mxu0 0
      %1081 = vmatprep.subr.bf16.mxu0 0
      %1082 = vmatpush1.bf16.xpose.msra.mxu0 0
      %1083 = vmatprep.subr.bf16.mxu0 0
      %1084 = vmatpush1.bf16.xpose.msra.mxu0 0
      %1085 = vmatprep.subr.bf16.mxu0 0
      %1086 = vmatpush1.bf16.xpose.msra.mxu0 0
      %1087 = vmatprep.subr.bf16.mxu0 0
      %1088 = vmatpush1.bf16.xpose.msra.mxu0 0
      %1089 = vmatprep.subr.bf16.mxu0 0
      %1090 = vmatpush1.bf16.xpose.msra.mxu0 0
      %1091 = vmatprep.subr.bf16.mxu0 0
      %1092 = vmatpush1.bf16.xpose.msra.mxu0 0
      %1093 = vmatprep.subr.bf16.mxu0 0
      %1094 = vmatpush1.bf16.xpose.msra.mxu0 0
      %1095 = vmatprep.mubr.bf16.mxu0 0
      %1096 = vmatmul.mubr.bf16.gmra.mrb[0].mxu0 %v914
      %v1097 = vpop.f32.mrb[0].mxu0
      %v1098 = vadd.f32 0.0, %v1097
      %v1099 = vpop.f32.mrb[0].mxu0
      %v1100 = vpop.f32.mrb[0].mxu0
      %v1101 = vpop.f32.mrb[0].mxu0
      %1102 = vdwg.mxu0
      %1103 = vmatprep.subr.bf16.mxu0 0
      %1104 = vmatpush1.bf16.xpose.msra.mxu0 %v931
      %1105 = vmatprep.subr.bf16.mxu0 0
      %1106 = vmatpush1.bf16.xpose.msra.mxu0 0
      %1107 = vmatprep.subr.bf16.mxu0 0
      %1108 = vmatpush1.bf16.xpose.msra.mxu0 0
      %1109 = vmatprep.subr.bf16.mxu0 0
      %1110 = vmatpush1.bf16.xpose.msra.mxu0 0
      %1111 = vmatprep.subr.bf16.mxu0 0
      %1112 = vmatpush1.bf16.xpose.msra.mxu0 0
      %1113 = vmatprep.subr.bf16.mxu0 0
      %1114 = vmatpush1.bf16.xpose.msra.mxu0 0
      %1115 = vmatprep.subr.bf16.mxu0 0
      %1116 = vmatpush1.bf16.xpose.msra.mxu0 0
      %1117 = vmatprep.subr.bf16.mxu0 0
      %1118 = vmatpush1.bf16.xpose.msra.mxu0 0
      %1119 = vmatprep.subr.bf16.mxu0 0
      %1120 = vmatpush1.bf16.xpose.msra.mxu0 0
      %1121 = vmatprep.subr.bf16.mxu0 0
      %1122 = vmatpush1.bf16.xpose.msra.mxu0 0
      %1123 = vmatprep.subr.bf16.mxu0 0
      %1124 = vmatpush1.bf16.xpose.msra.mxu0 0
      %1125 = vmatprep.subr.bf16.mxu0 0
      %1126 = vmatpush1.bf16.xpose.msra.mxu0 0
      %1127 = vmatprep.subr.bf16.mxu0 0
      %1128 = vmatpush1.bf16.xpose.msra.mxu0 0
      %1129 = vmatprep.subr.bf16.mxu0 0
      %1130 = vmatpush1.bf16.xpose.msra.mxu0 0
      %1131 = vmatprep.subr.bf16.mxu0 0
      %1132 = vmatpush1.bf16.xpose.msra.mxu0 0
      %1133 = vmatprep.subr.bf16.mxu0 0
      %1134 = vmatpush1.bf16.xpose.msra.mxu0 0
      %1135 = vmatprep.mubr.bf16.mxu0 0
      %1136 = vmatmul.mubr.bf16.gmra.mrb[0].mxu0 %v915
      %v1137 = vpop.f32.mrb[0].mxu0
      %v1138 = vadd.f32 0.0, %v1137
      %v1139 = vpop.f32.mrb[0].mxu0
      %v1140 = vpop.f32.mrb[0].mxu0
      %v1141 = vpop.f32.mrb[0].mxu0
      %1142 = vdwg.mxu0
      %1143 = vmatprep.subr.bf16.mxu0 0
      %1144 = vmatpush1.bf16.xpose.msra.mxu0 %v932
      %1145 = vmatprep.subr.bf16.mxu0 0
      %1146 = vmatpush1.bf16.xpose.msra.mxu0 0
      %1147 = vmatprep.subr.bf16.mxu0 0
      %1148 = vmatpush1.bf16.xpose.msra.mxu0 0
      %1149 = vmatprep.subr.bf16.mxu0 0
      %1150 = vmatpush1.bf16.xpose.msra.mxu0 0
      %1151 = vmatprep.subr.bf16.mxu0 0
      %1152 = vmatpush1.bf16.xpose.msra.mxu0 0
      %1153 = vmatprep.subr.bf16.mxu0 0
      %1154 = vmatpush1.bf16.xpose.msra.mxu0 0
      %1155 = vmatprep.subr.bf16.mxu0 0
      %1156 = vmatpush1.bf16.xpose.msra.mxu0 0
      %1157 = vmatprep.subr.bf16.mxu0 0
      %1158 = vmatpush1.bf16.xpose.msra.mxu0 0
      %1159 = vmatprep.subr.bf16.mxu0 0
      %1160 = vmatpush1.bf16.xpose.msra.mxu0 0
      %1161 = vmatprep.subr.bf16.mxu0 0
      %1162 = vmatpush1.bf16.xpose.msra.mxu0 0
      %1163 = vmatprep.subr.bf16.mxu0 0
      %1164 = vmatpush1.bf16.xpose.msra.mxu0 0
      %1165 = vmatprep.subr.bf16.mxu0 0
      %1166 = vmatpush1.bf16.xpose.msra.mxu0 0
      %1167 = vmatprep.subr.bf16.mxu0 0
      %1168 = vmatpush1.bf16.xpose.msra.mxu0 0
      %1169 = vmatprep.subr.bf16.mxu0 0
      %1170 = vmatpush1.bf16.xpose.msra.mxu0 0
      %1171 = vmatprep.subr.bf16.mxu0 0
      %1172 = vmatpush1.bf16.xpose.msra.mxu0 0
      %1173 = vmatprep.subr.bf16.mxu0 0
      %1174 = vmatpush1.bf16.xpose.msra.mxu0 0
      %1175 = vmatprep.mubr.bf16.mxu0 0
      %1176 = vmatmul.mubr.bf16.gmra.mrb[0].mxu0 %v916
      %v1177 = vpop.f32.mrb[0].mxu0
      %v1178 = vadd.f32 0.0, %v1177
      %v1179 = vpop.f32.mrb[0].mxu0
      %v1180 = vpop.f32.mrb[0].mxu0
      %v1181 = vpop.f32.mrb[0].mxu0
      %1182 = vdwg.mxu0
      %1183 = vmatprep.subr.bf16.mxu0 0
      %1184 = vmatpush1.bf16.xpose.msra.mxu0 %v933
      %1185 = vmatprep.subr.bf16.mxu0 0
      %1186 = vmatpush1.bf16.xpose.msra.mxu0 0
      %1187 = vmatprep.subr.bf16.mxu0 0
      %1188 = vmatpush1.bf16.xpose.msra.mxu0 0
      %1189 = vmatprep.subr.bf16.mxu0 0
      %1190 = vmatpush1.bf16.xpose.msra.mxu0 0
      %1191 = vmatprep.subr.bf16.mxu0 0
      %1192 = vmatpush1.bf16.xpose.msra.mxu0 0
      %1193 = vmatprep.subr.bf16.mxu0 0
      %1194 = vmatpush1.bf16.xpose.msra.mxu0 0
      %1195 = vmatprep.subr.bf16.mxu0 0
      %1196 = vmatpush1.bf16.xpose.msra.mxu0 0
      %1197 = vmatprep.subr.bf16.mxu0 0
      %1198 = vmatpush1.bf16.xpose.msra.mxu0 0
      %1199 = vmatprep.subr.bf16.mxu0 0
      %1200 = vmatpush1.bf16.xpose.msra.mxu0 0
      %1201 = vmatprep.subr.bf16.mxu0 0
      %1202 = vmatpush1.bf16.xpose.msra.mxu0 0
      %1203 = vmatprep.subr.bf16.mxu0 0
      %1204 = vmatpush1.bf16.xpose.msra.mxu0 0
      %1205 = vmatprep.subr.bf16.mxu0 0
      %1206 = vmatpush1.bf16.xpose.msra.mxu0 0
      %1207 = vmatprep.subr.bf16.mxu0 0
      %1208 = vmatpush1.bf16.xpose.msra.mxu0 0
      %1209 = vmatprep.subr.bf16.mxu0 0
      %1210 = vmatpush1.bf16.xpose.msra.mxu0 0
      %1211 = vmatprep.subr.bf16.mxu0 0
      %1212 = vmatpush1.bf16.xpose.msra.mxu0 0
      %1213 = vmatprep.subr.bf16.mxu0 0
      %1214 = vmatpush1.bf16.xpose.msra.mxu0 0
      %1215 = vmatprep.mubr.bf16.mxu0 0
      %1216 = vmatmul.mubr.bf16.gmra.mrb[0].mxu0 %v917
      %v1217 = vpop.f32.mrb[0].mxu0
      %v1218 = vadd.f32 0.0, %v1217
      %v1219 = vpop.f32.mrb[0].mxu0
      %v1220 = vpop.f32.mrb[0].mxu0
      %v1221 = vpop.f32.mrb[0].mxu0
      %1222 = vdwg.mxu0
      %1223 = vmatprep.subr.bf16.mxu0 0
      %1224 = vmatpush1.bf16.xpose.msra.mxu0 %v934
      %1225 = vmatprep.subr.bf16.mxu0 0
      %1226 = vmatpush1.bf16.xpose.msra.mxu0 0
      %1227 = vmatprep.subr.bf16.mxu0 0
      %1228 = vmatpush1.bf16.xpose.msra.mxu0 0
      %1229 = vmatprep.subr.bf16.mxu0 0
      %1230 = vmatpush1.bf16.xpose.msra.mxu0 0
      %1231 = vmatprep.subr.bf16.mxu0 0
      %1232 = vmatpush1.bf16.xpose.msra.mxu0 0
      %1233 = vmatprep.subr.bf16.mxu0 0
      %1234 = vmatpush1.bf16.xpose.msra.mxu0 0
      %1235 = vmatprep.subr.bf16.mxu0 0
      %1236 = vmatpush1.bf16.xpose.msra.mxu0 0
      %1237 = vmatprep.subr.bf16.mxu0 0
      %1238 = vmatpush1.bf16.xpose.msra.mxu0 0
      %1239 = vmatprep.subr.bf16.mxu0 0
      %1240 = vmatpush1.bf16.xpose.msra.mxu0 0
      %1241 = vmatprep.subr.bf16.mxu0 0
      %1242 = vmatpush1.bf16.xpose.msra.mxu0 0
      %1243 = vmatprep.subr.bf16.mxu0 0
      %1244 = vmatpush1.bf16.xpose.msra.mxu0 0
      %1245 = vmatprep.subr.bf16.mxu0 0
      %1246 = vmatpush1.bf16.xpose.msra.mxu0 0
      %1247 = vmatprep.subr.bf16.mxu0 0
      %1248 = vmatpush1.bf16.xpose.msra.mxu0 0
      %1249 = vmatprep.subr.bf16.mxu0 0
      %1250 = vmatpush1.bf16.xpose.msra.mxu0 0
      %1251 = vmatprep.subr.bf16.mxu0 0
      %1252 = vmatpush1.bf16.xpose.msra.mxu0 0
      %1253 = vmatprep.subr.bf16.mxu0 0
      %1254 = vmatpush1.bf16.xpose.msra.mxu0 0
      %1255 = vmatprep.mubr.bf16.mxu0 0
      %1256 = vmatmul.mubr.bf16.gmra.mrb[0].mxu0 %v918
      %v1257 = vpop.f32.mrb[0].mxu0
      %v1258 = vadd.f32 0.0, %v1257
      %v1259 = vpop.f32.mrb[0].mxu0
      %v1260 = vpop.f32.mrb[0].mxu0
      %v1261 = vpop.f32.mrb[0].mxu0
      %1262 = vdwg.mxu0
      %1263 = vmatprep.subr.bf16.mxu0 0
      %1264 = vmatpush1.bf16.xpose.msra.mxu0 %v935
      %1265 = vmatprep.subr.bf16.mxu0 0
      %1266 = vmatpush1.bf16.xpose.msra.mxu0 0
      %1267 = vmatprep.subr.bf16.mxu0 0
      %1268 = vmatpush1.bf16.xpose.msra.mxu0 0
      %1269 = vmatprep.subr.bf16.mxu0 0
      %1270 = vmatpush1.bf16.xpose.msra.mxu0 0
      %1271 = vmatprep.subr.bf16.mxu0 0
      %1272 = vmatpush1.bf16.xpose.msra.mxu0 0
      %1273 = vmatprep.subr.bf16.mxu0 0
      %1274 = vmatpush1.bf16.xpose.msra.mxu0 0
      %1275 = vmatprep.subr.bf16.mxu0 0
      %1276 = vmatpush1.bf16.xpose.msra.mxu0 0
      %1277 = vmatprep.subr.bf16.mxu0 0
      %1278 = vmatpush1.bf16.xpose.msra.mxu0 0
      %1279 = vmatprep.subr.bf16.mxu0 0
      %1280 = vmatpush1.bf16.xpose.msra.mxu0 0
      %1281 = vmatprep.subr.bf16.mxu0 0
      %1282 = vmatpush1.bf16.xpose.msra.mxu0 0
      %1283 = vmatprep.subr.bf16.mxu0 0
      %1284 = vmatpush1.bf16.xpose.msra.mxu0 0
      %1285 = vmatprep.subr.bf16.mxu0 0
      %1286 = vmatpush1.bf16.xpose.msra.mxu0 0
      %1287 = vmatprep.subr.bf16.mxu0 0
      %1288 = vmatpush1.bf16.xpose.msra.mxu0 0
      %1289 = vmatprep.subr.bf16.mxu0 0
      %1290 = vmatpush1.bf16.xpose.msra.mxu0 0
      %1291 = vmatprep.subr.bf16.mxu0 0
      %1292 = vmatpush1.bf16.xpose.msra.mxu0 0
      %1293 = vmatprep.subr.bf16.mxu0 0
      %1294 = vmatpush1.bf16.xpose.msra.mxu0 0
      %1295 = vmatprep.mubr.bf16.mxu0 0
      %1296 = vmatmul.mubr.bf16.gmra.mrb[0].mxu0 %v919
      %v1297 = vpop.f32.mrb[0].mxu0
      %v1298 = vadd.f32 0.0, %v1297
      %v1299 = vpop.f32.mrb[0].mxu0
      %v1300 = vpop.f32.mrb[0].mxu0
      %v1301 = vpop.f32.mrb[0].mxu0
      %1302 = vdwg.mxu0
      %1303 = vmatprep.subr.bf16.mxu0 0
      %1304 = vmatpush1.bf16.xpose.msra.mxu0 %v936
      %1305 = vmatprep.subr.bf16.mxu0 0
      %1306 = vmatpush1.bf16.xpose.msra.mxu0 0
      %1307 = vmatprep.subr.bf16.mxu0 0
      %1308 = vmatpush1.bf16.xpose.msra.mxu0 0
      %1309 = vmatprep.subr.bf16.mxu0 0
      %1310 = vmatpush1.bf16.xpose.msra.mxu0 0
      %1311 = vmatprep.subr.bf16.mxu0 0
      %1312 = vmatpush1.bf16.xpose.msra.mxu0 0
      %1313 = vmatprep.subr.bf16.mxu0 0
      %1314 = vmatpush1.bf16.xpose.msra.mxu0 0
      %1315 = vmatprep.subr.bf16.mxu0 0
      %1316 = vmatpush1.bf16.xpose.msra.mxu0 0
      %1317 = vmatprep.subr.bf16.mxu0 0
      %1318 = vmatpush1.bf16.xpose.msra.mxu0 0
      %1319 = vmatprep.subr.bf16.mxu0 0
      %1320 = vmatpush1.bf16.xpose.msra.mxu0 0
      %1321 = vmatprep.subr.bf16.mxu0 0
      %1322 = vmatpush1.bf16.xpose.msra.mxu0 0
      %1323 = vmatprep.subr.bf16.mxu0 0
      %1324 = vmatpush1.bf16.xpose.msra.mxu0 0
      %1325 = vmatprep.subr.bf16.mxu0 0
      %1326 = vmatpush1.bf16.xpose.msra.mxu0 0
      %1327 = vmatprep.subr.bf16.mxu0 0
      %1328 = vmatpush1.bf16.xpose.msra.mxu0 0
      %1329 = vmatprep.subr.bf16.mxu0 0
      %1330 = vmatpush1.bf16.xpose.msra.mxu0 0
      %1331 = vmatprep.subr.bf16.mxu0 0
      %1332 = vmatpush1.bf16.xpose.msra.mxu0 0
      %1333 = vmatprep.subr.bf16.mxu0 0
      %1334 = vmatpush1.bf16.xpose.msra.mxu0 0
      %1335 = vmatprep.mubr.bf16.mxu0 0
      %1336 = vmatmul.mubr.bf16.gmra.mrb[0].mxu0 %v920
      %v1337 = vpop.f32.mrb[0].mxu0
      %v1338 = vadd.f32 0.0, %v1337
      %v1339 = vpop.f32.mrb[0].mxu0
      %v1340 = vpop.f32.mrb[0].mxu0
      %v1341 = vpop.f32.mrb[0].mxu0
      %1342 = vdwg.mxu0
      %1343 = vmatprep.subr.bf16.mxu0 0
      %1344 = vmatpush1.bf16.xpose.msra.mxu0 %v937
      %1345 = vmatprep.subr.bf16.mxu0 0
      %1346 = vmatpush1.bf16.xpose.msra.mxu0 0
      %1347 = vmatprep.subr.bf16.mxu0 0
      %1348 = vmatpush1.bf16.xpose.msra.mxu0 0
      %1349 = vmatprep.subr.bf16.mxu0 0
      %1350 = vmatpush1.bf16.xpose.msra.mxu0 0
      %1351 = vmatprep.subr.bf16.mxu0 0
      %1352 = vmatpush1.bf16.xpose.msra.mxu0 0
      %1353 = vmatprep.subr.bf16.mxu0 0
      %1354 = vmatpush1.bf16.xpose.msra.mxu0 0
      %1355 = vmatprep.subr.bf16.mxu0 0
      %1356 = vmatpush1.bf16.xpose.msra.mxu0 0
      %1357 = vmatprep.subr.bf16.mxu0 0
      %1358 = vmatpush1.bf16.xpose.msra.mxu0 0
      %1359 = vmatprep.subr.bf16.mxu0 0
      %1360 = vmatpush1.bf16.xpose.msra.mxu0 0
      %1361 = vmatprep.subr.bf16.mxu0 0
      %1362 = vmatpush1.bf16.xpose.msra.mxu0 0
      %1363 = vmatprep.subr.bf16.mxu0 0
      %1364 = vmatpush1.bf16.xpose.msra.mxu0 0
      %1365 = vmatprep.subr.bf16.mxu0 0
      %1366 = vmatpush1.bf16.xpose.msra.mxu0 0
      %1367 = vmatprep.subr.bf16.mxu0 0
      %1368 = vmatpush1.bf16.xpose.msra.mxu0 0
      %1369 = vmatprep.subr.bf16.mxu0 0
      %1370 = vmatpush1.bf16.xpose.msra.mxu0 0
      %1371 = vmatprep.subr.bf16.mxu0 0
      %1372 = vmatpush1.bf16.xpose.msra.mxu0 0
      %1373 = vmatprep.subr.bf16.mxu0 0
      %1374 = vmatpush1.bf16.xpose.msra.mxu0 0
      %1375 = vmatprep.mubr.bf16.mxu0 0
      %1376 = vmatmul.mubr.bf16.gmra.mrb[0].mxu0 %v921
      %v1377 = vpop.f32.mrb[0].mxu0
      %v1378 = vadd.f32 0.0, %v1377
      %v1379 = vpop.f32.mrb[0].mxu0
      %v1380 = vpop.f32.mrb[0].mxu0
      %v1381 = vpop.f32.mrb[0].mxu0
      %1382 = vdwg.mxu0
      %1383 = vmatprep.subr.bf16.mxu0 0
      %1384 = vmatpush1.bf16.xpose.msra.mxu0 %v938
      %1385 = vmatprep.subr.bf16.mxu0 0
      %1386 = vmatpush1.bf16.xpose.msra.mxu0 0
      %1387 = vmatprep.subr.bf16.mxu0 0
      %1388 = vmatpush1.bf16.xpose.msra.mxu0 0
      %1389 = vmatprep.subr.bf16.mxu0 0
      %1390 = vmatpush1.bf16.xpose.msra.mxu0 0
      %1391 = vmatprep.subr.bf16.mxu0 0
      %1392 = vmatpush1.bf16.xpose.msra.mxu0 0
      %1393 = vmatprep.subr.bf16.mxu0 0
      %1394 = vmatpush1.bf16.xpose.msra.mxu0 0
      %1395 = vmatprep.subr.bf16.mxu0 0
      %1396 = vmatpush1.bf16.xpose.msra.mxu0 0
      %1397 = vmatprep.subr.bf16.mxu0 0
      %1398 = vmatpush1.bf16.xpose.msra.mxu0 0
      %1399 = vmatprep.subr.bf16.mxu0 0
      %1400 = vmatpush1.bf16.xpose.msra.mxu0 0
      %1401 = vmatprep.subr.bf16.mxu0 0
      %1402 = vmatpush1.bf16.xpose.msra.mxu0 0
      %1403 = vmatprep.subr.bf16.mxu0 0
      %1404 = vmatpush1.bf16.xpose.msra.mxu0 0
      %1405 = vmatprep.subr.bf16.mxu0 0
      %1406 = vmatpush1.bf16.xpose.msra.mxu0 0
      %1407 = vmatprep.subr.bf16.mxu0 0
      %1408 = vmatpush1.bf16.xpose.msra.mxu0 0
      %1409 = vmatprep.subr.bf16.mxu0 0
      %1410 = vmatpush1.bf16.xpose.msra.mxu0 0
      %1411 = vmatprep.subr.bf16.mxu0 0
      %1412 = vmatpush1.bf16.xpose.msra.mxu0 0
      %1413 = vmatprep.subr.bf16.mxu0 0
      %1414 = vmatpush1.bf16.xpose.msra.mxu0 0
      %1415 = vmatprep.mubr.bf16.mxu0 0
      %1416 = vmatmul.mubr.bf16.gmra.mrb[0].mxu0 %v922
      %v1417 = vpop.f32.mrb[0].mxu0
      %v1418 = vadd.f32 0.0, %v1417
      %v1419 = vpop.f32.mrb[0].mxu0
      %v1420 = vpop.f32.mrb[0].mxu0
      %v1421 = vpop.f32.mrb[0].mxu0
      %1422 = vdwg.mxu0
      %1423 = vmatprep.subr.bf16.mxu0 0
      %1424 = vmatpush1.bf16.xpose.msra.mxu0 %v939
      %1425 = vmatprep.subr.bf16.mxu0 0
      %1426 = vmatpush1.bf16.xpose.msra.mxu0 0
      %1427 = vmatprep.subr.bf16.mxu0 0
      %1428 = vmatpush1.bf16.xpose.msra.mxu0 0
      %1429 = vmatprep.subr.bf16.mxu0 0
      %1430 = vmatpush1.bf16.xpose.msra.mxu0 0
      %1431 = vmatprep.subr.bf16.mxu0 0
      %1432 = vmatpush1.bf16.xpose.msra.mxu0 0
      %1433 = vmatprep.subr.bf16.mxu0 0
      %1434 = vmatpush1.bf16.xpose.msra.mxu0 0
      %1435 = vmatprep.subr.bf16.mxu0 0
      %1436 = vmatpush1.bf16.xpose.msra.mxu0 0
      %1437 = vmatprep.subr.bf16.mxu0 0
      %1438 = vmatpush1.bf16.xpose.msra.mxu0 0
      %1439 = vmatprep.subr.bf16.mxu0 0
      %1440 = vmatpush1.bf16.xpose.msra.mxu0 0
      %1441 = vmatprep.subr.bf16.mxu0 0
      %1442 = vmatpush1.bf16.xpose.msra.mxu0 0
      %1443 = vmatprep.subr.bf16.mxu0 0
      %1444 = vmatpush1.bf16.xpose.msra.mxu0 0
      %1445 = vmatprep.subr.bf16.mxu0 0
      %1446 = vmatpush1.bf16.xpose.msra.mxu0 0
      %1447 = vmatprep.subr.bf16.mxu0 0
      %1448 = vmatpush1.bf16.xpose.msra.mxu0 0
      %1449 = vmatprep.subr.bf16.mxu0 0
      %1450 = vmatpush1.bf16.xpose.msra.mxu0 0
      %1451 = vmatprep.subr.bf16.mxu0 0
      %1452 = vmatpush1.bf16.xpose.msra.mxu0 0
      %1453 = vmatprep.subr.bf16.mxu0 0
      %1454 = vmatpush1.bf16.xpose.msra.mxu0 0
      %1455 = vmatprep.mubr.bf16.mxu0 0
      %1456 = vmatmul.mubr.bf16.gmra.mrb[0].mxu0 %v923
      %v1457 = vpop.f32.mrb[0].mxu0
      %v1458 = vadd.f32 0.0, %v1457
      %v1459 = vpop.f32.mrb[0].mxu0
      %v1460 = vpop.f32.mrb[0].mxu0
      %v1461 = vpop.f32.mrb[0].mxu0
      %1462 = vdwg.mxu0
      %1463 = vmatprep.subr.bf16.mxu0 0
      %1464 = vmatpush1.bf16.xpose.msra.mxu0 %v940
      %1465 = vmatprep.subr.bf16.mxu0 0
      %1466 = vmatpush1.bf16.xpose.msra.mxu0 0
      %1467 = vmatprep.subr.bf16.mxu0 0
      %1468 = vmatpush1.bf16.xpose.msra.mxu0 0
      %1469 = vmatprep.subr.bf16.mxu0 0
      %1470 = vmatpush1.bf16.xpose.msra.mxu0 0
      %1471 = vmatprep.subr.bf16.mxu0 0
      %1472 = vmatpush1.bf16.xpose.msra.mxu0 0
      %1473 = vmatprep.subr.bf16.mxu0 0
      %1474 = vmatpush1.bf16.xpose.msra.mxu0 0
      %1475 = vmatprep.subr.bf16.mxu0 0
      %1476 = vmatpush1.bf16.xpose.msra.mxu0 0
      %1477 = vmatprep.subr.bf16.mxu0 0
      %1478 = vmatpush1.bf16.xpose.msra.mxu0 0
      %1479 = vmatprep.subr.bf16.mxu0 0
      %1480 = vmatpush1.bf16.xpose.msra.mxu0 0
      %1481 = vmatprep.subr.bf16.mxu0 0
      %1482 = vmatpush1.bf16.xpose.msra.mxu0 0
      %1483 = vmatprep.subr.bf16.mxu0 0
      %1484 = vmatpush1.bf16.xpose.msra.mxu0 0
      %1485 = vmatprep.subr.bf16.mxu0 0
      %1486 = vmatpush1.bf16.xpose.msra.mxu0 0
      %1487 = vmatprep.subr.bf16.mxu0 0
      %1488 = vmatpush1.bf16.xpose.msra.mxu0 0
      %1489 = vmatprep.subr.bf16.mxu0 0
      %1490 = vmatpush1.bf16.xpose.msra.mxu0 0
      %1491 = vmatprep.subr.bf16.mxu0 0
      %1492 = vmatpush1.bf16.xpose.msra.mxu0 0
      %1493 = vmatprep.subr.bf16.mxu0 0
      %1494 = vmatpush1.bf16.xpose.msra.mxu0 0
      %1495 = vmatprep.mubr.bf16.mxu0 0
      %1496 = vmatmul.mubr.bf16.gmra.mrb[0].mxu0 %v924
      %v1497 = vpop.f32.mrb[0].mxu0
      %v1498 = vadd.f32 0.0, %v1497
      %v1499 = vpop.f32.mrb[0].mxu0
      %v1500 = vpop.f32.mrb[0].mxu0
      %v1501 = vpop.f32.mrb[0].mxu0
      %1502 = vdwg.mxu0
      %1503 = vmatprep.subr.bf16.mxu0 0
      %1504 = vmatpush1.bf16.xpose.msra.mxu0 %v941
      %1505 = vmatprep.subr.bf16.mxu0 0
      %1506 = vmatpush1.bf16.xpose.msra.mxu0 0
      %1507 = vmatprep.subr.bf16.mxu0 0
      %1508 = vmatpush1.bf16.xpose.msra.mxu0 0
      %1509 = vmatprep.subr.bf16.mxu0 0
      %1510 = vmatpush1.bf16.xpose.msra.mxu0 0
      %1511 = vmatprep.subr.bf16.mxu0 0
      %1512 = vmatpush1.bf16.xpose.msra.mxu0 0
      %1513 = vmatprep.subr.bf16.mxu0 0
      %1514 = vmatpush1.bf16.xpose.msra.mxu0 0
      %1515 = vmatprep.subr.bf16.mxu0 0
      %1516 = vmatpush1.bf16.xpose.msra.mxu0 0
      %1517 = vmatprep.subr.bf16.mxu0 0
      %1518 = vmatpush1.bf16.xpose.msra.mxu0 0
      %1519 = vmatprep.subr.bf16.mxu0 0
      %1520 = vmatpush1.bf16.xpose.msra.mxu0 0
      %1521 = vmatprep.subr.bf16.mxu0 0
      %1522 = vmatpush1.bf16.xpose.msra.mxu0 0
      %1523 = vmatprep.subr.bf16.mxu0 0
      %1524 = vmatpush1.bf16.xpose.msra.mxu0 0
      %1525 = vmatprep.subr.bf16.mxu0 0
      %1526 = vmatpush1.bf16.xpose.msra.mxu0 0
      %1527 = vmatprep.subr.bf16.mxu0 0
      %1528 = vmatpush1.bf16.xpose.msra.mxu0 0
      %1529 = vmatprep.subr.bf16.mxu0 0
      %1530 = vmatpush1.bf16.xpose.msra.mxu0 0
      %1531 = vmatprep.subr.bf16.mxu0 0
      %1532 = vmatpush1.bf16.xpose.msra.mxu0 0
      %1533 = vmatprep.subr.bf16.mxu0 0
      %1534 = vmatpush1.bf16.xpose.msra.mxu0 0
      %1535 = vmatprep.mubr.bf16.mxu0 0
      %1536 = vmatmul.mubr.bf16.gmra.mrb[0].mxu0 %v925
      %v1537 = vpop.f32.mrb[0].mxu0
      %v1538 = vadd.f32 0.0, %v1537
      %v1539 = vpop.f32.mrb[0].mxu0
      %v1540 = vpop.f32.mrb[0].mxu0
      %v1541 = vpop.f32.mrb[0].mxu0
      %1542 = vdwg.mxu0
      %1543 = vmatprep.subr.bf16.mxu0 0
      %1544 = vmatpush1.bf16.xpose.msra.mxu0 %v942
      %1545 = vmatprep.subr.bf16.mxu0 0
      %1546 = vmatpush1.bf16.xpose.msra.mxu0 0
      %1547 = vmatprep.subr.bf16.mxu0 0
      %1548 = vmatpush1.bf16.xpose.msra.mxu0 0
      %1549 = vmatprep.subr.bf16.mxu0 0
      %1550 = vmatpush1.bf16.xpose.msra.mxu0 0
      %1551 = vmatprep.subr.bf16.mxu0 0
      %1552 = vmatpush1.bf16.xpose.msra.mxu0 0
      %1553 = vmatprep.subr.bf16.mxu0 0
      %1554 = vmatpush1.bf16.xpose.msra.mxu0 0
      %1555 = vmatprep.subr.bf16.mxu0 0
      %1556 = vmatpush1.bf16.xpose.msra.mxu0 0
      %1557 = vmatprep.subr.bf16.mxu0 0
      %1558 = vmatpush1.bf16.xpose.msra.mxu0 0
      %1559 = vmatprep.subr.bf16.mxu0 0
      %1560 = vmatpush1.bf16.xpose.msra.mxu0 0
      %1561 = vmatprep.subr.bf16.mxu0 0
      %1562 = vmatpush1.bf16.xpose.msra.mxu0 0
      %1563 = vmatprep.subr.bf16.mxu0 0
      %1564 = vmatpush1.bf16.xpose.msra.mxu0 0
      %1565 = vmatprep.subr.bf16.mxu0 0
      %1566 = vmatpush1.bf16.xpose.msra.mxu0 0
      %1567 = vmatprep.subr.bf16.mxu0 0
      %1568 = vmatpush1.bf16.xpose.msra.mxu0 0
      %1569 = vmatprep.subr.bf16.mxu0 0
      %1570 = vmatpush1.bf16.xpose.msra.mxu0 0
      %1571 = vmatprep.subr.bf16.mxu0 0
      %1572 = vmatpush1.bf16.xpose.msra.mxu0 0
      %1573 = vmatprep.subr.bf16.mxu0 0
      %1574 = vmatpush1.bf16.xpose.msra.mxu0 0
      %1575 = vmatprep.mubr.bf16.mxu0 0
      %1576 = vmatmul.mubr.bf16.gmra.mrb[0].mxu0 %v926
      %v1577 = vpop.f32.mrb[0].mxu0
      %v1578 = vadd.f32 0.0, %v1577
      %v1579 = vpop.f32.mrb[0].mxu0
      %v1580 = vpop.f32.mrb[0].mxu0
      %v1581 = vpop.f32.mrb[0].mxu0
      %1582 = vdwg.mxu0
      %v1583 = vmul.f32 %v978, 0.088388346
      %v1584 = vmul.f32 %v1018, 0.088388346
      %v1585 = vmul.f32 %v1058, 0.088388346
      %v1586 = vmul.f32 %v1098, 0.088388346
      %v1587 = vmul.f32 %v1138, 0.088388346
      %v1588 = vmul.f32 %v1178, 0.088388346
      %v1589 = vmul.f32 %v1218, 0.088388346
      %v1590 = vmul.f32 %v1258, 0.088388346
      %v1591 = vmul.f32 %v1298, 0.088388346
      %v1592 = vmul.f32 %v1338, 0.088388346
      %v1593 = vmul.f32 %v1378, 0.088388346
      %v1594 = vmul.f32 %v1418, 0.088388346
      %v1595 = vmul.f32 %v1458, 0.088388346
      %v1596 = vmul.f32 %v1498, 0.088388346
      %v1597 = vmul.f32 %v1538, 0.088388346
      %v1598 = vmul.f32 %v1578, 0.088388346
      %v1599 = vlaneseq
      %v1600 = vshrl.u32 %v1599, 7
      %v1601 = vlaneseq
      %v1602 = vand.u32 %v1601, 127
      %vm1603 = vcmp.le.s32.totalorder %v1602, %v1600
      %v1604 = vsel %vm1603, 0.0, -1e+09
      %v1605 = vsub.f32 1.0, %v418
      %v1606 = vsub.f32 1.0, %v419
      %v1607 = vmul.f32 %v1605, -1e+09
      %v1608 = vmul.f32 %v1606, -1e+09
      %v1609 = vadd.f32 %v1583, %v1604
      %v1610 = vadd.f32 %v1584, %v1604
      %v1611 = vadd.f32 %v1585, %v1604
      %v1612 = vadd.f32 %v1586, %v1604
      %v1613 = vadd.f32 %v1587, %v1604
      %v1614 = vadd.f32 %v1588, %v1604
      %v1615 = vadd.f32 %v1589, %v1604
      %v1616 = vadd.f32 %v1590, %v1604
      %v1617 = vadd.f32 %v1591, %v1604
      %v1618 = vadd.f32 %v1592, %v1604
      %v1619 = vadd.f32 %v1593, %v1604
      %v1620 = vadd.f32 %v1594, %v1604
      %v1621 = vadd.f32 %v1595, %v1604
      %v1622 = vadd.f32 %v1596, %v1604
      %v1623 = vadd.f32 %v1597, %v1604
      %v1624 = vadd.f32 %v1598, %v1604
      %v1627 = vcombine.high %v1607, %v1607
      %v1629 = vunpack.c.l.s4 1966171168
      %v1630 = vunpack.c.0.s8 %v1629
      %v1631 = vlaneseq
      %v1632 = vshrl.u32 %v1631, 7
      %v1633 = vsub.s32 %v1630, %v1632
      %v1634 = vrot.slane %v1607, %v1633
      %v1636 = vunpack.c.l.s4 1966171168
      %v1637 = vunpack.c.0.s8 %v1636
      %v1638 = vlaneseq
      %v1639 = vshrl.u32 %v1638, 7
      %v1640 = vsub.s32 %v1637, %v1639
      %v1641 = vrot.slane %v1627, %v1640
      %v1642 = vcombine.high %v1634, %v1634
      %v1643 = vcombine.high %v1641, %v1641
      %v1645 = vunpack.c.l.s4 1966171168
      %v1646 = vunpack.c.0.s8 %v1645
      %v1647 = vlaneseq
      %v1648 = vshrl.u32 %v1647, 7
      %v1649 = vsub.s32 %v1646, %v1648
      %v1650 = vrot.slane %v1634, %v1649
      %v1652 = vunpack.c.l.s4 1966171168
      %v1653 = vunpack.c.0.s8 %v1652
      %v1654 = vlaneseq
      %v1655 = vshrl.u32 %v1654, 7
      %v1656 = vsub.s32 %v1653, %v1655
      %v1657 = vrot.slane %v1641, %v1656
      %v1659 = vunpack.c.l.s4 1966171168
      %v1660 = vunpack.c.0.s8 %v1659
      %v1661 = vlaneseq
      %v1662 = vshrl.u32 %v1661, 7
      %v1663 = vsub.s32 %v1660, %v1662
      %v1664 = vrot.slane %v1642, %v1663
      %v1666 = vunpack.c.l.s4 1966171168
      %v1667 = vunpack.c.0.s8 %v1666
      %v1668 = vlaneseq
      %v1669 = vshrl.u32 %v1668, 7
      %v1670 = vsub.s32 %v1667, %v1669
      %v1671 = vrot.slane %v1643, %v1670
      %v1672 = vcombine.high %v1650, %v1650
      %v1673 = vcombine.high %v1657, %v1657
      %v1674 = vcombine.high %v1664, %v1664
      %v1675 = vcombine.high %v1671, %v1671
      %v1676 = vcombine.high %v1608, %v1608
      %v1678 = vunpack.c.l.s4 1966171168
      %v1679 = vunpack.c.0.s8 %v1678
      %v1680 = vlaneseq
      %v1681 = vshrl.u32 %v1680, 7
      %v1682 = vsub.s32 %v1679, %v1681
      %v1683 = vrot.slane %v1608, %v1682
      %v1685 = vunpack.c.l.s4 1966171168
      %v1686 = vunpack.c.0.s8 %v1685
      %v1687 = vlaneseq
      %v1688 = vshrl.u32 %v1687, 7
      %v1689 = vsub.s32 %v1686, %v1688
      %v1690 = vrot.slane %v1676, %v1689
      %v1691 = vcombine.high %v1683, %v1683
      %v1692 = vcombine.high %v1690, %v1690
      %v1694 = vunpack.c.l.s4 1966171168
      %v1695 = vunpack.c.0.s8 %v1694
      %v1696 = vlaneseq
      %v1697 = vshrl.u32 %v1696, 7
      %v1698 = vsub.s32 %v1695, %v1697
      %v1699 = vrot.slane %v1683, %v1698
      %v1701 = vunpack.c.l.s4 1966171168
      %v1702 = vunpack.c.0.s8 %v1701
      %v1703 = vlaneseq
      %v1704 = vshrl.u32 %v1703, 7
      %v1705 = vsub.s32 %v1702, %v1704
      %v1706 = vrot.slane %v1690, %v1705
      %v1708 = vunpack.c.l.s4 1966171168
      %v1709 = vunpack.c.0.s8 %v1708
      %v1710 = vlaneseq
      %v1711 = vshrl.u32 %v1710, 7
      %v1712 = vsub.s32 %v1709, %v1711
      %v1713 = vrot.slane %v1691, %v1712
      %v1715 = vunpack.c.l.s4 1966171168
      %v1716 = vunpack.c.0.s8 %v1715
      %v1717 = vlaneseq
      %v1718 = vshrl.u32 %v1717, 7
      %v1719 = vsub.s32 %v1716, %v1718
      %v1720 = vrot.slane %v1692, %v1719
      %v1721 = vcombine.high %v1699, %v1699
      %v1722 = vcombine.high %v1706, %v1706
      %v1723 = vcombine.high %v1713, %v1713
      %v1724 = vcombine.high %v1720, %v1720
      %v1725 = vlaneseq
      %v1726 = vshrl.u32 %v1725, 7
      %v1727 = vsub.s32 0, %v1726
      %v1728 = vrot.slane %v1650, %v1727
      %v1729 = vlaneseq
      %v1730 = vshrl.u32 %v1729, 7
      %v1731 = vsub.s32 0, %v1730
      %v1732 = vrot.slane %v1664, %v1731
      %v1733 = vlaneseq
      %v1734 = vshrl.u32 %v1733, 7
      %v1735 = vsub.s32 0, %v1734
      %v1736 = vrot.slane %v1672, %v1735
      %v1737 = vlaneseq
      %v1738 = vshrl.u32 %v1737, 7
      %v1739 = vsub.s32 0, %v1738
      %v1740 = vrot.slane %v1674, %v1739
      %v1741 = vlaneseq
      %v1742 = vshrl.u32 %v1741, 7
      %v1743 = vsub.s32 0, %v1742
      %v1744 = vrot.slane %v1657, %v1743
      %v1745 = vlaneseq
      %v1746 = vshrl.u32 %v1745, 7
      %v1747 = vsub.s32 0, %v1746
      %v1748 = vrot.slane %v1671, %v1747
      %v1749 = vlaneseq
      %v1750 = vshrl.u32 %v1749, 7
      %v1751 = vsub.s32 0, %v1750
      %v1752 = vrot.slane %v1673, %v1751
      %v1753 = vlaneseq
      %v1754 = vshrl.u32 %v1753, 7
      %v1755 = vsub.s32 0, %v1754
      %v1756 = vrot.slane %v1675, %v1755
      %v1757 = vlaneseq
      %v1758 = vshrl.u32 %v1757, 7
      %v1759 = vsub.s32 0, %v1758
      %v1760 = vrot.slane %v1699, %v1759
      %v1761 = vlaneseq
      %v1762 = vshrl.u32 %v1761, 7
      %v1763 = vsub.s32 0, %v1762
      %v1764 = vrot.slane %v1713, %v1763
      %v1765 = vlaneseq
      %v1766 = vshrl.u32 %v1765, 7
      %v1767 = vsub.s32 0, %v1766
      %v1768 = vrot.slane %v1721, %v1767
      %v1769 = vlaneseq
      %v1770 = vshrl.u32 %v1769, 7
      %v1771 = vsub.s32 0, %v1770
      %v1772 = vrot.slane %v1723, %v1771
      %v1773 = vlaneseq
      %v1774 = vshrl.u32 %v1773, 7
      %v1775 = vsub.s32 0, %v1774
      %v1776 = vrot.slane %v1706, %v1775
      %v1777 = vlaneseq
      %v1778 = vshrl.u32 %v1777, 7
      %v1779 = vsub.s32 0, %v1778
      %v1780 = vrot.slane %v1720, %v1779
      %v1781 = vlaneseq
      %v1782 = vshrl.u32 %v1781, 7
      %v1783 = vsub.s32 0, %v1782
      %v1784 = vrot.slane %v1722, %v1783
      %v1785 = vlaneseq
      %v1786 = vshrl.u32 %v1785, 7
      %v1787 = vsub.s32 0, %v1786
      %v1788 = vrot.slane %v1724, %v1787
      %v1805 = vadd.f32 %v1609, %v1728
      %v1806 = vadd.f32 %v1610, %v1732
      %v1807 = vadd.f32 %v1611, %v1736
      %v1808 = vadd.f32 %v1612, %v1740
      %v1809 = vadd.f32 %v1613, %v1744
      %v1810 = vadd.f32 %v1614, %v1748
      %v1811 = vadd.f32 %v1615, %v1752
      %v1812 = vadd.f32 %v1616, %v1756
      %v1813 = vadd.f32 %v1617, %v1760
      %v1814 = vadd.f32 %v1618, %v1764
      %v1815 = vadd.f32 %v1619, %v1768
      %v1816 = vadd.f32 %v1620, %v1772
      %v1817 = vadd.f32 %v1621, %v1776
      %v1818 = vadd.f32 %v1622, %v1780
      %v1819 = vadd.f32 %v1623, %v1784
      %v1820 = vadd.f32 %v1624, %v1788
      %vm1821 = vcmask 64512
      %v1822 = vsel %vm1821, %v1805, -inf
      %1823 = vmax.xlane.f32.xlu0 %v1822
      %v1824 = vpop.xlane.xlu0 %1823
      %v1825 = vsel %vm1821, %v1806, -inf
      %1826 = vmax.xlane.f32.xlu0 %v1825
      %v1827 = vpop.xlane.xlu0 %1826
      %v1828 = vsel %vm1821, %v1807, -inf
      %1829 = vmax.xlane.f32.xlu0 %v1828
      %v1830 = vpop.xlane.xlu0 %1829
      %v1831 = vsel %vm1821, %v1808, -inf
      %1832 = vmax.xlane.f32.xlu0 %v1831
      %v1833 = vpop.xlane.xlu0 %1832
      %v1834 = vsel %vm1821, %v1809, -inf
      %1835 = vmax.xlane.f32.xlu0 %v1834
      %v1836 = vpop.xlane.xlu0 %1835
      %v1837 = vsel %vm1821, %v1810, -inf
      %1838 = vmax.xlane.f32.xlu0 %v1837
      %v1839 = vpop.xlane.xlu0 %1838
      %v1840 = vsel %vm1821, %v1811, -inf
      %1841 = vmax.xlane.f32.xlu0 %v1840
      %v1842 = vpop.xlane.xlu0 %1841
      %v1843 = vsel %vm1821, %v1812, -inf
      %1844 = vmax.xlane.f32.xlu0 %v1843
      %v1845 = vpop.xlane.xlu0 %1844
      %v1846 = vsel %vm1821, %v1813, -inf
      %1847 = vmax.xlane.f32.xlu0 %v1846
      %v1848 = vpop.xlane.xlu0 %1847
      %v1849 = vsel %vm1821, %v1814, -inf
      %1850 = vmax.xlane.f32.xlu0 %v1849
      %v1851 = vpop.xlane.xlu0 %1850
      %v1852 = vsel %vm1821, %v1815, -inf
      %1853 = vmax.xlane.f32.xlu0 %v1852
      %v1854 = vpop.xlane.xlu0 %1853
      %v1855 = vsel %vm1821, %v1816, -inf
      %1856 = vmax.xlane.f32.xlu0 %v1855
      %v1857 = vpop.xlane.xlu0 %1856
      %v1858 = vsel %vm1821, %v1817, -inf
      %1859 = vmax.xlane.f32.xlu0 %v1858
      %v1860 = vpop.xlane.xlu0 %1859
      %v1861 = vsel %vm1821, %v1818, -inf
      %1862 = vmax.xlane.f32.xlu0 %v1861
      %v1863 = vpop.xlane.xlu0 %1862
      %v1864 = vsel %vm1821, %v1819, -inf
      %1865 = vmax.xlane.f32.xlu0 %v1864
      %v1866 = vpop.xlane.xlu0 %1865
      %v1867 = vsel %vm1821, %v1820, -inf
      %1868 = vmax.xlane.f32.xlu0 %v1867
      %v1869 = vpop.xlane.xlu0 %1868
      %v1870 = vsub.f32 %v1805, %v1824
      %v1871 = vsub.f32 %v1806, %v1827
      %v1872 = vsub.f32 %v1807, %v1830
      %v1873 = vsub.f32 %v1808, %v1833
      %v1874 = vsub.f32 %v1809, %v1836
      %v1875 = vsub.f32 %v1810, %v1839
      %v1876 = vsub.f32 %v1811, %v1842
      %v1877 = vsub.f32 %v1812, %v1845
      %v1878 = vsub.f32 %v1813, %v1848
      %v1879 = vsub.f32 %v1814, %v1851
      %v1880 = vsub.f32 %v1815, %v1854
      %v1881 = vsub.f32 %v1816, %v1857
      %v1882 = vsub.f32 %v1817, %v1860
      %v1883 = vsub.f32 %v1818, %v1863
      %v1884 = vsub.f32 %v1819, %v1866
      %v1885 = vsub.f32 %v1820, %v1869
      %v1886 = vmul.f32 %v1870, 1.442695
      %v1887 = vpow.pop %v1886
      %v1888 = vmul.f32 %v1871, 1.442695
      %v1889 = vpow.pop %v1888
      %v1890 = vmul.f32 %v1872, 1.442695
      %v1891 = vpow.pop %v1890
      %v1892 = vmul.f32 %v1873, 1.442695
      %v1893 = vpow.pop %v1892
      %v1894 = vmul.f32 %v1874, 1.442695
      %v1895 = vpow.pop %v1894
      %v1896 = vmul.f32 %v1875, 1.442695
      %v1897 = vpow.pop %v1896
      %v1898 = vmul.f32 %v1876, 1.442695
      %v1899 = vpow.pop %v1898
      %v1900 = vmul.f32 %v1877, 1.442695
      %v1901 = vpow.pop %v1900
      %v1902 = vmul.f32 %v1878, 1.442695
      %v1903 = vpow.pop %v1902
      %v1904 = vmul.f32 %v1879, 1.442695
      %v1905 = vpow.pop %v1904
      %v1906 = vmul.f32 %v1880, 1.442695
      %v1907 = vpow.pop %v1906
      %v1908 = vmul.f32 %v1881, 1.442695
      %v1909 = vpow.pop %v1908
      %v1910 = vmul.f32 %v1882, 1.442695
      %v1911 = vpow.pop %v1910
      %v1912 = vmul.f32 %v1883, 1.442695
      %v1913 = vpow.pop %v1912
      %v1914 = vmul.f32 %v1884, 1.442695
      %v1915 = vpow.pop %v1914
      %v1916 = vmul.f32 %v1885, 1.442695
      %v1917 = vpow.pop %v1916
      %v1918 = vsel %vm1821, %v1887, 0.0
      %1919 = vadd.xlane.f32.xlu0 %v1918
      %v1920 = vpop.xlane.xlu0 %1919
      %v1921 = vsel %vm1821, %v1889, 0.0
      %1922 = vadd.xlane.f32.xlu0 %v1921
      %v1923 = vpop.xlane.xlu0 %1922
      %v1924 = vsel %vm1821, %v1891, 0.0
      %1925 = vadd.xlane.f32.xlu0 %v1924
      %v1926 = vpop.xlane.xlu0 %1925
      %v1927 = vsel %vm1821, %v1893, 0.0
      %1928 = vadd.xlane.f32.xlu0 %v1927
      %v1929 = vpop.xlane.xlu0 %1928
      %v1930 = vsel %vm1821, %v1895, 0.0
      %1931 = vadd.xlane.f32.xlu0 %v1930
      %v1932 = vpop.xlane.xlu0 %1931
      %v1933 = vsel %vm1821, %v1897, 0.0
      %1934 = vadd.xlane.f32.xlu0 %v1933
      %v1935 = vpop.xlane.xlu0 %1934
      %v1936 = vsel %vm1821, %v1899, 0.0
      %1937 = vadd.xlane.f32.xlu0 %v1936
      %v1938 = vpop.xlane.xlu0 %1937
      %v1939 = vsel %vm1821, %v1901, 0.0
      %1940 = vadd.xlane.f32.xlu0 %v1939
      %v1941 = vpop.xlane.xlu0 %1940
      %v1942 = vsel %vm1821, %v1903, 0.0
      %1943 = vadd.xlane.f32.xlu0 %v1942
      %v1944 = vpop.xlane.xlu0 %1943
      %v1945 = vsel %vm1821, %v1905, 0.0
      %1946 = vadd.xlane.f32.xlu0 %v1945
      %v1947 = vpop.xlane.xlu0 %1946
      %v1948 = vsel %vm1821, %v1907, 0.0
      %1949 = vadd.xlane.f32.xlu0 %v1948
      %v1950 = vpop.xlane.xlu0 %1949
      %v1951 = vsel %vm1821, %v1909, 0.0
      %1952 = vadd.xlane.f32.xlu0 %v1951
      %v1953 = vpop.xlane.xlu0 %1952
      %v1954 = vsel %vm1821, %v1911, 0.0
      %1955 = vadd.xlane.f32.xlu0 %v1954
      %v1956 = vpop.xlane.xlu0 %1955
      %v1957 = vsel %vm1821, %v1913, 0.0
      %1958 = vadd.xlane.f32.xlu0 %v1957
      %v1959 = vpop.xlane.xlu0 %1958
      %v1960 = vsel %vm1821, %v1915, 0.0
      %1961 = vadd.xlane.f32.xlu0 %v1960
      %v1962 = vpop.xlane.xlu0 %1961
      %v1963 = vsel %vm1821, %v1917, 0.0
      %1964 = vadd.xlane.f32.xlu0 %v1963
      %v1965 = vpop.xlane.xlu0 %1964
      %v1966 = vrcp.pop %v1920
      %v1967 = vrcp.pop %v1923
      %v1968 = vrcp.pop %v1926
      %v1969 = vrcp.pop %v1929
      %v1970 = vrcp.pop %v1932
      %v1971 = vrcp.pop %v1935
      %v1972 = vrcp.pop %v1938
      %v1973 = vrcp.pop %v1941
      %v1974 = vrcp.pop %v1944
      %v1975 = vrcp.pop %v1947
      %v1976 = vrcp.pop %v1950
      %v1977 = vrcp.pop %v1953
      %v1978 = vrcp.pop %v1956
      %v1979 = vrcp.pop %v1959
      %v1980 = vrcp.pop %v1962
      %v1981 = vrcp.pop %v1965
      %v1982 = vmul.f32 %v1887, %v1966
      %v1983 = vmul.f32 %v1889, %v1967
      %v1984 = vmul.f32 %v1891, %v1968
      %v1985 = vmul.f32 %v1893, %v1969
      %v1986 = vmul.f32 %v1895, %v1970
      %v1987 = vmul.f32 %v1897, %v1971
      %v1988 = vmul.f32 %v1899, %v1972
      %v1989 = vmul.f32 %v1901, %v1973
      %v1990 = vmul.f32 %v1903, %v1974
      %v1991 = vmul.f32 %v1905, %v1975
      %v1992 = vmul.f32 %v1907, %v1976
      %v1993 = vmul.f32 %v1909, %v1977
      %v1994 = vmul.f32 %v1911, %v1978
      %v1995 = vmul.f32 %v1913, %v1979
      %v1996 = vmul.f32 %v1915, %v1980
      %v1997 = vmul.f32 %v1917, %v1981
      %v1998 = vpack.c.bf16 %v1982, %v1982
      %v1999 = vpack.c.bf16 %v1983, %v1983
      %v2000 = vpack.c.bf16 %v1984, %v1984
      %v2001 = vpack.c.bf16 %v1985, %v1985
      %v2002 = vpack.c.bf16 %v1986, %v1986
      %v2003 = vpack.c.bf16 %v1987, %v1987
      %v2004 = vpack.c.bf16 %v1988, %v1988
      %v2005 = vpack.c.bf16 %v1989, %v1989
      %v2006 = vpack.c.bf16 %v1990, %v1990
      %v2007 = vpack.c.bf16 %v1991, %v1991
      %v2008 = vpack.c.bf16 %v1992, %v1992
      %v2009 = vpack.c.bf16 %v1993, %v1993
      %v2010 = vpack.c.bf16 %v1994, %v1994
      %v2011 = vpack.c.bf16 %v1995, %v1995
      %v2012 = vpack.c.bf16 %v1996, %v1996
      %v2013 = vpack.c.bf16 %v1997, %v1997
      %v2014 = vpack.c.bf16 %v849, %v849
      %v2015 = vpack.c.bf16 %v852, %v852
      %v2016 = vpack.c.bf16 %v857, %v857
      %v2017 = vpack.c.bf16 %v860, %v860
      %v2018 = vpack.c.bf16 %v865, %v865
      %v2019 = vpack.c.bf16 %v868, %v868
      %v2020 = vpack.c.bf16 %v873, %v873
      %v2021 = vpack.c.bf16 %v876, %v876
      %v2022 = vpack.c.bf16 %v881, %v881
      %v2023 = vpack.c.bf16 %v884, %v884
      %v2024 = vpack.c.bf16 %v889, %v889
      %v2025 = vpack.c.bf16 %v892, %v892
      %v2026 = vpack.c.bf16 %v897, %v897
      %v2027 = vpack.c.bf16 %v900, %v900
      %v2028 = vpack.c.bf16 %v905, %v905
      %v2029 = vpack.c.bf16 %v908, %v908
      %v2031 = vsel %vm1821, %v1998, 0
      %vm2033 = vcmask 1043456
      %v2035 = vsel %vm2033, %v2014, 0
      %2037 = vmatprep.subr.bf16.mxu0 0
      %2038 = vmatpush1.bf16.msra.mxu0 %v2035
      %2039 = vmatprep.subr.bf16.mxu0 0
      %2040 = vmatpush1.bf16.msra.mxu0 0
      %2041 = vmatprep.subr.bf16.mxu0 0
      %2042 = vmatpush1.bf16.msra.mxu0 0
      %2043 = vmatprep.subr.bf16.mxu0 0
      %2044 = vmatpush1.bf16.msra.mxu0 0
      %2045 = vmatprep.subr.bf16.mxu0 0
      %2046 = vmatpush1.bf16.msra.mxu0 0
      %2047 = vmatprep.subr.bf16.mxu0 0
      %2048 = vmatpush1.bf16.msra.mxu0 0
      %2049 = vmatprep.subr.bf16.mxu0 0
      %2050 = vmatpush1.bf16.msra.mxu0 0
      %2051 = vmatprep.subr.bf16.mxu0 0
      %2052 = vmatpush1.bf16.msra.mxu0 0
      %2053 = vmatprep.subr.bf16.mxu0 0
      %2054 = vmatpush1.bf16.msra.mxu0 0
      %2055 = vmatprep.subr.bf16.mxu0 0
      %2056 = vmatpush1.bf16.msra.mxu0 0
      %2057 = vmatprep.subr.bf16.mxu0 0
      %2058 = vmatpush1.bf16.msra.mxu0 0
      %2059 = vmatprep.subr.bf16.mxu0 0
      %2060 = vmatpush1.bf16.msra.mxu0 0
      %2061 = vmatprep.subr.bf16.mxu0 0
      %2062 = vmatpush1.bf16.msra.mxu0 0
      %2063 = vmatprep.subr.bf16.mxu0 0
      %2064 = vmatpush1.bf16.msra.mxu0 0
      %2065 = vmatprep.subr.bf16.mxu0 0
      %2066 = vmatpush1.bf16.msra.mxu0 0
      %2067 = vmatprep.subr.bf16.mxu0 0
      %2068 = vmatpush1.bf16.msra.mxu0 0
      %2069 = vmatprep.mubr.bf16.mxu0 0
      %2070 = vmatmul.mubr.bf16.gmra.mrb[0].mxu0 %v2031
      %v2071 = vpop.f32.mrb[0].mxu0
      %v2072 = vadd.f32 0.0, %v2071
      %v2073 = vpop.f32.mrb[0].mxu0
      %v2074 = vpop.f32.mrb[0].mxu0
      %v2075 = vpop.f32.mrb[0].mxu0
      %2076 = vdwg.mxu0
      %v2078 = vsel %vm1821, %v1999, 0
      %v2081 = vsel %vm2033, %v2015, 0
      %2083 = vmatprep.subr.bf16.mxu0 0
      %2084 = vmatpush1.bf16.msra.mxu0 %v2081
      %2085 = vmatprep.subr.bf16.mxu0 0
      %2086 = vmatpush1.bf16.msra.mxu0 0
      %2087 = vmatprep.subr.bf16.mxu0 0
      %2088 = vmatpush1.bf16.msra.mxu0 0
      %2089 = vmatprep.subr.bf16.mxu0 0
      %2090 = vmatpush1.bf16.msra.mxu0 0
      %2091 = vmatprep.subr.bf16.mxu0 0
      %2092 = vmatpush1.bf16.msra.mxu0 0
      %2093 = vmatprep.subr.bf16.mxu0 0
      %2094 = vmatpush1.bf16.msra.mxu0 0
      %2095 = vmatprep.subr.bf16.mxu0 0
      %2096 = vmatpush1.bf16.msra.mxu0 0
      %2097 = vmatprep.subr.bf16.mxu0 0
      %2098 = vmatpush1.bf16.msra.mxu0 0
      %2099 = vmatprep.subr.bf16.mxu0 0
      %2100 = vmatpush1.bf16.msra.mxu0 0
      %2101 = vmatprep.subr.bf16.mxu0 0
      %2102 = vmatpush1.bf16.msra.mxu0 0
      %2103 = vmatprep.subr.bf16.mxu0 0
      %2104 = vmatpush1.bf16.msra.mxu0 0
      %2105 = vmatprep.subr.bf16.mxu0 0
      %2106 = vmatpush1.bf16.msra.mxu0 0
      %2107 = vmatprep.subr.bf16.mxu0 0
      %2108 = vmatpush1.bf16.msra.mxu0 0
      %2109 = vmatprep.subr.bf16.mxu0 0
      %2110 = vmatpush1.bf16.msra.mxu0 0
      %2111 = vmatprep.subr.bf16.mxu0 0
      %2112 = vmatpush1.bf16.msra.mxu0 0
      %2113 = vmatprep.subr.bf16.mxu0 0
      %2114 = vmatpush1.bf16.msra.mxu0 0
      %2115 = vmatprep.mubr.bf16.mxu0 0
      %2116 = vmatmul.mubr.bf16.gmra.mrb[0].mxu0 %v2078
      %v2117 = vpop.f32.mrb[0].mxu0
      %v2118 = vadd.f32 0.0, %v2117
      %v2119 = vpop.f32.mrb[0].mxu0
      %v2120 = vpop.f32.mrb[0].mxu0
      %v2121 = vpop.f32.mrb[0].mxu0
      %2122 = vdwg.mxu0
      %v2124 = vsel %vm1821, %v2000, 0
      %v2127 = vsel %vm2033, %v2016, 0
      %2129 = vmatprep.subr.bf16.mxu0 0
      %2130 = vmatpush1.bf16.msra.mxu0 %v2127
      %2131 = vmatprep.subr.bf16.mxu0 0
      %2132 = vmatpush1.bf16.msra.mxu0 0
      %2133 = vmatprep.subr.bf16.mxu0 0
      %2134 = vmatpush1.bf16.msra.mxu0 0
      %2135 = vmatprep.subr.bf16.mxu0 0
      %2136 = vmatpush1.bf16.msra.mxu0 0
      %2137 = vmatprep.subr.bf16.mxu0 0
      %2138 = vmatpush1.bf16.msra.mxu0 0
      %2139 = vmatprep.subr.bf16.mxu0 0
      %2140 = vmatpush1.bf16.msra.mxu0 0
      %2141 = vmatprep.subr.bf16.mxu0 0
      %2142 = vmatpush1.bf16.msra.mxu0 0
      %2143 = vmatprep.subr.bf16.mxu0 0
      %2144 = vmatpush1.bf16.msra.mxu0 0
      %2145 = vmatprep.subr.bf16.mxu0 0
      %2146 = vmatpush1.bf16.msra.mxu0 0
      %2147 = vmatprep.subr.bf16.mxu0 0
      %2148 = vmatpush1.bf16.msra.mxu0 0
      %2149 = vmatprep.subr.bf16.mxu0 0
      %2150 = vmatpush1.bf16.msra.mxu0 0
      %2151 = vmatprep.subr.bf16.mxu0 0
      %2152 = vmatpush1.bf16.msra.mxu0 0
      %2153 = vmatprep.subr.bf16.mxu0 0
      %2154 = vmatpush1.bf16.msra.mxu0 0
      %2155 = vmatprep.subr.bf16.mxu0 0
      %2156 = vmatpush1.bf16.msra.mxu0 0
      %2157 = vmatprep.subr.bf16.mxu0 0
      %2158 = vmatpush1.bf16.msra.mxu0 0
      %2159 = vmatprep.subr.bf16.mxu0 0
      %2160 = vmatpush1.bf16.msra.mxu0 0
      %2161 = vmatprep.mubr.bf16.mxu0 0
      %2162 = vmatmul.mubr.bf16.gmra.mrb[0].mxu0 %v2124
      %v2163 = vpop.f32.mrb[0].mxu0
      %v2164 = vadd.f32 0.0, %v2163
      %v2165 = vpop.f32.mrb[0].mxu0
      %v2166 = vpop.f32.mrb[0].mxu0
      %v2167 = vpop.f32.mrb[0].mxu0
      %2168 = vdwg.mxu0
      %v2170 = vsel %vm1821, %v2001, 0
      %v2173 = vsel %vm2033, %v2017, 0
      %2175 = vmatprep.subr.bf16.mxu0 0
      %2176 = vmatpush1.bf16.msra.mxu0 %v2173
      %2177 = vmatprep.subr.bf16.mxu0 0
      %2178 = vmatpush1.bf16.msra.mxu0 0
      %2179 = vmatprep.subr.bf16.mxu0 0
      %2180 = vmatpush1.bf16.msra.mxu0 0
      %2181 = vmatprep.subr.bf16.mxu0 0
      %2182 = vmatpush1.bf16.msra.mxu0 0
      %2183 = vmatprep.subr.bf16.mxu0 0
      %2184 = vmatpush1.bf16.msra.mxu0 0
      %2185 = vmatprep.subr.bf16.mxu0 0
      %2186 = vmatpush1.bf16.msra.mxu0 0
      %2187 = vmatprep.subr.bf16.mxu0 0
      %2188 = vmatpush1.bf16.msra.mxu0 0
      %2189 = vmatprep.subr.bf16.mxu0 0
      %2190 = vmatpush1.bf16.msra.mxu0 0
      %2191 = vmatprep.subr.bf16.mxu0 0
      %2192 = vmatpush1.bf16.msra.mxu0 0
      %2193 = vmatprep.subr.bf16.mxu0 0
      %2194 = vmatpush1.bf16.msra.mxu0 0
      %2195 = vmatprep.subr.bf16.mxu0 0
      %2196 = vmatpush1.bf16.msra.mxu0 0
      %2197 = vmatprep.subr.bf16.mxu0 0
      %2198 = vmatpush1.bf16.msra.mxu0 0
      %2199 = vmatprep.subr.bf16.mxu0 0
      %2200 = vmatpush1.bf16.msra.mxu0 0
      %2201 = vmatprep.subr.bf16.mxu0 0
      %2202 = vmatpush1.bf16.msra.mxu0 0
      %2203 = vmatprep.subr.bf16.mxu0 0
      %2204 = vmatpush1.bf16.msra.mxu0 0
      %2205 = vmatprep.subr.bf16.mxu0 0
      %2206 = vmatpush1.bf16.msra.mxu0 0
      %2207 = vmatprep.mubr.bf16.mxu0 0
      %2208 = vmatmul.mubr.bf16.gmra.mrb[0].mxu0 %v2170
      %v2209 = vpop.f32.mrb[0].mxu0
      %v2210 = vadd.f32 0.0, %v2209
      %v2211 = vpop.f32.mrb[0].mxu0
      %v2212 = vpop.f32.mrb[0].mxu0
      %v2213 = vpop.f32.mrb[0].mxu0
      %2214 = vdwg.mxu0
      %v2216 = vsel %vm1821, %v2002, 0
      %v2219 = vsel %vm2033, %v2018, 0
      %2221 = vmatprep.subr.bf16.mxu0 0
      %2222 = vmatpush1.bf16.msra.mxu0 %v2219
      %2223 = vmatprep.subr.bf16.mxu0 0
      %2224 = vmatpush1.bf16.msra.mxu0 0
      %2225 = vmatprep.subr.bf16.mxu0 0
      %2226 = vmatpush1.bf16.msra.mxu0 0
      %2227 = vmatprep.subr.bf16.mxu0 0
      %2228 = vmatpush1.bf16.msra.mxu0 0
      %2229 = vmatprep.subr.bf16.mxu0 0
      %2230 = vmatpush1.bf16.msra.mxu0 0
      %2231 = vmatprep.subr.bf16.mxu0 0
      %2232 = vmatpush1.bf16.msra.mxu0 0
      %2233 = vmatprep.subr.bf16.mxu0 0
      %2234 = vmatpush1.bf16.msra.mxu0 0
      %2235 = vmatprep.subr.bf16.mxu0 0
      %2236 = vmatpush1.bf16.msra.mxu0 0
      %2237 = vmatprep.subr.bf16.mxu0 0
      %2238 = vmatpush1.bf16.msra.mxu0 0
      %2239 = vmatprep.subr.bf16.mxu0 0
      %2240 = vmatpush1.bf16.msra.mxu0 0
      %2241 = vmatprep.subr.bf16.mxu0 0
      %2242 = vmatpush1.bf16.msra.mxu0 0
      %2243 = vmatprep.subr.bf16.mxu0 0
      %2244 = vmatpush1.bf16.msra.mxu0 0
      %2245 = vmatprep.subr.bf16.mxu0 0
      %2246 = vmatpush1.bf16.msra.mxu0 0
      %2247 = vmatprep.subr.bf16.mxu0 0
      %2248 = vmatpush1.bf16.msra.mxu0 0
      %2249 = vmatprep.subr.bf16.mxu0 0
      %2250 = vmatpush1.bf16.msra.mxu0 0
      %2251 = vmatprep.subr.bf16.mxu0 0
      %2252 = vmatpush1.bf16.msra.mxu0 0
      %2253 = vmatprep.mubr.bf16.mxu0 0
      %2254 = vmatmul.mubr.bf16.gmra.mrb[0].mxu0 %v2216
      %v2255 = vpop.f32.mrb[0].mxu0
      %v2256 = vadd.f32 0.0, %v2255
      %v2257 = vpop.f32.mrb[0].mxu0
      %v2258 = vpop.f32.mrb[0].mxu0
      %v2259 = vpop.f32.mrb[0].mxu0
      %2260 = vdwg.mxu0
      %v2262 = vsel %vm1821, %v2003, 0
      %v2265 = vsel %vm2033, %v2019, 0
      %2267 = vmatprep.subr.bf16.mxu0 0
      %2268 = vmatpush1.bf16.msra.mxu0 %v2265
      %2269 = vmatprep.subr.bf16.mxu0 0
      %2270 = vmatpush1.bf16.msra.mxu0 0
      %2271 = vmatprep.subr.bf16.mxu0 0
      %2272 = vmatpush1.bf16.msra.mxu0 0
      %2273 = vmatprep.subr.bf16.mxu0 0
      %2274 = vmatpush1.bf16.msra.mxu0 0
      %2275 = vmatprep.subr.bf16.mxu0 0
      %2276 = vmatpush1.bf16.msra.mxu0 0
      %2277 = vmatprep.subr.bf16.mxu0 0
      %2278 = vmatpush1.bf16.msra.mxu0 0
      %2279 = vmatprep.subr.bf16.mxu0 0
      %2280 = vmatpush1.bf16.msra.mxu0 0
      %2281 = vmatprep.subr.bf16.mxu0 0
      %2282 = vmatpush1.bf16.msra.mxu0 0
      %2283 = vmatprep.subr.bf16.mxu0 0
      %2284 = vmatpush1.bf16.msra.mxu0 0
      %2285 = vmatprep.subr.bf16.mxu0 0
      %2286 = vmatpush1.bf16.msra.mxu0 0
      %2287 = vmatprep.subr.bf16.mxu0 0
      %2288 = vmatpush1.bf16.msra.mxu0 0
      %2289 = vmatprep.subr.bf16.mxu0 0
      %2290 = vmatpush1.bf16.msra.mxu0 0
      %2291 = vmatprep.subr.bf16.mxu0 0
      %2292 = vmatpush1.bf16.msra.mxu0 0
      %2293 = vmatprep.subr.bf16.mxu0 0
      %2294 = vmatpush1.bf16.msra.mxu0 0
      %2295 = vmatprep.subr.bf16.mxu0 0
      %2296 = vmatpush1.bf16.msra.mxu0 0
      %2297 = vmatprep.subr.bf16.mxu0 0
      %2298 = vmatpush1.bf16.msra.mxu0 0
      %2299 = vmatprep.mubr.bf16.mxu0 0
      %2300 = vmatmul.mubr.bf16.gmra.mrb[0].mxu0 %v2262
      %v2301 = vpop.f32.mrb[0].mxu0
      %v2302 = vadd.f32 0.0, %v2301
      %v2303 = vpop.f32.mrb[0].mxu0
      %v2304 = vpop.f32.mrb[0].mxu0
      %v2305 = vpop.f32.mrb[0].mxu0
      %2306 = vdwg.mxu0
      %v2308 = vsel %vm1821, %v2004, 0
      %v2311 = vsel %vm2033, %v2020, 0
      %2313 = vmatprep.subr.bf16.mxu0 0
      %2314 = vmatpush1.bf16.msra.mxu0 %v2311
      %2315 = vmatprep.subr.bf16.mxu0 0
      %2316 = vmatpush1.bf16.msra.mxu0 0
      %2317 = vmatprep.subr.bf16.mxu0 0
      %2318 = vmatpush1.bf16.msra.mxu0 0
      %2319 = vmatprep.subr.bf16.mxu0 0
      %2320 = vmatpush1.bf16.msra.mxu0 0
      %2321 = vmatprep.subr.bf16.mxu0 0
      %2322 = vmatpush1.bf16.msra.mxu0 0
      %2323 = vmatprep.subr.bf16.mxu0 0
      %2324 = vmatpush1.bf16.msra.mxu0 0
      %2325 = vmatprep.subr.bf16.mxu0 0
      %2326 = vmatpush1.bf16.msra.mxu0 0
      %2327 = vmatprep.subr.bf16.mxu0 0
      %2328 = vmatpush1.bf16.msra.mxu0 0
      %2329 = vmatprep.subr.bf16.mxu0 0
      %2330 = vmatpush1.bf16.msra.mxu0 0
      %2331 = vmatprep.subr.bf16.mxu0 0
      %2332 = vmatpush1.bf16.msra.mxu0 0
      %2333 = vmatprep.subr.bf16.mxu0 0
      %2334 = vmatpush1.bf16.msra.mxu0 0
      %2335 = vmatprep.subr.bf16.mxu0 0
      %2336 = vmatpush1.bf16.msra.mxu0 0
      %2337 = vmatprep.subr.bf16.mxu0 0
      %2338 = vmatpush1.bf16.msra.mxu0 0
      %2339 = vmatprep.subr.bf16.mxu0 0
      %2340 = vmatpush1.bf16.msra.mxu0 0
      %2341 = vmatprep.subr.bf16.mxu0 0
      %2342 = vmatpush1.bf16.msra.mxu0 0
      %2343 = vmatprep.subr.bf16.mxu0 0
      %2344 = vmatpush1.bf16.msra.mxu0 0
      %2345 = vmatprep.mubr.bf16.mxu0 0
      %2346 = vmatmul.mubr.bf16.gmra.mrb[0].mxu0 %v2308
      %v2347 = vpop.f32.mrb[0].mxu0
      %v2348 = vadd.f32 0.0, %v2347
      %v2349 = vpop.f32.mrb[0].mxu0
      %v2350 = vpop.f32.mrb[0].mxu0
      %v2351 = vpop.f32.mrb[0].mxu0
      %2352 = vdwg.mxu0
      %v2354 = vsel %vm1821, %v2005, 0
      %v2357 = vsel %vm2033, %v2021, 0
      %2359 = vmatprep.subr.bf16.mxu0 0
      %2360 = vmatpush1.bf16.msra.mxu0 %v2357
      %2361 = vmatprep.subr.bf16.mxu0 0
      %2362 = vmatpush1.bf16.msra.mxu0 0
      %2363 = vmatprep.subr.bf16.mxu0 0
      %2364 = vmatpush1.bf16.msra.mxu0 0
      %2365 = vmatprep.subr.bf16.mxu0 0
      %2366 = vmatpush1.bf16.msra.mxu0 0
      %2367 = vmatprep.subr.bf16.mxu0 0
      %2368 = vmatpush1.bf16.msra.mxu0 0
      %2369 = vmatprep.subr.bf16.mxu0 0
      %2370 = vmatpush1.bf16.msra.mxu0 0
      %2371 = vmatprep.subr.bf16.mxu0 0
      %2372 = vmatpush1.bf16.msra.mxu0 0
      %2373 = vmatprep.subr.bf16.mxu0 0
      %2374 = vmatpush1.bf16.msra.mxu0 0
      %2375 = vmatprep.subr.bf16.mxu0 0
      %2376 = vmatpush1.bf16.msra.mxu0 0
      %2377 = vmatprep.subr.bf16.mxu0 0
      %2378 = vmatpush1.bf16.msra.mxu0 0
      %2379 = vmatprep.subr.bf16.mxu0 0
      %2380 = vmatpush1.bf16.msra.mxu0 0
      %2381 = vmatprep.subr.bf16.mxu0 0
      %2382 = vmatpush1.bf16.msra.mxu0 0
      %2383 = vmatprep.subr.bf16.mxu0 0
      %2384 = vmatpush1.bf16.msra.mxu0 0
      %2385 = vmatprep.subr.bf16.mxu0 0
      %2386 = vmatpush1.bf16.msra.mxu0 0
      %2387 = vmatprep.subr.bf16.mxu0 0
      %2388 = vmatpush1.bf16.msra.mxu0 0
      %2389 = vmatprep.subr.bf16.mxu0 0
      %2390 = vmatpush1.bf16.msra.mxu0 0
      %2391 = vmatprep.mubr.bf16.mxu0 0
      %2392 = vmatmul.mubr.bf16.gmra.mrb[0].mxu0 %v2354
      %v2393 = vpop.f32.mrb[0].mxu0
      %v2394 = vadd.f32 0.0, %v2393
      %v2395 = vpop.f32.mrb[0].mxu0
      %v2396 = vpop.f32.mrb[0].mxu0
      %v2397 = vpop.f32.mrb[0].mxu0
      %2398 = vdwg.mxu0
      %v2400 = vsel %vm1821, %v2006, 0
      %v2403 = vsel %vm2033, %v2022, 0
      %2405 = vmatprep.subr.bf16.mxu0 0
      %2406 = vmatpush1.bf16.msra.mxu0 %v2403
      %2407 = vmatprep.subr.bf16.mxu0 0
      %2408 = vmatpush1.bf16.msra.mxu0 0
      %2409 = vmatprep.subr.bf16.mxu0 0
      %2410 = vmatpush1.bf16.msra.mxu0 0
      %2411 = vmatprep.subr.bf16.mxu0 0
      %2412 = vmatpush1.bf16.msra.mxu0 0
      %2413 = vmatprep.subr.bf16.mxu0 0
      %2414 = vmatpush1.bf16.msra.mxu0 0
      %2415 = vmatprep.subr.bf16.mxu0 0
      %2416 = vmatpush1.bf16.msra.mxu0 0
      %2417 = vmatprep.subr.bf16.mxu0 0
      %2418 = vmatpush1.bf16.msra.mxu0 0
      %2419 = vmatprep.subr.bf16.mxu0 0
      %2420 = vmatpush1.bf16.msra.mxu0 0
      %2421 = vmatprep.subr.bf16.mxu0 0
      %2422 = vmatpush1.bf16.msra.mxu0 0
      %2423 = vmatprep.subr.bf16.mxu0 0
      %2424 = vmatpush1.bf16.msra.mxu0 0
      %2425 = vmatprep.subr.bf16.mxu0 0
      %2426 = vmatpush1.bf16.msra.mxu0 0
      %2427 = vmatprep.subr.bf16.mxu0 0
      %2428 = vmatpush1.bf16.msra.mxu0 0
      %2429 = vmatprep.subr.bf16.mxu0 0
      %2430 = vmatpush1.bf16.msra.mxu0 0
      %2431 = vmatprep.subr.bf16.mxu0 0
      %2432 = vmatpush1.bf16.msra.mxu0 0
      %2433 = vmatprep.subr.bf16.mxu0 0
      %2434 = vmatpush1.bf16.msra.mxu0 0
      %2435 = vmatprep.subr.bf16.mxu0 0
      %2436 = vmatpush1.bf16.msra.mxu0 0
      %2437 = vmatprep.mubr.bf16.mxu0 0
      %2438 = vmatmul.mubr.bf16.gmra.mrb[0].mxu0 %v2400
      %v2439 = vpop.f32.mrb[0].mxu0
      %v2440 = vadd.f32 0.0, %v2439
      %v2441 = vpop.f32.mrb[0].mxu0
      %v2442 = vpop.f32.mrb[0].mxu0
      %v2443 = vpop.f32.mrb[0].mxu0
      %2444 = vdwg.mxu0
      %v2446 = vsel %vm1821, %v2007, 0
      %v2449 = vsel %vm2033, %v2023, 0
      %2451 = vmatprep.subr.bf16.mxu0 0
      %2452 = vmatpush1.bf16.msra.mxu0 %v2449
      %2453 = vmatprep.subr.bf16.mxu0 0
      %2454 = vmatpush1.bf16.msra.mxu0 0
      %2455 = vmatprep.subr.bf16.mxu0 0
      %2456 = vmatpush1.bf16.msra.mxu0 0
      %2457 = vmatprep.subr.bf16.mxu0 0
      %2458 = vmatpush1.bf16.msra.mxu0 0
      %2459 = vmatprep.subr.bf16.mxu0 0
      %2460 = vmatpush1.bf16.msra.mxu0 0
      %2461 = vmatprep.subr.bf16.mxu0 0
      %2462 = vmatpush1.bf16.msra.mxu0 0
      %2463 = vmatprep.subr.bf16.mxu0 0
      %2464 = vmatpush1.bf16.msra.mxu0 0
      %2465 = vmatprep.subr.bf16.mxu0 0
      %2466 = vmatpush1.bf16.msra.mxu0 0
      %2467 = vmatprep.subr.bf16.mxu0 0
      %2468 = vmatpush1.bf16.msra.mxu0 0
      %2469 = vmatprep.subr.bf16.mxu0 0
      %2470 = vmatpush1.bf16.msra.mxu0 0
      %2471 = vmatprep.subr.bf16.mxu0 0
      %2472 = vmatpush1.bf16.msra.mxu0 0
      %2473 = vmatprep.subr.bf16.mxu0 0
      %2474 = vmatpush1.bf16.msra.mxu0 0
      %2475 = vmatprep.subr.bf16.mxu0 0
      %2476 = vmatpush1.bf16.msra.mxu0 0
      %2477 = vmatprep.subr.bf16.mxu0 0
      %2478 = vmatpush1.bf16.msra.mxu0 0
      %2479 = vmatprep.subr.bf16.mxu0 0
      %2480 = vmatpush1.bf16.msra.mxu0 0
      %2481 = vmatprep.subr.bf16.mxu0 0
      %2482 = vmatpush1.bf16.msra.mxu0 0
      %2483 = vmatprep.mubr.bf16.mxu0 0
      %2484 = vmatmul.mubr.bf16.gmra.mrb[0].mxu0 %v2446
      %v2485 = vpop.f32.mrb[0].mxu0
      %v2486 = vadd.f32 0.0, %v2485
      %v2487 = vpop.f32.mrb[0].mxu0
      %v2488 = vpop.f32.mrb[0].mxu0
      %v2489 = vpop.f32.mrb[0].mxu0
      %2490 = vdwg.mxu0
      %v2492 = vsel %vm1821, %v2008, 0
      %v2495 = vsel %vm2033, %v2024, 0
      %2497 = vmatprep.subr.bf16.mxu0 0
      %2498 = vmatpush1.bf16.msra.mxu0 %v2495
      %2499 = vmatprep.subr.bf16.mxu0 0
      %2500 = vmatpush1.bf16.msra.mxu0 0
      %2501 = vmatprep.subr.bf16.mxu0 0
      %2502 = vmatpush1.bf16.msra.mxu0 0
      %2503 = vmatprep.subr.bf16.mxu0 0
      %2504 = vmatpush1.bf16.msra.mxu0 0
      %2505 = vmatprep.subr.bf16.mxu0 0
      %2506 = vmatpush1.bf16.msra.mxu0 0
      %2507 = vmatprep.subr.bf16.mxu0 0
      %2508 = vmatpush1.bf16.msra.mxu0 0
      %2509 = vmatprep.subr.bf16.mxu0 0
      %2510 = vmatpush1.bf16.msra.mxu0 0
      %2511 = vmatprep.subr.bf16.mxu0 0
      %2512 = vmatpush1.bf16.msra.mxu0 0
      %2513 = vmatprep.subr.bf16.mxu0 0
      %2514 = vmatpush1.bf16.msra.mxu0 0
      %2515 = vmatprep.subr.bf16.mxu0 0
      %2516 = vmatpush1.bf16.msra.mxu0 0
      %2517 = vmatprep.subr.bf16.mxu0 0
      %2518 = vmatpush1.bf16.msra.mxu0 0
      %2519 = vmatprep.subr.bf16.mxu0 0
      %2520 = vmatpush1.bf16.msra.mxu0 0
      %2521 = vmatprep.subr.bf16.mxu0 0
      %2522 = vmatpush1.bf16.msra.mxu0 0
      %2523 = vmatprep.subr.bf16.mxu0 0
      %2524 = vmatpush1.bf16.msra.mxu0 0
      %2525 = vmatprep.subr.bf16.mxu0 0
      %2526 = vmatpush1.bf16.msra.mxu0 0
      %2527 = vmatprep.subr.bf16.mxu0 0
      %2528 = vmatpush1.bf16.msra.mxu0 0
      %2529 = vmatprep.mubr.bf16.mxu0 0
      %2530 = vmatmul.mubr.bf16.gmra.mrb[0].mxu0 %v2492
      %v2531 = vpop.f32.mrb[0].mxu0
      %v2532 = vadd.f32 0.0, %v2531
      %v2533 = vpop.f32.mrb[0].mxu0
      %v2534 = vpop.f32.mrb[0].mxu0
      %v2535 = vpop.f32.mrb[0].mxu0
      %2536 = vdwg.mxu0
      %v2538 = vsel %vm1821, %v2009, 0
      %v2541 = vsel %vm2033, %v2025, 0
      %2543 = vmatprep.subr.bf16.mxu0 0
      %2544 = vmatpush1.bf16.msra.mxu0 %v2541
      %2545 = vmatprep.subr.bf16.mxu0 0
      %2546 = vmatpush1.bf16.msra.mxu0 0
      %2547 = vmatprep.subr.bf16.mxu0 0
      %2548 = vmatpush1.bf16.msra.mxu0 0
      %2549 = vmatprep.subr.bf16.mxu0 0
      %2550 = vmatpush1.bf16.msra.mxu0 0
      %2551 = vmatprep.subr.bf16.mxu0 0
      %2552 = vmatpush1.bf16.msra.mxu0 0
      %2553 = vmatprep.subr.bf16.mxu0 0
      %2554 = vmatpush1.bf16.msra.mxu0 0
      %2555 = vmatprep.subr.bf16.mxu0 0
      %2556 = vmatpush1.bf16.msra.mxu0 0
      %2557 = vmatprep.subr.bf16.mxu0 0
      %2558 = vmatpush1.bf16.msra.mxu0 0
      %2559 = vmatprep.subr.bf16.mxu0 0
      %2560 = vmatpush1.bf16.msra.mxu0 0
      %2561 = vmatprep.subr.bf16.mxu0 0
      %2562 = vmatpush1.bf16.msra.mxu0 0
      %2563 = vmatprep.subr.bf16.mxu0 0
      %2564 = vmatpush1.bf16.msra.mxu0 0
      %2565 = vmatprep.subr.bf16.mxu0 0
      %2566 = vmatpush1.bf16.msra.mxu0 0
      %2567 = vmatprep.subr.bf16.mxu0 0
      %2568 = vmatpush1.bf16.msra.mxu0 0
      %2569 = vmatprep.subr.bf16.mxu0 0
      %2570 = vmatpush1.bf16.msra.mxu0 0
      %2571 = vmatprep.subr.bf16.mxu0 0
      %2572 = vmatpush1.bf16.msra.mxu0 0
      %2573 = vmatprep.subr.bf16.mxu0 0
      %2574 = vmatpush1.bf16.msra.mxu0 0
      %2575 = vmatprep.mubr.bf16.mxu0 0
      %2576 = vmatmul.mubr.bf16.gmra.mrb[0].mxu0 %v2538
      %v2577 = vpop.f32.mrb[0].mxu0
      %v2578 = vadd.f32 0.0, %v2577
      %v2579 = vpop.f32.mrb[0].mxu0
      %v2580 = vpop.f32.mrb[0].mxu0
      %v2581 = vpop.f32.mrb[0].mxu0
      %2582 = vdwg.mxu0
      %v2584 = vsel %vm1821, %v2010, 0
      %v2587 = vsel %vm2033, %v2026, 0
      %2589 = vmatprep.subr.bf16.mxu0 0
      %2590 = vmatpush1.bf16.msra.mxu0 %v2587
      %2591 = vmatprep.subr.bf16.mxu0 0
      %2592 = vmatpush1.bf16.msra.mxu0 0
      %2593 = vmatprep.subr.bf16.mxu0 0
      %2594 = vmatpush1.bf16.msra.mxu0 0
      %2595 = vmatprep.subr.bf16.mxu0 0
      %2596 = vmatpush1.bf16.msra.mxu0 0
      %2597 = vmatprep.subr.bf16.mxu0 0
      %2598 = vmatpush1.bf16.msra.mxu0 0
      %2599 = vmatprep.subr.bf16.mxu0 0
      %2600 = vmatpush1.bf16.msra.mxu0 0
      %2601 = vmatprep.subr.bf16.mxu0 0
      %2602 = vmatpush1.bf16.msra.mxu0 0
      %2603 = vmatprep.subr.bf16.mxu0 0
      %2604 = vmatpush1.bf16.msra.mxu0 0
      %2605 = vmatprep.subr.bf16.mxu0 0
      %2606 = vmatpush1.bf16.msra.mxu0 0
      %2607 = vmatprep.subr.bf16.mxu0 0
      %2608 = vmatpush1.bf16.msra.mxu0 0
      %2609 = vmatprep.subr.bf16.mxu0 0
      %2610 = vmatpush1.bf16.msra.mxu0 0
      %2611 = vmatprep.subr.bf16.mxu0 0
      %2612 = vmatpush1.bf16.msra.mxu0 0
      %2613 = vmatprep.subr.bf16.mxu0 0
      %2614 = vmatpush1.bf16.msra.mxu0 0
      %2615 = vmatprep.subr.bf16.mxu0 0
      %2616 = vmatpush1.bf16.msra.mxu0 0
      %2617 = vmatprep.subr.bf16.mxu0 0
      %2618 = vmatpush1.bf16.msra.mxu0 0
      %2619 = vmatprep.subr.bf16.mxu0 0
      %2620 = vmatpush1.bf16.msra.mxu0 0
      %2621 = vmatprep.mubr.bf16.mxu0 0
      %2622 = vmatmul.mubr.bf16.gmra.mrb[0].mxu0 %v2584
      %v2623 = vpop.f32.mrb[0].mxu0
      %v2624 = vadd.f32 0.0, %v2623
      %v2625 = vpop.f32.mrb[0].mxu0
      %v2626 = vpop.f32.mrb[0].mxu0
      %v2627 = vpop.f32.mrb[0].mxu0
      %2628 = vdwg.mxu0
      %v2630 = vsel %vm1821, %v2011, 0
      %v2633 = vsel %vm2033, %v2027, 0
      %2635 = vmatprep.subr.bf16.mxu0 0
      %2636 = vmatpush1.bf16.msra.mxu0 %v2633
      %2637 = vmatprep.subr.bf16.mxu0 0
      %2638 = vmatpush1.bf16.msra.mxu0 0
      %2639 = vmatprep.subr.bf16.mxu0 0
      %2640 = vmatpush1.bf16.msra.mxu0 0
      %2641 = vmatprep.subr.bf16.mxu0 0
      %2642 = vmatpush1.bf16.msra.mxu0 0
      %2643 = vmatprep.subr.bf16.mxu0 0
      %2644 = vmatpush1.bf16.msra.mxu0 0
      %2645 = vmatprep.subr.bf16.mxu0 0
      %2646 = vmatpush1.bf16.msra.mxu0 0
      %2647 = vmatprep.subr.bf16.mxu0 0
      %2648 = vmatpush1.bf16.msra.mxu0 0
      %2649 = vmatprep.subr.bf16.mxu0 0
      %2650 = vmatpush1.bf16.msra.mxu0 0
      %2651 = vmatprep.subr.bf16.mxu0 0
      %2652 = vmatpush1.bf16.msra.mxu0 0
      %2653 = vmatprep.subr.bf16.mxu0 0
      %2654 = vmatpush1.bf16.msra.mxu0 0
      %2655 = vmatprep.subr.bf16.mxu0 0
      %2656 = vmatpush1.bf16.msra.mxu0 0
      %2657 = vmatprep.subr.bf16.mxu0 0
      %2658 = vmatpush1.bf16.msra.mxu0 0
      %2659 = vmatprep.subr.bf16.mxu0 0
      %2660 = vmatpush1.bf16.msra.mxu0 0
      %2661 = vmatprep.subr.bf16.mxu0 0
      %2662 = vmatpush1.bf16.msra.mxu0 0
      %2663 = vmatprep.subr.bf16.mxu0 0
      %2664 = vmatpush1.bf16.msra.mxu0 0
      %2665 = vmatprep.subr.bf16.mxu0 0
      %2666 = vmatpush1.bf16.msra.mxu0 0
      %2667 = vmatprep.mubr.bf16.mxu0 0
      %2668 = vmatmul.mubr.bf16.gmra.mrb[0].mxu0 %v2630
      %v2669 = vpop.f32.mrb[0].mxu0
      %v2670 = vadd.f32 0.0, %v2669
      %v2671 = vpop.f32.mrb[0].mxu0
      %v2672 = vpop.f32.mrb[0].mxu0
      %v2673 = vpop.f32.mrb[0].mxu0
      %2674 = vdwg.mxu0
      %v2676 = vsel %vm1821, %v2012, 0
      %v2679 = vsel %vm2033, %v2028, 0
      %2681 = vmatprep.subr.bf16.mxu0 0
      %2682 = vmatpush1.bf16.msra.mxu0 %v2679
      %2683 = vmatprep.subr.bf16.mxu0 0
      %2684 = vmatpush1.bf16.msra.mxu0 0
      %2685 = vmatprep.subr.bf16.mxu0 0
      %2686 = vmatpush1.bf16.msra.mxu0 0
      %2687 = vmatprep.subr.bf16.mxu0 0
      %2688 = vmatpush1.bf16.msra.mxu0 0
      %2689 = vmatprep.subr.bf16.mxu0 0
      %2690 = vmatpush1.bf16.msra.mxu0 0
      %2691 = vmatprep.subr.bf16.mxu0 0
      %2692 = vmatpush1.bf16.msra.mxu0 0
      %2693 = vmatprep.subr.bf16.mxu0 0
      %2694 = vmatpush1.bf16.msra.mxu0 0
      %2695 = vmatprep.subr.bf16.mxu0 0
      %2696 = vmatpush1.bf16.msra.mxu0 0
      %2697 = vmatprep.subr.bf16.mxu0 0
      %2698 = vmatpush1.bf16.msra.mxu0 0
      %2699 = vmatprep.subr.bf16.mxu0 0
      %2700 = vmatpush1.bf16.msra.mxu0 0
      %2701 = vmatprep.subr.bf16.mxu0 0
      %2702 = vmatpush1.bf16.msra.mxu0 0
      %2703 = vmatprep.subr.bf16.mxu0 0
      %2704 = vmatpush1.bf16.msra.mxu0 0
      %2705 = vmatprep.subr.bf16.mxu0 0
      %2706 = vmatpush1.bf16.msra.mxu0 0
      %2707 = vmatprep.subr.bf16.mxu0 0
      %2708 = vmatpush1.bf16.msra.mxu0 0
      %2709 = vmatprep.subr.bf16.mxu0 0
      %2710 = vmatpush1.bf16.msra.mxu0 0
      %2711 = vmatprep.subr.bf16.mxu0 0
      %2712 = vmatpush1.bf16.msra.mxu0 0
      %2713 = vmatprep.mubr.bf16.mxu0 0
      %2714 = vmatmul.mubr.bf16.gmra.mrb[0].mxu0 %v2676
      %v2715 = vpop.f32.mrb[0].mxu0
      %v2716 = vadd.f32 0.0, %v2715
      %v2717 = vpop.f32.mrb[0].mxu0
      %v2718 = vpop.f32.mrb[0].mxu0
      %v2719 = vpop.f32.mrb[0].mxu0
      %2720 = vdwg.mxu0
      %v2722 = vsel %vm1821, %v2013, 0
      %v2725 = vsel %vm2033, %v2029, 0
      %2727 = vmatprep.subr.bf16.mxu0 0
      %2728 = vmatpush1.bf16.msra.mxu0 %v2725
      %2729 = vmatprep.subr.bf16.mxu0 0
      %2730 = vmatpush1.bf16.msra.mxu0 0
      %2731 = vmatprep.subr.bf16.mxu0 0
      %2732 = vmatpush1.bf16.msra.mxu0 0
      %2733 = vmatprep.subr.bf16.mxu0 0
      %2734 = vmatpush1.bf16.msra.mxu0 0
      %2735 = vmatprep.subr.bf16.mxu0 0
      %2736 = vmatpush1.bf16.msra.mxu0 0
      %2737 = vmatprep.subr.bf16.mxu0 0
      %2738 = vmatpush1.bf16.msra.mxu0 0
      %2739 = vmatprep.subr.bf16.mxu0 0
      %2740 = vmatpush1.bf16.msra.mxu0 0
      %2741 = vmatprep.subr.bf16.mxu0 0
      %2742 = vmatpush1.bf16.msra.mxu0 0
      %2743 = vmatprep.subr.bf16.mxu0 0
      %2744 = vmatpush1.bf16.msra.mxu0 0
      %2745 = vmatprep.subr.bf16.mxu0 0
      %2746 = vmatpush1.bf16.msra.mxu0 0
      %2747 = vmatprep.subr.bf16.mxu0 0
      %2748 = vmatpush1.bf16.msra.mxu0 0
      %2749 = vmatprep.subr.bf16.mxu0 0
      %2750 = vmatpush1.bf16.msra.mxu0 0
      %2751 = vmatprep.subr.bf16.mxu0 0
      %2752 = vmatpush1.bf16.msra.mxu0 0
      %2753 = vmatprep.subr.bf16.mxu0 0
      %2754 = vmatpush1.bf16.msra.mxu0 0
      %2755 = vmatprep.subr.bf16.mxu0 0
      %2756 = vmatpush1.bf16.msra.mxu0 0
      %2757 = vmatprep.subr.bf16.mxu0 0
      %2758 = vmatpush1.bf16.msra.mxu0 0
      %2759 = vmatprep.mubr.bf16.mxu0 0
      %2760 = vmatmul.mubr.bf16.gmra.mrb[0].mxu0 %v2722
      %v2761 = vpop.f32.mrb[0].mxu0
      %v2762 = vadd.f32 0.0, %v2761
      %v2763 = vpop.f32.mrb[0].mxu0
      %v2764 = vpop.f32.mrb[0].mxu0
      %v2765 = vpop.f32.mrb[0].mxu0
      %2766 = vdwg.mxu0
      %v2767 = vpack.c.bf16 %v2118, %v2072
      %v2768 = vpack.c.bf16 %v2210, %v2164
      %v2769 = vpack.c.bf16 %v2302, %v2256
      %v2770 = vpack.c.bf16 %v2394, %v2348
      %v2771 = vpack.c.bf16 %v2486, %v2440
      %v2772 = vpack.c.bf16 %v2578, %v2532
      %v2773 = vpack.c.bf16 %v2670, %v2624
      %v2774 = vpack.c.bf16 %v2762, %v2716
      %v2775 = vld [vmem:[%s5] sm:$0xf]
      %v2776 = vld [vmem:[%s5 + $0x4] sm:$0xf]
      %v2777 = vld [vmem:[%s5 + $0x8] sm:$0xf]
      %v2778 = vld [vmem:[%s5 + $0xc] sm:$0xf]
      %v2779 = vld [vmem:[%s5 + $0x10] sm:$0xf]
      %v2780 = vld [vmem:[%s5 + $0x14] sm:$0xf]
      %v2781 = vld [vmem:[%s5 + $0x18] sm:$0xf]
      %v2782 = vld [vmem:[%s5 + $0x1c] sm:$0xf]
      %v2783 = vld [vmem:[%s5 + $0x20] sm:$0xf]
      %v2784 = vld [vmem:[%s5 + $0x24] sm:$0xf]
      %v2785 = vld [vmem:[%s5 + $0x28] sm:$0xf]
      %v2786 = vld [vmem:[%s5 + $0x2c] sm:$0xf]
      %v2787 = vld [vmem:[%s5 + $0x30] sm:$0xf]
      %v2788 = vld [vmem:[%s5 + $0x34] sm:$0xf]
      %v2789 = vld [vmem:[%s5 + $0x38] sm:$0xf]
      %v2790 = vld [vmem:[%s5 + $0x3c] sm:$0xf]
      %v2807 = vunpack.c.l.b16 %v2775
      %v2808 = vunpack.c.l.b16 %v2776
      %v2809 = vunpack.c.l.b16 %v2777
      %v2810 = vunpack.c.l.b16 %v2778
      %v2811 = vunpack.c.l.b16 %v2779
      %v2812 = vunpack.c.l.b16 %v2780
      %v2813 = vunpack.c.l.b16 %v2781
      %v2814 = vunpack.c.l.b16 %v2782
      %v2815 = vunpack.c.l.b16 %v2783
      %v2816 = vunpack.c.l.b16 %v2784
      %v2817 = vunpack.c.l.b16 %v2785
      %v2818 = vunpack.c.l.b16 %v2786
      %v2819 = vunpack.c.l.b16 %v2787
      %v2820 = vunpack.c.l.b16 %v2788
      %v2821 = vunpack.c.l.b16 %v2789
      %v2822 = vunpack.c.l.b16 %v2790
      %v2823 = vpack.c.b16 %v2808, %v2807
      %v2824 = vpack.c.b16 %v2810, %v2809
      %v2825 = vpack.c.b16 %v2812, %v2811
      %v2826 = vpack.c.b16 %v2814, %v2813
      %v2827 = vpack.c.b16 %v2816, %v2815
      %v2828 = vpack.c.b16 %v2818, %v2817
      %v2829 = vpack.c.b16 %v2820, %v2819
      %v2830 = vpack.c.b16 %v2822, %v2821
      %2839 = vmatprep.subr.bf16.mxu0 0
      %2840 = vmatpush1.bf16.msra.mxu0 %v2823
      %2841 = vmatprep.subr.bf16.mxu0 0
      %2842 = vmatpush1.bf16.msra.mxu0 %v2824
      %2843 = vmatprep.subr.bf16.mxu0 0
      %2844 = vmatpush1.bf16.msra.mxu0 %v2825
      %2845 = vmatprep.subr.bf16.mxu0 0
      %2846 = vmatpush1.bf16.msra.mxu0 %v2826
      %2847 = vmatprep.subr.bf16.mxu0 0
      %2848 = vmatpush1.bf16.msra.mxu0 %v2827
      %2849 = vmatprep.subr.bf16.mxu0 0
      %2850 = vmatpush1.bf16.msra.mxu0 %v2828
      %2851 = vmatprep.subr.bf16.mxu0 0
      %2852 = vmatpush1.bf16.msra.mxu0 %v2829
      %2853 = vmatprep.subr.bf16.mxu0 0
      %2854 = vmatpush1.bf16.msra.mxu0 %v2830
      %2855 = vmatprep.subr.bf16.mxu0 0
      %2856 = vmatpush1.bf16.msra.mxu0 0
      %2857 = vmatprep.subr.bf16.mxu0 0
      %2858 = vmatpush1.bf16.msra.mxu0 0
      %2859 = vmatprep.subr.bf16.mxu0 0
      %2860 = vmatpush1.bf16.msra.mxu0 0
      %2861 = vmatprep.subr.bf16.mxu0 0
      %2862 = vmatpush1.bf16.msra.mxu0 0
      %2863 = vmatprep.subr.bf16.mxu0 0
      %2864 = vmatpush1.bf16.msra.mxu0 0
      %2865 = vmatprep.subr.bf16.mxu0 0
      %2866 = vmatpush1.bf16.msra.mxu0 0
      %2867 = vmatprep.subr.bf16.mxu0 0
      %2868 = vmatpush1.bf16.msra.mxu0 0
      %2869 = vmatprep.subr.bf16.mxu0 0
      %2870 = vmatpush1.bf16.msra.mxu0 0
      %2871 = vmatprep.mubr.bf16.mxu0 0
      %2872 = vmatmul.mubr.bf16.gmra.mrb[0].mxu0 %v2767
      %v2873 = vpop.f32.mrb[0].mxu0
      %v2874 = vadd.f32 0.0, %v2873
      %v2875 = vpop.f32.mrb[0].mxu0
      %v2876 = vpop.f32.mrb[0].mxu0
      %v2877 = vadd.f32 0.0, %v2876
      %v2878 = vpop.f32.mrb[0].mxu0
      %2879 = vmatprep.mubr.bf16.mxu0 0
      %2880 = vmatmul.mubr.bf16.gmra.mrb[0].mxu0 %v2768
      %v2881 = vpop.f32.mrb[0].mxu0
      %v2882 = vadd.f32 0.0, %v2881
      %v2883 = vpop.f32.mrb[0].mxu0
      %v2884 = vpop.f32.mrb[0].mxu0
      %v2885 = vadd.f32 0.0, %v2884
      %v2886 = vpop.f32.mrb[0].mxu0
      %2887 = vmatprep.mubr.bf16.mxu0 0
      %2888 = vmatmul.mubr.bf16.gmra.mrb[0].mxu0 %v2769
      %v2889 = vpop.f32.mrb[0].mxu0
      %v2890 = vadd.f32 0.0, %v2889
      %v2891 = vpop.f32.mrb[0].mxu0
      %v2892 = vpop.f32.mrb[0].mxu0
      %v2893 = vadd.f32 0.0, %v2892
      %v2894 = vpop.f32.mrb[0].mxu0
      %2895 = vmatprep.mubr.bf16.mxu0 0
      %2896 = vmatmul.mubr.bf16.gmra.mrb[0].mxu0 %v2770
      %v2897 = vpop.f32.mrb[0].mxu0
      %v2898 = vadd.f32 0.0, %v2897
      %v2899 = vpop.f32.mrb[0].mxu0
      %v2900 = vpop.f32.mrb[0].mxu0
      %v2901 = vadd.f32 0.0, %v2900
      %v2902 = vpop.f32.mrb[0].mxu0
      %2903 = vmatprep.mubr.bf16.mxu0 0
      %2904 = vmatmul.mubr.bf16.gmra.mrb[0].mxu0 %v2771
      %v2905 = vpop.f32.mrb[0].mxu0
      %v2906 = vadd.f32 0.0, %v2905
      %v2907 = vpop.f32.mrb[0].mxu0
      %v2908 = vpop.f32.mrb[0].mxu0
      %v2909 = vadd.f32 0.0, %v2908
      %v2910 = vpop.f32.mrb[0].mxu0
      %2911 = vmatprep.mubr.bf16.mxu0 0
      %2912 = vmatmul.mubr.bf16.gmra.mrb[0].mxu0 %v2772
      %v2913 = vpop.f32.mrb[0].mxu0
      %v2914 = vadd.f32 0.0, %v2913
      %v2915 = vpop.f32.mrb[0].mxu0
      %v2916 = vpop.f32.mrb[0].mxu0
      %v2917 = vadd.f32 0.0, %v2916
      %v2918 = vpop.f32.mrb[0].mxu0
      %2919 = vmatprep.mubr.bf16.mxu0 0
      %2920 = vmatmul.mubr.bf16.gmra.mrb[0].mxu0 %v2773
      %v2921 = vpop.f32.mrb[0].mxu0
      %v2922 = vadd.f32 0.0, %v2921
      %v2923 = vpop.f32.mrb[0].mxu0
      %v2924 = vpop.f32.mrb[0].mxu0
      %v2925 = vadd.f32 0.0, %v2924
      %v2926 = vpop.f32.mrb[0].mxu0
      %2927 = vmatprep.mubr.bf16.mxu0 0
      %2928 = vmatmul.mubr.bf16.gmra.mrb[0].mxu0 %v2774
      %v2929 = vpop.f32.mrb[0].mxu0
      %v2930 = vadd.f32 0.0, %v2929
      %v2931 = vpop.f32.mrb[0].mxu0
      %v2932 = vpop.f32.mrb[0].mxu0
      %v2933 = vadd.f32 0.0, %v2932
      %v2934 = vpop.f32.mrb[0].mxu0
      %2935 = vdwg.mxu0
      %v2936 = vadd.f32 %v402, %v2874
      %v2937 = vadd.f32 %v403, %v2877
      %v2938 = vadd.f32 %v404, %v2882
      %v2939 = vadd.f32 %v405, %v2885
      %v2940 = vadd.f32 %v406, %v2890
      %v2941 = vadd.f32 %v407, %v2893
      %v2942 = vadd.f32 %v408, %v2898
      %v2943 = vadd.f32 %v409, %v2901
      %v2944 = vadd.f32 %v410, %v2906
      %v2945 = vadd.f32 %v411, %v2909
      %v2946 = vadd.f32 %v412, %v2914
      %v2947 = vadd.f32 %v413, %v2917
      %v2948 = vadd.f32 %v414, %v2922
      %v2949 = vadd.f32 %v415, %v2925
      %v2950 = vadd.f32 %v416, %v2930
      %v2951 = vadd.f32 %v417, %v2933
      %v2952 = vpack.c.bf16 %v2937, %v2936
      %v2953 = vpack.c.bf16 %v2939, %v2938
      %v2954 = vpack.c.bf16 %v2941, %v2940
      %v2955 = vpack.c.bf16 %v2943, %v2942
      %v2956 = vpack.c.bf16 %v2945, %v2944
      %v2957 = vpack.c.bf16 %v2947, %v2946
      %v2958 = vpack.c.bf16 %v2949, %v2948
      %v2959 = vpack.c.bf16 %v2951, %v2950
      %v2960 = vld [vmem:[%s6] sm:$0xff]
      %v2961 = vld [vmem:[%s6 + $0x8] sm:$0xff]
      %v2962 = vld [vmem:[%s6 + $0x10] sm:$0xff]
      %v2963 = vld [vmem:[%s6 + $0x18] sm:$0xff]
      %v2964 = vld [vmem:[%s6 + $0x20] sm:$0xff]
      %v2965 = vld [vmem:[%s6 + $0x28] sm:$0xff]
      %v2966 = vld [vmem:[%s6 + $0x30] sm:$0xff]
      %v2967 = vld [vmem:[%s6 + $0x38] sm:$0xff]
      %v2968 = vld [vmem:[%s6 + $0x40] sm:$0xff]
      %v2969 = vld [vmem:[%s6 + $0x48] sm:$0xff]
      %v2970 = vld [vmem:[%s6 + $0x50] sm:$0xff]
      %v2971 = vld [vmem:[%s6 + $0x58] sm:$0xff]
      %v2972 = vld [vmem:[%s6 + $0x60] sm:$0xff]
      %v2973 = vld [vmem:[%s6 + $0x68] sm:$0xff]
      %v2974 = vld [vmem:[%s6 + $0x70] sm:$0xff]
      %v2975 = vld [vmem:[%s6 + $0x78] sm:$0xff]
      %v2992 = vunpack.c.l.b16 %v2960
      %v2993 = vunpack.c.h.b16 %v2960
      %v2994 = vunpack.c.l.b16 %v2961
      %v2995 = vunpack.c.h.b16 %v2961
      %v2996 = vunpack.c.l.b16 %v2962
      %v2997 = vunpack.c.h.b16 %v2962
      %v2998 = vunpack.c.l.b16 %v2963
      %v2999 = vunpack.c.h.b16 %v2963
      %v3000 = vunpack.c.l.b16 %v2964
      %v3001 = vunpack.c.h.b16 %v2964
      %v3002 = vunpack.c.l.b16 %v2965
      %v3003 = vunpack.c.h.b16 %v2965
      %v3004 = vunpack.c.l.b16 %v2966
      %v3005 = vunpack.c.h.b16 %v2966
      %v3006 = vunpack.c.l.b16 %v2967
      %v3007 = vunpack.c.h.b16 %v2967
      %v3008 = vunpack.c.l.b16 %v2968
      %v3009 = vunpack.c.h.b16 %v2968
      %v3010 = vunpack.c.l.b16 %v2969
      %v3011 = vunpack.c.h.b16 %v2969
      %v3012 = vunpack.c.l.b16 %v2970
      %v3013 = vunpack.c.h.b16 %v2970
      %v3014 = vunpack.c.l.b16 %v2971
      %v3015 = vunpack.c.h.b16 %v2971
      %v3016 = vunpack.c.l.b16 %v2972
      %v3017 = vunpack.c.h.b16 %v2972
      %v3018 = vunpack.c.l.b16 %v2973
      %v3019 = vunpack.c.h.b16 %v2973
      %v3020 = vunpack.c.l.b16 %v2974
      %v3021 = vunpack.c.h.b16 %v2974
      %v3022 = vunpack.c.l.b16 %v2975
      %v3023 = vunpack.c.h.b16 %v2975
      %v3024 = vpack.c.b16 %v2994, %v2992
      %v3025 = vpack.c.b16 %v2995, %v2993
      %v3026 = vpack.c.b16 %v2998, %v2996
      %v3027 = vpack.c.b16 %v2999, %v2997
      %v3028 = vpack.c.b16 %v3002, %v3000
      %v3029 = vpack.c.b16 %v3003, %v3001
      %v3030 = vpack.c.b16 %v3006, %v3004
      %v3031 = vpack.c.b16 %v3007, %v3005
      %v3032 = vpack.c.b16 %v3010, %v3008
      %v3033 = vpack.c.b16 %v3011, %v3009
      %v3034 = vpack.c.b16 %v3014, %v3012
      %v3035 = vpack.c.b16 %v3015, %v3013
      %v3036 = vpack.c.b16 %v3018, %v3016
      %v3037 = vpack.c.b16 %v3019, %v3017
      %v3038 = vpack.c.b16 %v3022, %v3020
      %v3039 = vpack.c.b16 %v3023, %v3021
      %3056 = vmatprep.subr.bf16.mxu0 %v3025
      %3057 = vmatpush1.bf16.msra.mxu0 %v3024
      %3058 = vmatprep.subr.bf16.mxu0 %v3027
      %3059 = vmatpush1.bf16.msra.mxu0 %v3026
      %3060 = vmatprep.subr.bf16.mxu0 %v3029
      %3061 = vmatpush1.bf16.msra.mxu0 %v3028
      %3062 = vmatprep.subr.bf16.mxu0 %v3031
      %3063 = vmatpush1.bf16.msra.mxu0 %v3030
      %3064 = vmatprep.subr.bf16.mxu0 %v3033
      %3065 = vmatpush1.bf16.msra.mxu0 %v3032
      %3066 = vmatprep.subr.bf16.mxu0 %v3035
      %3067 = vmatpush1.bf16.msra.mxu0 %v3034
      %3068 = vmatprep.subr.bf16.mxu0 %v3037
      %3069 = vmatpush1.bf16.msra.mxu0 %v3036
      %3070 = vmatprep.subr.bf16.mxu0 %v3039
      %3071 = vmatpush1.bf16.msra.mxu0 %v3038
      %3072 = vmatprep.subr.bf16.mxu0 0
      %3073 = vmatpush1.bf16.msra.mxu0 0
      %3074 = vmatprep.subr.bf16.mxu0 0
      %3075 = vmatpush1.bf16.msra.mxu0 0
      %3076 = vmatprep.subr.bf16.mxu0 0
      %3077 = vmatpush1.bf16.msra.mxu0 0
      %3078 = vmatprep.subr.bf16.mxu0 0
      %3079 = vmatpush1.bf16.msra.mxu0 0
      %3080 = vmatprep.subr.bf16.mxu0 0
      %3081 = vmatpush1.bf16.msra.mxu0 0
      %3082 = vmatprep.subr.bf16.mxu0 0
      %3083 = vmatpush1.bf16.msra.mxu0 0
      %3084 = vmatprep.subr.bf16.mxu0 0
      %3085 = vmatpush1.bf16.msra.mxu0 0
      %3086 = vmatprep.subr.bf16.mxu0 0
      %3087 = vmatpush1.bf16.msra.mxu0 0
      %3088 = vmatprep.mubr.bf16.mxu0 0
      %3089 = vmatmul.mubr.bf16.gmra.mrb[0].mxu0 %v2952
      %v3090 = vpop.f32.mrb[0].mxu0
      %v3091 = vadd.f32 0.0, %v3090
      %v3092 = vpop.f32.mrb[0].mxu0
      %v3093 = vadd.f32 0.0, %v3092
      %v3094 = vpop.f32.mrb[0].mxu0
      %v3095 = vadd.f32 0.0, %v3094
      %v3096 = vpop.f32.mrb[0].mxu0
      %v3097 = vadd.f32 0.0, %v3096
      %3098 = vmatprep.mubr.bf16.mxu0 0
      %3099 = vmatmul.mubr.bf16.gmra.mrb[0].mxu0 %v2953
      %v3100 = vpop.f32.mrb[0].mxu0
      %v3101 = vadd.f32 0.0, %v3100
      %v3102 = vpop.f32.mrb[0].mxu0
      %v3103 = vadd.f32 0.0, %v3102
      %v3104 = vpop.f32.mrb[0].mxu0
      %v3105 = vadd.f32 0.0, %v3104
      %v3106 = vpop.f32.mrb[0].mxu0
      %v3107 = vadd.f32 0.0, %v3106
      %3108 = vmatprep.mubr.bf16.mxu0 0
      %3109 = vmatmul.mubr.bf16.gmra.mrb[0].mxu0 %v2954
      %v3110 = vpop.f32.mrb[0].mxu0
      %v3111 = vadd.f32 0.0, %v3110
      %v3112 = vpop.f32.mrb[0].mxu0
      %v3113 = vadd.f32 0.0, %v3112
      %v3114 = vpop.f32.mrb[0].mxu0
      %v3115 = vadd.f32 0.0, %v3114
      %v3116 = vpop.f32.mrb[0].mxu0
      %v3117 = vadd.f32 0.0, %v3116
      %3118 = vmatprep.mubr.bf16.mxu0 0
      %3119 = vmatmul.mubr.bf16.gmra.mrb[0].mxu0 %v2955
      %v3120 = vpop.f32.mrb[0].mxu0
      %v3121 = vadd.f32 0.0, %v3120
      %v3122 = vpop.f32.mrb[0].mxu0
      %v3123 = vadd.f32 0.0, %v3122
      %v3124 = vpop.f32.mrb[0].mxu0
      %v3125 = vadd.f32 0.0, %v3124
      %v3126 = vpop.f32.mrb[0].mxu0
      %v3127 = vadd.f32 0.0, %v3126
      %3128 = vmatprep.mubr.bf16.mxu0 0
      %3129 = vmatmul.mubr.bf16.gmra.mrb[0].mxu0 %v2956
      %v3130 = vpop.f32.mrb[0].mxu0
      %v3131 = vadd.f32 0.0, %v3130
      %v3132 = vpop.f32.mrb[0].mxu0
      %v3133 = vadd.f32 0.0, %v3132
      %v3134 = vpop.f32.mrb[0].mxu0
      %v3135 = vadd.f32 0.0, %v3134
      %v3136 = vpop.f32.mrb[0].mxu0
      %v3137 = vadd.f32 0.0, %v3136
      %3138 = vmatprep.mubr.bf16.mxu0 0
      %3139 = vmatmul.mubr.bf16.gmra.mrb[0].mxu0 %v2957
      %v3140 = vpop.f32.mrb[0].mxu0
      %v3141 = vadd.f32 0.0, %v3140
      %v3142 = vpop.f32.mrb[0].mxu0
      %v3143 = vadd.f32 0.0, %v3142
      %v3144 = vpop.f32.mrb[0].mxu0
      %v3145 = vadd.f32 0.0, %v3144
      %v3146 = vpop.f32.mrb[0].mxu0
      %v3147 = vadd.f32 0.0, %v3146
      %3148 = vmatprep.mubr.bf16.mxu0 0
      %3149 = vmatmul.mubr.bf16.gmra.mrb[0].mxu0 %v2958
      %v3150 = vpop.f32.mrb[0].mxu0
      %v3151 = vadd.f32 0.0, %v3150
      %v3152 = vpop.f32.mrb[0].mxu0
      %v3153 = vadd.f32 0.0, %v3152
      %v3154 = vpop.f32.mrb[0].mxu0
      %v3155 = vadd.f32 0.0, %v3154
      %v3156 = vpop.f32.mrb[0].mxu0
      %v3157 = vadd.f32 0.0, %v3156
      %3158 = vmatprep.mubr.bf16.mxu0 0
      %3159 = vmatmul.mubr.bf16.gmra.mrb[0].mxu0 %v2959
      %v3160 = vpop.f32.mrb[0].mxu0
      %v3161 = vadd.f32 0.0, %v3160
      %v3162 = vpop.f32.mrb[0].mxu0
      %v3163 = vadd.f32 0.0, %v3162
      %v3164 = vpop.f32.mrb[0].mxu0
      %v3165 = vadd.f32 0.0, %v3164
      %v3166 = vpop.f32.mrb[0].mxu0
      %v3167 = vadd.f32 0.0, %v3166
      %3168 = vdwg.mxu0
      %v3169 = vmax.f32 %v3091, 0.0
      %v3170 = vmax.f32 %v3093, 0.0
      %v3171 = vmax.f32 %v3095, 0.0
      %v3172 = vmax.f32 %v3097, 0.0
      %v3173 = vmax.f32 %v3101, 0.0
      %v3174 = vmax.f32 %v3103, 0.0
      %v3175 = vmax.f32 %v3105, 0.0
      %v3176 = vmax.f32 %v3107, 0.0
      %v3177 = vmax.f32 %v3111, 0.0
      %v3178 = vmax.f32 %v3113, 0.0
      %v3179 = vmax.f32 %v3115, 0.0
      %v3180 = vmax.f32 %v3117, 0.0
      %v3181 = vmax.f32 %v3121, 0.0
      %v3182 = vmax.f32 %v3123, 0.0
      %v3183 = vmax.f32 %v3125, 0.0
      %v3184 = vmax.f32 %v3127, 0.0
      %v3185 = vmax.f32 %v3131, 0.0
      %v3186 = vmax.f32 %v3133, 0.0
      %v3187 = vmax.f32 %v3135, 0.0
      %v3188 = vmax.f32 %v3137, 0.0
      %v3189 = vmax.f32 %v3141, 0.0
      %v3190 = vmax.f32 %v3143, 0.0
      %v3191 = vmax.f32 %v3145, 0.0
      %v3192 = vmax.f32 %v3147, 0.0
      %v3193 = vmax.f32 %v3151, 0.0
      %v3194 = vmax.f32 %v3153, 0.0
      %v3195 = vmax.f32 %v3155, 0.0
      %v3196 = vmax.f32 %v3157, 0.0
      %v3197 = vmax.f32 %v3161, 0.0
      %v3198 = vmax.f32 %v3163, 0.0
      %v3199 = vmax.f32 %v3165, 0.0
      %v3200 = vmax.f32 %v3167, 0.0
      %v3201 = vpack.c.bf16 %v3171, %v3169
      %v3202 = vpack.c.bf16 %v3172, %v3170
      %v3203 = vpack.c.bf16 %v3175, %v3173
      %v3204 = vpack.c.bf16 %v3176, %v3174
      %v3205 = vpack.c.bf16 %v3179, %v3177
      %v3206 = vpack.c.bf16 %v3180, %v3178
      %v3207 = vpack.c.bf16 %v3183, %v3181
      %v3208 = vpack.c.bf16 %v3184, %v3182
      %v3209 = vpack.c.bf16 %v3187, %v3185
      %v3210 = vpack.c.bf16 %v3188, %v3186
      %v3211 = vpack.c.bf16 %v3191, %v3189
      %v3212 = vpack.c.bf16 %v3192, %v3190
      %v3213 = vpack.c.bf16 %v3195, %v3193
      %v3214 = vpack.c.bf16 %v3196, %v3194
      %v3215 = vpack.c.bf16 %v3199, %v3197
      %v3216 = vpack.c.bf16 %v3200, %v3198
      %v3217 = vld [vmem:[%s7] sm:$0xf]
      %v3218 = vld [vmem:[%s7 + $0x4] sm:$0xf]
      %v3219 = vld [vmem:[%s7 + $0x8] sm:$0xf]
      %v3220 = vld [vmem:[%s7 + $0xc] sm:$0xf]
      %v3221 = vld [vmem:[%s7 + $0x10] sm:$0xf]
      %v3222 = vld [vmem:[%s7 + $0x14] sm:$0xf]
      %v3223 = vld [vmem:[%s7 + $0x18] sm:$0xf]
      %v3224 = vld [vmem:[%s7 + $0x1c] sm:$0xf]
      %v3225 = vld [vmem:[%s7 + $0x20] sm:$0xf]
      %v3226 = vld [vmem:[%s7 + $0x24] sm:$0xf]
      %v3227 = vld [vmem:[%s7 + $0x28] sm:$0xf]
      %v3228 = vld [vmem:[%s7 + $0x2c] sm:$0xf]
      %v3229 = vld [vmem:[%s7 + $0x30] sm:$0xf]
      %v3230 = vld [vmem:[%s7 + $0x34] sm:$0xf]
      %v3231 = vld [vmem:[%s7 + $0x38] sm:$0xf]
      %v3232 = vld [vmem:[%s7 + $0x3c] sm:$0xf]
      %v3233 = vld [vmem:[%s7 + $0x40] sm:$0xf]
      %v3234 = vld [vmem:[%s7 + $0x44] sm:$0xf]
      %v3235 = vld [vmem:[%s7 + $0x48] sm:$0xf]
      %v3236 = vld [vmem:[%s7 + $0x4c] sm:$0xf]
      %v3237 = vld [vmem:[%s7 + $0x50] sm:$0xf]
      %v3238 = vld [vmem:[%s7 + $0x54] sm:$0xf]
      %v3239 = vld [vmem:[%s7 + $0x58] sm:$0xf]
      %v3240 = vld [vmem:[%s7 + $0x5c] sm:$0xf]
      %v3241 = vld [vmem:[%s7 + $0x60] sm:$0xf]
      %v3242 = vld [vmem:[%s7 + $0x64] sm:$0xf]
      %v3243 = vld [vmem:[%s7 + $0x68] sm:$0xf]
      %v3244 = vld [vmem:[%s7 + $0x6c] sm:$0xf]
      %v3245 = vld [vmem:[%s7 + $0x70] sm:$0xf]
      %v3246 = vld [vmem:[%s7 + $0x74] sm:$0xf]
      %v3247 = vld [vmem:[%s7 + $0x78] sm:$0xf]
      %v3248 = vld [vmem:[%s7 + $0x7c] sm:$0xf]
      %v3281 = vunpack.c.l.b16 %v3217
      %v3282 = vunpack.c.l.b16 %v3218
      %v3283 = vunpack.c.l.b16 %v3219
      %v3284 = vunpack.c.l.b16 %v3220
      %v3285 = vunpack.c.l.b16 %v3221
      %v3286 = vunpack.c.l.b16 %v3222
      %v3287 = vunpack.c.l.b16 %v3223
      %v3288 = vunpack.c.l.b16 %v3224
      %v3289 = vunpack.c.l.b16 %v3225
      %v3290 = vunpack.c.l.b16 %v3226
      %v3291 = vunpack.c.l.b16 %v3227
      %v3292 = vunpack.c.l.b16 %v3228
      %v3293 = vunpack.c.l.b16 %v3229
      %v3294 = vunpack.c.l.b16 %v3230
      %v3295 = vunpack.c.l.b16 %v3231
      %v3296 = vunpack.c.l.b16 %v3232
      %v3297 = vunpack.c.l.b16 %v3233
      %v3298 = vunpack.c.l.b16 %v3234
      %v3299 = vunpack.c.l.b16 %v3235
      %v3300 = vunpack.c.l.b16 %v3236
      %v3301 = vunpack.c.l.b16 %v3237
      %v3302 = vunpack.c.l.b16 %v3238
      %v3303 = vunpack.c.l.b16 %v3239
      %v3304 = vunpack.c.l.b16 %v3240
      %v3305 = vunpack.c.l.b16 %v3241
      %v3306 = vunpack.c.l.b16 %v3242
      %v3307 = vunpack.c.l.b16 %v3243
      %v3308 = vunpack.c.l.b16 %v3244
      %v3309 = vunpack.c.l.b16 %v3245
      %v3310 = vunpack.c.l.b16 %v3246
      %v3311 = vunpack.c.l.b16 %v3247
      %v3312 = vunpack.c.l.b16 %v3248
      %v3313 = vpack.c.b16 %v3282, %v3281
      %v3314 = vpack.c.b16 %v3284, %v3283
      %v3315 = vpack.c.b16 %v3286, %v3285
      %v3316 = vpack.c.b16 %v3288, %v3287
      %v3317 = vpack.c.b16 %v3290, %v3289
      %v3318 = vpack.c.b16 %v3292, %v3291
      %v3319 = vpack.c.b16 %v3294, %v3293
      %v3320 = vpack.c.b16 %v3296, %v3295
      %v3321 = vpack.c.b16 %v3298, %v3297
      %v3322 = vpack.c.b16 %v3300, %v3299
      %v3323 = vpack.c.b16 %v3302, %v3301
      %v3324 = vpack.c.b16 %v3304, %v3303
      %v3325 = vpack.c.b16 %v3306, %v3305
      %v3326 = vpack.c.b16 %v3308, %v3307
      %v3327 = vpack.c.b16 %v3310, %v3309
      %v3328 = vpack.c.b16 %v3312, %v3311
      %3345 = vmatprep.subr.bf16.mxu0 0
      %3346 = vmatpush1.bf16.msra.mxu0 %v3313
      %3347 = vmatprep.subr.bf16.mxu0 0
      %3348 = vmatpush1.bf16.msra.mxu0 %v3314
      %3349 = vmatprep.subr.bf16.mxu0 0
      %3350 = vmatpush1.bf16.msra.mxu0 %v3315
      %3351 = vmatprep.subr.bf16.mxu0 0
      %3352 = vmatpush1.bf16.msra.mxu0 %v3316
      %3353 = vmatprep.subr.bf16.mxu0 0
      %3354 = vmatpush1.bf16.msra.mxu0 %v3317
      %3355 = vmatprep.subr.bf16.mxu0 0
      %3356 = vmatpush1.bf16.msra.mxu0 %v3318
      %3357 = vmatprep.subr.bf16.mxu0 0
      %3358 = vmatpush1.bf16.msra.mxu0 %v3319
      %3359 = vmatprep.subr.bf16.mxu0 0
      %3360 = vmatpush1.bf16.msra.mxu0 %v3320
      %3361 = vmatprep.subr.bf16.mxu0 0
      %3362 = vmatpush1.bf16.msra.mxu0 %v3321
      %3363 = vmatprep.subr.bf16.mxu0 0
      %3364 = vmatpush1.bf16.msra.mxu0 %v3322
      %3365 = vmatprep.subr.bf16.mxu0 0
      %3366 = vmatpush1.bf16.msra.mxu0 %v3323
      %3367 = vmatprep.subr.bf16.mxu0 0
      %3368 = vmatpush1.bf16.msra.mxu0 %v3324
      %3369 = vmatprep.subr.bf16.mxu0 0
      %3370 = vmatpush1.bf16.msra.mxu0 %v3325
      %3371 = vmatprep.subr.bf16.mxu0 0
      %3372 = vmatpush1.bf16.msra.mxu0 %v3326
      %3373 = vmatprep.subr.bf16.mxu0 0
      %3374 = vmatpush1.bf16.msra.mxu0 %v3327
      %3375 = vmatprep.subr.bf16.mxu0 0
      %3376 = vmatpush1.bf16.msra.mxu0 %v3328
      %3377 = vmatprep.mubr.bf16.mxu0 %v3202
      %3378 = vmatmul.mubr.bf16.gmra.mrb[0].mxu0 %v3201
      %v3379 = vpop.f32.mrb[0].mxu0
      %v3380 = vadd.f32 0.0, %v3379
      %v3381 = vpop.f32.mrb[0].mxu0
      %v3382 = vpop.f32.mrb[0].mxu0
      %v3383 = vadd.f32 0.0, %v3382
      %v3384 = vpop.f32.mrb[0].mxu0
      %3385 = vmatprep.mubr.bf16.mxu0 %v3204
      %3386 = vmatmul.mubr.bf16.gmra.mrb[0].mxu0 %v3203
      %v3387 = vpop.f32.mrb[0].mxu0
      %v3388 = vadd.f32 0.0, %v3387
      %v3389 = vpop.f32.mrb[0].mxu0
      %v3390 = vpop.f32.mrb[0].mxu0
      %v3391 = vadd.f32 0.0, %v3390
      %v3392 = vpop.f32.mrb[0].mxu0
      %3393 = vmatprep.mubr.bf16.mxu0 %v3206
      %3394 = vmatmul.mubr.bf16.gmra.mrb[0].mxu0 %v3205
      %v3395 = vpop.f32.mrb[0].mxu0
      %v3396 = vadd.f32 0.0, %v3395
      %v3397 = vpop.f32.mrb[0].mxu0
      %v3398 = vpop.f32.mrb[0].mxu0
      %v3399 = vadd.f32 0.0, %v3398
      %v3400 = vpop.f32.mrb[0].mxu0
      %3401 = vmatprep.mubr.bf16.mxu0 %v3208
      %3402 = vmatmul.mubr.bf16.gmra.mrb[0].mxu0 %v3207
      %v3403 = vpop.f32.mrb[0].mxu0
      %v3404 = vadd.f32 0.0, %v3403
      %v3405 = vpop.f32.mrb[0].mxu0
      %v3406 = vpop.f32.mrb[0].mxu0
      %v3407 = vadd.f32 0.0, %v3406
      %v3408 = vpop.f32.mrb[0].mxu0
      %3409 = vmatprep.mubr.bf16.mxu0 %v3210
      %3410 = vmatmul.mubr.bf16.gmra.mrb[0].mxu0 %v3209
      %v3411 = vpop.f32.mrb[0].mxu0
      %v3412 = vadd.f32 0.0, %v3411
      %v3413 = vpop.f32.mrb[0].mxu0
      %v3414 = vpop.f32.mrb[0].mxu0
      %v3415 = vadd.f32 0.0, %v3414
      %v3416 = vpop.f32.mrb[0].mxu0
      %3417 = vmatprep.mubr.bf16.mxu0 %v3212
      %3418 = vmatmul.mubr.bf16.gmra.mrb[0].mxu0 %v3211
      %v3419 = vpop.f32.mrb[0].mxu0
      %v3420 = vadd.f32 0.0, %v3419
      %v3421 = vpop.f32.mrb[0].mxu0
      %v3422 = vpop.f32.mrb[0].mxu0
      %v3423 = vadd.f32 0.0, %v3422
      %v3424 = vpop.f32.mrb[0].mxu0
      %3425 = vmatprep.mubr.bf16.mxu0 %v3214
      %3426 = vmatmul.mubr.bf16.gmra.mrb[0].mxu0 %v3213
      %v3427 = vpop.f32.mrb[0].mxu0
      %v3428 = vadd.f32 0.0, %v3427
      %v3429 = vpop.f32.mrb[0].mxu0
      %v3430 = vpop.f32.mrb[0].mxu0
      %v3431 = vadd.f32 0.0, %v3430
      %v3432 = vpop.f32.mrb[0].mxu0
      %3433 = vmatprep.mubr.bf16.mxu0 %v3216
      %3434 = vmatmul.mubr.bf16.gmra.mrb[0].mxu0 %v3215
      %v3435 = vpop.f32.mrb[0].mxu0
      %v3436 = vadd.f32 0.0, %v3435
      %v3437 = vpop.f32.mrb[0].mxu0
      %v3438 = vpop.f32.mrb[0].mxu0
      %v3439 = vadd.f32 0.0, %v3438
      %v3440 = vpop.f32.mrb[0].mxu0
      %3441 = vdwg.mxu0
      %v3442 = vadd.f32 %v2936, %v3380
      %v3443 = vadd.f32 %v2937, %v3383
      %v3444 = vadd.f32 %v2938, %v3388
      %v3445 = vadd.f32 %v2939, %v3391
      %v3446 = vadd.f32 %v2940, %v3396
      %v3447 = vadd.f32 %v2941, %v3399
      %v3448 = vadd.f32 %v2942, %v3404
      %v3449 = vadd.f32 %v2943, %v3407
      %v3450 = vadd.f32 %v2944, %v3412
      %v3451 = vadd.f32 %v2945, %v3415
      %v3452 = vadd.f32 %v2946, %v3420
      %v3453 = vadd.f32 %v2947, %v3423
      %v3454 = vadd.f32 %v2948, %v3428
      %v3455 = vadd.f32 %v2949, %v3431
      %v3456 = vadd.f32 %v2950, %v3436
      %v3457 = vadd.f32 %v2951, %v3439
      %v3458 = vmul.f32 %v3442, %v3442
      %v3459 = vmul.f32 %v3443, %v3443
      %v3460 = vmul.f32 %v3444, %v3444
      %v3461 = vmul.f32 %v3445, %v3445
      %v3462 = vmul.f32 %v3446, %v3446
      %v3463 = vmul.f32 %v3447, %v3447
      %v3464 = vmul.f32 %v3448, %v3448
      %v3465 = vmul.f32 %v3449, %v3449
      %v3466 = vmul.f32 %v3450, %v3450
      %v3467 = vmul.f32 %v3451, %v3451
      %v3468 = vmul.f32 %v3452, %v3452
      %v3469 = vmul.f32 %v3453, %v3453
      %v3470 = vmul.f32 %v3454, %v3454
      %v3471 = vmul.f32 %v3455, %v3455
      %v3472 = vmul.f32 %v3456, %v3456
      %v3473 = vmul.f32 %v3457, %v3457
      %v3490 = vrot.slane %v3459, 7
      %v3491 = vrot.slane %v3460, 6
      %vm3492 = vcmask 1041409
      %v3493 = vsel %vm3492, %v3491, %v3490
      %v3494 = vrot.slane %v3461, 5
      %vm3495 = vcmask 1042434
      %v3496 = vsel %vm3495, %v3494, %v3493
      %v3497 = vrot.slane %v3462, 4
      %vm3498 = vcmask 1043459
      %v3499 = vsel %vm3498, %v3497, %v3496
      %v3500 = vrot.slane %v3463, 3
      %vm3501 = vcmask 1044484
      %v3502 = vsel %vm3501, %v3500, %v3499
      %v3503 = vrot.slane %v3464, 2
      %vm3504 = vcmask 1045509
      %v3505 = vsel %vm3504, %v3503, %v3502
      %v3506 = vrot.slane %v3465, 1
      %vm3507 = vcmask 1046534
      %v3508 = vsel %vm3507, %v3506, %v3505
      %vm3509 = vcmask 1047559
      %v3510 = vsel %vm3509, %v3466, %v3508
      %v3511 = vrot.slane %v3467, 7
      %v3512 = vrot.slane %v3468, 6
      %v3513 = vsel %vm3492, %v3512, %v3511
      %v3514 = vrot.slane %v3469, 5
      %v3515 = vsel %vm3495, %v3514, %v3513
      %v3516 = vrot.slane %v3470, 4
      %v3517 = vsel %vm3498, %v3516, %v3515
      %v3518 = vrot.slane %v3471, 3
      %v3519 = vsel %vm3501, %v3518, %v3517
      %v3520 = vrot.slane %v3472, 2
      %v3521 = vsel %vm3504, %v3520, %v3519
      %v3522 = vrot.slane %v3473, 1
      %v3523 = vsel %vm3507, %v3522, %v3521
      %v3527 = vsel %vm3509, %v3458, 0.0
      %3528 = vadd.xlane.f32.xlu0 %v3527
      %v3529 = vpop.xlane.xlu0 %3528
      %3530 = vadd.xlane.f32.xlu0 %v3510
      %v3531 = vpop.xlane.xlu0 %3530
      %vm3532 = vcmask 1046528
      %v3533 = vsel %vm3532, %v3523, 0.0
      %3534 = vadd.xlane.f32.xlu0 %v3533
      %v3535 = vpop.xlane.xlu0 %3534
      %v3536 = vrcp.pop 128.0
      %v3537 = vmul.f32 %v3529, %v3536
      %v3538 = vmul.f32 %v3531, %v3536
      %v3539 = vmul.f32 %v3535, %v3536
      %v3540 = vadd.f32 %v3537, 1e-06
      %v3541 = vadd.f32 %v3538, 1e-06
      %v3542 = vadd.f32 %v3539, 1e-06
      %v3543 = vrsqrt.pop %v3540
      %v3544 = vrsqrt.pop %v3541
      %v3545 = vrsqrt.pop %v3542
      %v3549 = vrot.slane %v3544, 1
      %v3550 = vrot.slane %v3544, 2
      %v3551 = vrot.slane %v3544, 3
      %v3552 = vrot.slane %v3544, 4
      %v3553 = vrot.slane %v3544, 5
      %v3554 = vrot.slane %v3544, 6
      %v3555 = vrot.slane %v3544, 7
      %v3556 = vrot.slane %v3545, 1
      %v3557 = vrot.slane %v3545, 2
      %v3558 = vrot.slane %v3545, 3
      %v3559 = vrot.slane %v3545, 4
      %v3560 = vrot.slane %v3545, 5
      %v3561 = vrot.slane %v3545, 6
      %v3562 = vrot.slane %v3545, 7
      %v3579 = vmul.f32 %v3442, %v3543
      %v3580 = vmul.f32 %v3443, %v3549
      %v3581 = vmul.f32 %v3444, %v3550
      %v3582 = vmul.f32 %v3445, %v3551
      %v3583 = vmul.f32 %v3446, %v3552
      %v3584 = vmul.f32 %v3447, %v3553
      %v3585 = vmul.f32 %v3448, %v3554
      %v3586 = vmul.f32 %v3449, %v3555
      %v3587 = vmul.f32 %v3450, %v3544
      %v3588 = vmul.f32 %v3451, %v3556
      %v3589 = vmul.f32 %v3452, %v3557
      %v3590 = vmul.f32 %v3453, %v3558
      %v3591 = vmul.f32 %v3454, %v3559
      %v3592 = vmul.f32 %v3455, %v3560
      %v3593 = vmul.f32 %v3456, %v3561
      %v3594 = vmul.f32 %v3457, %v3562
      %v3595 = vld [vmem:[%s8] sm:$0x1]
      %v3597 = vlaneseq
      %v3598 = vshrl.u32 %v3597, 7
      %v3599 = vsub.s32 0, %v3598
      %v3600 = vrot.slane %v3595, %v3599
      %v3602 = vmul.f32 %v3579, %v3600
      %v3603 = vmul.f32 %v3580, %v3600
      %v3604 = vmul.f32 %v3581, %v3600
      %v3605 = vmul.f32 %v3582, %v3600
      %v3606 = vmul.f32 %v3583, %v3600
      %v3607 = vmul.f32 %v3584, %v3600
      %v3608 = vmul.f32 %v3585, %v3600
      %v3609 = vmul.f32 %v3586, %v3600
      %v3610 = vmul.f32 %v3587, %v3600
      %v3611 = vmul.f32 %v3588, %v3600
      %v3612 = vmul.f32 %v3589, %v3600
      %v3613 = vmul.f32 %v3590, %v3600
      %v3614 = vmul.f32 %v3591, %v3600
      %v3615 = vmul.f32 %v3592, %v3600
      %v3616 = vmul.f32 %v3593, %v3600
      %v3617 = vmul.f32 %v3594, %v3600
      %v3618 = vpack.c.bf16 %v3602, %v3602
      %v3619 = vpack.c.bf16 %v3603, %v3603
      %v3620 = vpack.c.bf16 %v3604, %v3604
      %v3621 = vpack.c.bf16 %v3605, %v3605
      %v3622 = vpack.c.bf16 %v3606, %v3606
      %v3623 = vpack.c.bf16 %v3607, %v3607
      %v3624 = vpack.c.bf16 %v3608, %v3608
      %v3625 = vpack.c.bf16 %v3609, %v3609
      %v3626 = vpack.c.bf16 %v3610, %v3610
      %v3627 = vpack.c.bf16 %v3611, %v3611
      %v3628 = vpack.c.bf16 %v3612, %v3612
      %v3629 = vpack.c.bf16 %v3613, %v3613
      %v3630 = vpack.c.bf16 %v3614, %v3614
      %v3631 = vpack.c.bf16 %v3615, %v3615
      %v3632 = vpack.c.bf16 %v3616, %v3616
      %v3633 = vpack.c.bf16 %v3617, %v3617
      %v3634 = vld [vmem:[%s9] sm:$0xf]
      %v3635 = vld [vmem:[%s9 + $0x4] sm:$0xf]
      %v3636 = vld [vmem:[%s9 + $0x8] sm:$0xf]
      %v3637 = vld [vmem:[%s9 + $0xc] sm:$0xf]
      %v3638 = vld [vmem:[%s9 + $0x10] sm:$0xf]
      %v3639 = vld [vmem:[%s9 + $0x14] sm:$0xf]
      %v3640 = vld [vmem:[%s9 + $0x18] sm:$0xf]
      %v3641 = vld [vmem:[%s9 + $0x1c] sm:$0xf]
      %v3642 = vld [vmem:[%s9 + $0x20] sm:$0xf]
      %v3643 = vld [vmem:[%s9 + $0x24] sm:$0xf]
      %v3644 = vld [vmem:[%s9 + $0x28] sm:$0xf]
      %v3645 = vld [vmem:[%s9 + $0x2c] sm:$0xf]
      %v3646 = vld [vmem:[%s9 + $0x30] sm:$0xf]
      %v3647 = vld [vmem:[%s9 + $0x34] sm:$0xf]
      %v3648 = vld [vmem:[%s9 + $0x38] sm:$0xf]
      %v3649 = vld [vmem:[%s9 + $0x3c] sm:$0xf]
      %v3666 = vunpack.c.l.b16 %v3618
      %v3667 = vunpack.c.l.b16 %v3619
      %v3668 = vunpack.c.l.b16 %v3620
      %v3669 = vunpack.c.l.b16 %v3621
      %v3670 = vunpack.c.l.b16 %v3622
      %v3671 = vunpack.c.l.b16 %v3623
      %v3672 = vunpack.c.l.b16 %v3624
      %v3673 = vunpack.c.l.b16 %v3625
      %v3674 = vunpack.c.l.b16 %v3626
      %v3675 = vunpack.c.l.b16 %v3627
      %v3676 = vunpack.c.l.b16 %v3628
      %v3677 = vunpack.c.l.b16 %v3629
      %v3678 = vunpack.c.l.b16 %v3630
      %v3679 = vunpack.c.l.b16 %v3631
      %v3680 = vunpack.c.l.b16 %v3632
      %v3681 = vunpack.c.l.b16 %v3633
      %v3682 = vrot.slane %v3666, 7
      %v3683 = vrot.slane %v3667, 6
      %v3684 = vsel %vm3492, %v3683, %v3682
      %v3685 = vrot.slane %v3668, 5
      %v3686 = vsel %vm3495, %v3685, %v3684
      %v3687 = vrot.slane %v3669, 4
      %v3688 = vsel %vm3498, %v3687, %v3686
      %v3689 = vrot.slane %v3670, 3
      %v3690 = vsel %vm3501, %v3689, %v3688
      %v3691 = vrot.slane %v3671, 2
      %v3692 = vsel %vm3504, %v3691, %v3690
      %v3693 = vrot.slane %v3672, 1
      %v3694 = vsel %vm3507, %v3693, %v3692
      %v3695 = vsel %vm3509, %v3673, %v3694
      %v3696 = vrot.slane %v3674, 7
      %v3697 = vrot.slane %v3675, 6
      %v3698 = vsel %vm3492, %v3697, %v3696
      %v3699 = vrot.slane %v3676, 5
      %v3700 = vsel %vm3495, %v3699, %v3698
      %v3701 = vrot.slane %v3677, 4
      %v3702 = vsel %vm3498, %v3701, %v3700
      %v3703 = vrot.slane %v3678, 3
      %v3704 = vsel %vm3501, %v3703, %v3702
      %v3705 = vrot.slane %v3679, 2
      %v3706 = vsel %vm3504, %v3705, %v3704
      %v3707 = vrot.slane %v3680, 1
      %v3708 = vsel %vm3507, %v3707, %v3706
      %v3709 = vsel %vm3509, %v3681, %v3708
      %v3710 = vpack.c.b16 %v3709, %v3695
      %v3728 = vunpack.c.l.b16 %v3634
      %v3729 = vunpack.c.l.b16 %v3635
      %v3730 = vunpack.c.l.b16 %v3636
      %v3731 = vunpack.c.l.b16 %v3637
      %v3732 = vunpack.c.l.b16 %v3638
      %v3733 = vunpack.c.l.b16 %v3639
      %v3734 = vunpack.c.l.b16 %v3640
      %v3735 = vunpack.c.l.b16 %v3641
      %v3736 = vunpack.c.l.b16 %v3642
      %v3737 = vunpack.c.l.b16 %v3643
      %v3738 = vunpack.c.l.b16 %v3644
      %v3739 = vunpack.c.l.b16 %v3645
      %v3740 = vunpack.c.l.b16 %v3646
      %v3741 = vunpack.c.l.b16 %v3647
      %v3742 = vunpack.c.l.b16 %v3648
      %v3743 = vunpack.c.l.b16 %v3649
      %v3744 = vpack.c.b16 %v3729, %v3728
      %v3745 = vpack.c.b16 %v3731, %v3730
      %v3746 = vpack.c.b16 %v3733, %v3732
      %v3747 = vpack.c.b16 %v3735, %v3734
      %v3748 = vpack.c.b16 %v3737, %v3736
      %v3749 = vpack.c.b16 %v3739, %v3738
      %v3750 = vpack.c.b16 %v3741, %v3740
      %v3751 = vpack.c.b16 %v3743, %v3742
      %3760 = vmatprep.subr.bf16.mxu0 0
      %3761 = vmatpush1.bf16.msra.mxu0 %v3744
      %3762 = vmatprep.subr.bf16.mxu0 0
      %3763 = vmatpush1.bf16.msra.mxu0 %v3745
      %3764 = vmatprep.subr.bf16.mxu0 0
      %3765 = vmatpush1.bf16.msra.mxu0 %v3746
      %3766 = vmatprep.subr.bf16.mxu0 0
      %3767 = vmatpush1.bf16.msra.mxu0 %v3747
      %3768 = vmatprep.subr.bf16.mxu0 0
      %3769 = vmatpush1.bf16.msra.mxu0 %v3748
      %3770 = vmatprep.subr.bf16.mxu0 0
      %3771 = vmatpush1.bf16.msra.mxu0 %v3749
      %3772 = vmatprep.subr.bf16.mxu0 0
      %3773 = vmatpush1.bf16.msra.mxu0 %v3750
      %3774 = vmatprep.subr.bf16.mxu0 0
      %3775 = vmatpush1.bf16.msra.mxu0 %v3751
      %3776 = vmatprep.subr.bf16.mxu0 0
      %3777 = vmatpush1.bf16.msra.mxu0 0
      %3778 = vmatprep.subr.bf16.mxu0 0
      %3779 = vmatpush1.bf16.msra.mxu0 0
      %3780 = vmatprep.subr.bf16.mxu0 0
      %3781 = vmatpush1.bf16.msra.mxu0 0
      %3782 = vmatprep.subr.bf16.mxu0 0
      %3783 = vmatpush1.bf16.msra.mxu0 0
      %3784 = vmatprep.subr.bf16.mxu0 0
      %3785 = vmatpush1.bf16.msra.mxu0 0
      %3786 = vmatprep.subr.bf16.mxu0 0
      %3787 = vmatpush1.bf16.msra.mxu0 0
      %3788 = vmatprep.subr.bf16.mxu0 0
      %3789 = vmatpush1.bf16.msra.mxu0 0
      %3790 = vmatprep.subr.bf16.mxu0 0
      %3791 = vmatpush1.bf16.msra.mxu0 0
      %3792 = vmatprep.mubr.bf16.mxu0 0
      %3793 = vmatmul.mubr.bf16.gmra.mrb[0].mxu0 %v3710
      %v3794 = vpop.f32.mrb[0].mxu0
      %v3795 = vadd.f32 0.0, %v3794
      %v3796 = vpop.f32.mrb[0].mxu0
      %v3797 = vpop.f32.mrb[0].mxu0
      %v3798 = vadd.f32 0.0, %v3797
      %v3799 = vpop.f32.mrb[0].mxu0
      %3800 = vdwg.mxu0
      %3801 = vst [vmem:[%s383] sm:$0xff] %v3795
      %3802 = vst [vmem:[%s383 + $0x8] sm:$0xff] %v3798
      %s3803 = smul.u32 2, %s21
      %p3804 = scmp.lt.s32.totalorder %s3803, 13
      %s3805 = scalar_select %p3804, %s3803, 13
      %s3806 = smul.addr %s3805, 8
      %s3807 = scalar_lea.vmem %s10, %s3806
      // Predicated region
      $region61: #{reranker_forward.1} parent=59 // pred_check
        %p3808 = pneg %p259
      $region62: #{reranker_forward.1} parent=59 // pred_check_branch
        %3810 = sbr.rel (%p3808) target = $region64
      $region63: #{reranker_forward.1} parent=59 // pred_region
        %s3811 = smul.u32 2, %s21
      $region64: #{reranker_forward.1} parent=59 // pred_fallthru
        _
    $region60: #{reranker_forward.1} parent=5 // pred_fallthru
      _
    %p3812 = scmp.le.s32.totalorder 2, %s16
    // Predicated region
    $region65: #{reranker_forward.1} parent=5 // pred_check
      %p3813 = pneg %p3812
    $region66: #{reranker_forward.1} parent=5 // pred_check_branch
      %3815 = sbr.rel (%p3813) target = $region68
    $region67: #{reranker_forward.1} parent=5 // pred_region
      %s3816 = ssub.s32 %s16, 2
      // Predicated region
      $region69: #{reranker_forward.1} parent=67 // pred_check
        %p3817 = pneg %p265
      $region70: #{reranker_forward.1} parent=67 // pred_check_branch
        %3819 = sbr.rel (%p3817) target = $region72
      $region71: #{reranker_forward.1} parent=67 // pred_region
        %s3820 = smul.u32 2, %s22
        %p3821 = scmp.lt.s32.totalorder %s3820, 13
        %s3822 = scalar_select %p3821, %s3820, 13
        %s3823 = smul.addr %s3822, 8
        %s3824 = scalar_lea.vmem %s10, %s3823
      $region72: #{reranker_forward.1} parent=67 // pred_fallthru
        _
    $region68: #{reranker_forward.1} parent=5 // pred_fallthru
      _
  $region6: #{reranker_forward.1} parent=0 // loop_footer
    %s20 = sadd.s32 1, %s16
  $region7: #{reranker_forward.1} parent=0 // loop_footer_branch
    %15 = sbr.rel target = $region3
  $region8: #{reranker_forward.1} parent=0 // loop_exit
    _

</llo_original>
